<compile_context>
chip_gen: v5e
topology: v5e:2x2
jax: 0.10.0
libtpu: 0.0.40
codegen_flags: <defaults>
</compile_context>

<pallas_src>
import functools
import math

import jax
import jax.numpy as jnp
from jax.experimental import pallas as pl
from jax.experimental.pallas import tpu as pltpu


def _cdiv(a, b):
    return (a + b - 1) // b


def _round_up(a, b):
    return _cdiv(a, b) * b


def _fc_kernel(x_ref, w_ref, b_ref, o_ref, *, precision):
    # x_ref: (tmr, P*H)    P tokens packed per row (lane-dense reads)
    # w_ref: (P*H, P*OUT)  block-diagonal replicated W^T (constant index_map)
    # b_ref: (1,  P*OUT)   replicated bias (f32)
    # o_ref: (tmr, P*OUT)  packed logits (lane-dense, unmasked stores)
    xv = x_ref[...].astype(w_ref.dtype)
    acc = jnp.dot(xv, w_ref[...],
                  preferred_element_type=jnp.float32, precision=precision)
    o_ref[...] = (acc + b_ref[...]).astype(o_ref.dtype)


def _choose_packing(in_features, out_features, itemsize, max_w_bytes=8 << 20):
    """Minimum P s.t. both P*H and P*out are multiples of 128 lanes."""
    lane = 128
    p_in = lane // math.gcd(lane, in_features)     # lane-aligned packed input row
    p_out = lane // math.gcd(lane, out_features)   # lane-aligned packed output row
    P = math.lcm(p_in, p_out)                      # power of two
    # Respect the packed-weight VMEM budget.  Prefer keeping the *input* row
    # lane-aligned (reads dominate HBM traffic); drop output lane density first.
    # Any P keeps the BlockSpec legal since both packed dims are full-array dims.
    while P > p_in and (P * in_features) * (P * out_features) * itemsize > max_w_bytes:
        P = max(p_in, P // 2)
    while P > 1 and (P * in_features) * (P * out_features) * itemsize > max_w_bytes:
        P //= 2
    return P


def pack_fc_params(weight, bias, *, packing=None, compute_dtype=None):
    """Precompute (once per set of weights) the packed weight/bias used by the kernel.

    weight: [out_features, in_features]  (PyTorch nn.Linear convention)
    bias:   [out_features]
    compute_dtype: optionally store the packed weight in a lower dtype (e.g.
        jnp.bfloat16) so the in-kernel dot is a single MXU pass (bf16 serving).
    """
    weight = jnp.asarray(weight)
    bias = jnp.asarray(bias)
    out_features, in_features = weight.shape
    w_dtype = jnp.dtype(compute_dtype) if compute_dtype is not None else weight.dtype
    if packing is None:
        packing = _choose_packing(in_features, out_features, w_dtype.itemsize)
    P = int(packing)

    # Block-diagonal replicated W^T and tiled bias (tiny; built once, reused).
    w_packed = jnp.kron(jnp.eye(P, dtype=w_dtype), weight.T.astype(w_dtype))
    b_packed = jnp.tile(bias.astype(jnp.float32), P).reshape(1, P * out_features)
    weight_t = weight.T                      # (H, OUT): for the sub-P tail path
    bias_row = bias.reshape(1, out_features)
    return (w_packed, b_packed, weight_t, bias_row)


def fc_layer_forward(albert_outputs, packed_params, *,
                     x_block_bytes=8 * 1024 * 1024,
                     min_grid_steps=4,
                     precision=jax.lax.Precision.HIGHEST):
    """Pallas equivalent of FCLayer.forward.

    albert_outputs: [B, S, H]
    packed_params:  output of pack_fc_params(weight, bias)
    returns (start_logits, end_logits), each [B, S, 1]
    """
    w_packed, b_packed, weight_t, bias_row = packed_params
    B, S, H = albert_outputs.shape
    out_features = weight_t.shape[1]
    HP, OP = w_packed.shape
    P = HP // H
    assert HP == P * H and OP == P * out_features and weight_t.shape[0] == H

    dtype = albert_outputs.dtype
    itemsize = dtype.itemsize

    M = B * S
    R = M // P                 # number of full packed rows handled by the kernel
    M_main = R * P
    tail = M - M_main          # < P leftover tokens (handled by a tiny XLA dot)

    x2d = albert_outputs.reshape(M, H)
    outputs = []

    if R > 0:
        # Sublane multiple per dtype: 8 (f32) / 16 (bf16) / 32 (int8/fp8).
        sub = max(8, 32 // itemsize)
        row_bytes = P * H * itemsize
        tm_target = max(sub, _round_up(max(1, x_block_bytes // row_bytes), sub))
        # Keep >= min_grid_steps grid steps when R allows: both v7x TensorCores
        # get work and the input DMA pipeline actually double-buffers.
        tm_steps = max(sub, _round_up(_cdiv(R, max(1, min_grid_steps)), sub))
        tmr = min(tm_target, tm_steps)
        grid = (_cdiv(R, tmr),)            # partial last block is masked by Pallas

        # Common case (M % P == 0): free contiguous reshape, no copy of x.
        xm = x2d if tail == 0 else x2d[:M_main]
        xp = xm.reshape(R, P * H)

        kernel = functools.partial(_fc_kernel, precision=precision)
        out_packed = pl.pallas_call(
            kernel,
            out_shape=jax.ShapeDtypeStruct((R, P * out_features), dtype),
            grid_spec=pltpu.PrefetchScalarGridSpec(
                num_scalar_prefetch=0,
                grid=grid,
                in_specs=[
                    pl.BlockSpec((tmr, P * H), lambda i: (i, 0)),
                    # Constant index maps: weight/bias stay resident across steps.
                    # (pipeline_mode=pl.Buffered(1) would shave ~1 MiB of VMEM;
                    #  left at the default since the budget has ample headroom.)
                    pl.BlockSpec((P * H, P * out_features), lambda i: (0, 0)),
                    pl.BlockSpec((1, P * out_features), lambda i: (0, 0)),
                ],
                out_specs=pl.BlockSpec((tmr, P * out_features), lambda i: (i, 0)),
            ),
            compiler_params=pltpu.CompilerParams(
                dimension_semantics=("parallel",),     # shard the grid across TCs
                vmem_limit_bytes=32 * 1024 * 1024,     # explicit; fits v5e/v6e/v7x
            ),
            cost_estimate=pl.CostEstimate(
                # Executed (kron-inflated) MXU work, not the logical count.
                flops=2 * R * (P * H) * (P * out_features),
                transcendentals=0,
                bytes_accessed=(xp.size * itemsize
                                + w_packed.size * w_packed.dtype.itemsize
                                + b_packed.size * b_packed.dtype.itemsize
                                + R * P * out_features * itemsize),
            ),
        )(xp, w_packed, b_packed)
        # (R, P*OUT) -> (M_main, OUT): free contiguous reshape.
        outputs.append(out_packed.reshape(M_main, out_features))

    if tail > 0:
        # <= P-1 leftover tokens: trivial XLA dot, negligible traffic.
        x_tail = x2d[M_main:]
        tail_logits = (jnp.dot(x_tail.astype(jnp.float32),
                               weight_t.astype(jnp.float32),
                               precision=precision)
                       + bias_row.astype(jnp.float32)).astype(dtype)
        outputs.append(tail_logits)

    logits = outputs[0] if len(outputs) == 1 else jnp.concatenate(outputs, axis=0)
    logits = logits.reshape(B, S, out_features)
    # torch .split(1, dim=-1) with out_features == 2 -> two [B, S, 1] tensors.
    start_logits = logits[..., 0:1]
    end_logits = logits[..., 1:2]
    return start_logits, end_logits


if __name__ == "__main__":
    OUT = 2
    H = 32

    key = jax.random.PRNGKey(0)
    kw_, kb, kx = jax.random.split(key, 3)
    bound = 1.0 / (H ** 0.5)
    weight = jax.random.uniform(kw_, (OUT, H), dtype=jnp.float32,
                                minval=-bound, maxval=bound)
    bias = jax.random.uniform(kb, (OUT,), dtype=jnp.float32,
                              minval=-bound, maxval=bound)

    # Packed params are built ONCE (hoisted off the per-forward path).
    packed_f32 = pack_fc_params(weight, bias)
    packed_bf16 = pack_fc_params(weight, bias, compute_dtype=jnp.bfloat16)

    fwd = jax.jit(fc_layer_forward,
                  static_argnames=("x_block_bytes", "min_grid_steps", "precision"))

    def reference(x):
        return (jnp.einsum("bsh,oh->bso", x.astype(jnp.float32), weight,
                           precision=jax.lax.Precision.HIGHEST)
                + bias.astype(jnp.float32))

    def check(B, S, x_dtype=jnp.float32, packed=packed_f32, atol=1e-5, **kw):
        x = jax.random.normal(jax.random.fold_in(kx, 1000 * B + S),
                              (B, S, H), dtype=jnp.float32).astype(x_dtype)
        start_logits, end_logits = fwd(x, packed, **kw)
        jax.block_until_ready((start_logits, end_logits))
        ref = reference(x)
        assert start_logits.shape == (B, S, 1) and end_logits.shape == (B, S, 1)
        assert jnp.allclose(start_logits.astype(jnp.float32), ref[..., 0:1],
                            atol=atol), (B, S, str(x_dtype))
        assert jnp.allclose(end_logits.astype(jnp.float32), ref[..., 1:2],
                            atol=atol), (B, S, str(x_dtype))

    # Main packed path, single tile.
    check(2, 128)
    # Small tile budget -> multi-step grid over the packed rows.
    check(2, 512, x_block_bytes=64 * 1024)
    # Larger M -> min_grid_steps caps the tile so the grid keeps >= 4 steps.
    check(4, 4096)
    # Token count not divisible by the packing factor -> kernel + tiny XLA tail.
    check(1, 100)
    # Fewer tokens than one packed row -> pure XLA tail path (no kernel launch).
    check(2, 8)
    # bf16 activations with a bf16 packed weight (single-pass MXU variant).
    check(2, 512, x_dtype=jnp.bfloat16, packed=packed_bf16, atol=1e-1)

    print("KERNEL_OK")
</pallas_src>

<mosaic_0001>
module attributes {stable_mosaic.version = 11 : i64} {
  func.func @_fc_kernel(%arg0: i32, %arg1: memref<8x2048xf32, #tpu.memory_space<vmem>>, %arg2: memref<2048x128xf32, #tpu.memory_space<vmem>>, %arg3: memref<1x128xf32, #tpu.memory_space<vmem>>, %arg4: memref<8x128xf32, #tpu.memory_space<vmem>>) attributes {dimension_semantics = [#tpu.dimension_semantics<parallel>], iteration_bounds = array<i64: 1>, scalar_prefetch = 0 : i64, scratch_operands = 0 : i64, tpu.core_type = #tpu.core_type<tc>, window_params = [{transform_indices = @transform_0, window_bounds = array<i64: 8, 2048>}, {pipeline_mode = #tpu.pipeline_mode<synchronous>, transform_indices = @transform_1, window_bounds = array<i64: 2048, 128>}, {pipeline_mode = #tpu.pipeline_mode<synchronous>, transform_indices = @transform_2, window_bounds = array<i64: 1, 128>}, {transform_indices = @transform_3, window_bounds = array<i64: 8, 128>}]} {
    %c0 = arith.constant 0 : index
    %c0_0 = arith.constant 0 : index
    %0 = vector.load %arg1[%c0, %c0_0] : memref<8x2048xf32, #tpu.memory_space<vmem>>, vector<8x2048xf32>
    %c0_1 = arith.constant 0 : index
    %c0_2 = arith.constant 0 : index
    %1 = vector.load %arg2[%c0_1, %c0_2] : memref<2048x128xf32, #tpu.memory_space<vmem>>, vector<2048x128xf32>
    %cst = arith.constant dense<0.000000e+00> : vector<8x128xf32>
    %2 = tpu.matmul %0, %1, %cst {dimension_numbers = #tpu.dot_dimension_numbers<[1], [0], [0], [1], [0, 0, 1, 1], [], []>, precision = #tpu.contract_precision<fp32>} : vector<8x2048xf32>, vector<2048x128xf32>, vector<8x128xf32> -> vector<8x128xf32>
    %c0_3 = arith.constant 0 : index
    %c0_4 = arith.constant 0 : index
    %3 = vector.load %arg3[%c0_3, %c0_4] : memref<1x128xf32, #tpu.memory_space<vmem>>, vector<1x128xf32>
    %4 = vector.broadcast %3 : vector<1x128xf32> to vector<8x128xf32>
    %5 = arith.addf %2, %4 : vector<8x128xf32>
    %c0_5 = arith.constant 0 : index
    %c0_6 = arith.constant 0 : index
    %6 = vector.load %arg4[%c0_5, %c0_6] : memref<8x128xf32, #tpu.memory_space<vmem>>, vector<8x128xf32>
    tpu.vector_store %arg4[%c0_5, %c0_6], %5 {strides = array<i32>} : memref<8x128xf32, #tpu.memory_space<vmem>>, vector<8x128xf32>,
    return
  }
  func.func @transform_0(%arg0: i32) -> (i32, i32) {
    %c0_i32 = arith.constant 0 : i32
    %c0_i32_0 = arith.constant 0 : i32
    return %arg0, %c0_i32 : i32, i32
  }
  func.func @transform_1(%arg0: i32) -> (i32, i32) {
    %c0_i32 = arith.constant 0 : i32
    %c0_i32_0 = arith.constant 0 : i32
    %c0_i32_1 = arith.constant 0 : i32
    return %c0_i32, %c0_i32_0 : i32, i32
  }
  func.func @transform_2(%arg0: i32) -> (i32, i32) {
    %c0_i32 = arith.constant 0 : i32
    %c0_i32_0 = arith.constant 0 : i32
    %c0_i32_1 = arith.constant 0 : i32
    return %c0_i32, %c0_i32_0 : i32, i32
  }
  func.func @transform_3(%arg0: i32) -> (i32, i32) {
    %c0_i32 = arith.constant 0 : i32
    %c0_i32_0 = arith.constant 0 : i32
    return %arg0, %c0_i32 : i32, i32
  }
}

</mosaic_0001>

<llo_original>
// kernel: fc_layer_forward.1
$region0: #{fc_layer_forward.1}
  #allocation0 [shape = 'u32[]', space=smem, size = 0x4, offset = 0x4, fixed_abs, tag = 'smem constant byte address 0x4 - core index']
  #allocation1 [shape = 'u32[72,128]{1,0:T(1,128)}', space=vmem, size = 0x9000, scoped, tag = 'internal scratch']
  %s0 = inlined_call_operand.vmem [shape: f32[4,2048], index: 0, kind: input, shape index: {}]
  %s1 = inlined_call_operand.hbm [shape: f32[2048,128], index: 1, kind: input, shape index: {}]
  %s2 = inlined_call_operand.vmem [shape: f32[1,128], index: 2, kind: input, shape index: {}]
  %s3 = inlined_call_operand.vmem [shape: f32[4,128], index: 3, kind: output, shape index: {}]
  %s4 = sld [smem:[#allocation0]]
  $region56: #{fc_layer_forward.1} parent=0
    _
  %s6 = ssub.s32 1, %s4
  %s7 = scalar_select 0, %s6, %s4
  $region1: #{fc_layer_forward.1} parent=0
    #allocation2 [shape = 'u8[1048576]{0}', space=vmem, size = 0x100000, scoped, tag = 'input window, operand 1, single buffered']
    #allocation3 [shape = 's32[1]{0}', space=sflag, size = 0x4, scoped, tag = 'scoped memory for fc_layer_forward.1']
    #allocation4 [shape = 'u8[4096]{0}', space=vmem, size = 0x1000, scoped, tag = 'output window, operand 0, single buffered']
    %8 = vsyncpa [#allocation3], 0
    // Predicated region
    $region2: #{fc_layer_forward.1} parent=1 // pred_check
      _
    $region3: #{fc_layer_forward.1} parent=1 // pred_check_branch
      %10 = sbr.rel (0) target = $region5
    $region4: #{fc_layer_forward.1} parent=1 // pred_region
      _
    $region5: #{fc_layer_forward.1} parent=1 // pred_fallthru
      _
    // Predicated region
    $region6: #{fc_layer_forward.1} parent=1 // pred_check
      _
    $region7: #{fc_layer_forward.1} parent=1 // pred_check_branch
      %12 = sbr.rel (0) target = $region9
    $region8: #{fc_layer_forward.1} parent=1 // pred_region
      %14 = vsyncadd [#allocation3], 0
      %s15 = sshll.u32 %s1, 4
      %s16 = int_to_ptr.hbm [resolvable:$true] %s15
      %s17 = sshll.u32 [#allocation2], 4
      %s18 = int_to_ptr.vmem [resolvable:$true] %s17
      %23 = dma.hbm_to_vmem [thread:$0]  %s16, 32768, %s18, [#allocation3], 128, 128, 8
    $region9: #{fc_layer_forward.1} parent=1 // pred_fallthru
      _
    // Predicated region
    $region10: #{fc_layer_forward.1} parent=1 // pred_check
      _
    $region11: #{fc_layer_forward.1} parent=1 // pred_check_branch
      %25 = sbr.rel (0) target = $region13
    $region12: #{fc_layer_forward.1} parent=1 // pred_region
      _
    $region13: #{fc_layer_forward.1} parent=1 // pred_fallthru
      _
    // Predicated region
    $region14: #{fc_layer_forward.1} parent=1 // pred_check
      _
    $region15: #{fc_layer_forward.1} parent=1 // pred_check_branch
      %27 = sbr.rel (0) target = $region17
    $region16: #{fc_layer_forward.1} parent=1 // pred_region
      %29 = dma.done [#allocation3], 32768
    $region17: #{fc_layer_forward.1} parent=1 // pred_fallthru
      _
    %v30 = vld [vmem:[%s0] sm:$0xff]
    %v31 = vld [vmem:[%s0 + $0x8] sm:$0xff]
    %v32 = vld [vmem:[%s0 + $0x10] sm:$0xff]
    %v33 = vld [vmem:[%s0 + $0x18] sm:$0xff]
    %v34 = vld [vmem:[%s0 + $0x20] sm:$0xff]
    %v35 = vld [vmem:[%s0 + $0x28] sm:$0xff]
    %v36 = vld [vmem:[%s0 + $0x30] sm:$0xff]
    %v37 = vld [vmem:[%s0 + $0x38] sm:$0xff]
    %v38 = vld [vmem:[%s0 + $0x40] sm:$0xff]
    %v39 = vld [vmem:[%s0 + $0x48] sm:$0xff]
    %v40 = vld [vmem:[%s0 + $0x50] sm:$0xff]
    %v41 = vld [vmem:[%s0 + $0x58] sm:$0xff]
    %v42 = vld [vmem:[%s0 + $0x60] sm:$0xff]
    %v43 = vld [vmem:[%s0 + $0x68] sm:$0xff]
    %v44 = vld [vmem:[%s0 + $0x70] sm:$0xff]
    %v45 = vld [vmem:[%s0 + $0x78] sm:$0xff]
    %v46 = vld [vmem:[#allocation2] sm:$0xff]
    %v47 = vld [vmem:[#allocation2 + $0x8] sm:$0xff]
    %v48 = vld [vmem:[#allocation2 + $0x10] sm:$0xff]
    %v49 = vld [vmem:[#allocation2 + $0x18] sm:$0xff]
    %v50 = vld [vmem:[#allocation2 + $0x20] sm:$0xff]
    %v51 = vld [vmem:[#allocation2 + $0x28] sm:$0xff]
    %v52 = vld [vmem:[#allocation2 + $0x30] sm:$0xff]
    %v53 = vld [vmem:[#allocation2 + $0x38] sm:$0xff]
    %v54 = vld [vmem:[#allocation2 + $0x40] sm:$0xff]
    %v55 = vld [vmem:[#allocation2 + $0x48] sm:$0xff]
    %v56 = vld [vmem:[#allocation2 + $0x50] sm:$0xff]
    %v57 = vld [vmem:[#allocation2 + $0x58] sm:$0xff]
    %v58 = vld [vmem:[#allocation2 + $0x60] sm:$0xff]
    %v59 = vld [vmem:[#allocation2 + $0x68] sm:$0xff]
    %v60 = vld [vmem:[#allocation2 + $0x70] sm:$0xff]
    %v61 = vld [vmem:[#allocation2 + $0x78] sm:$0xff]
    %v62 = vld [vmem:[#allocation2 + $0x80] sm:$0xff]
    %v63 = vld [vmem:[#allocation2 + $0x88] sm:$0xff]
    %v64 = vld [vmem:[#allocation2 + $0x90] sm:$0xff]
    %v65 = vld [vmem:[#allocation2 + $0x98] sm:$0xff]
    %v66 = vld [vmem:[#allocation2 + $0xa0] sm:$0xff]
    %v67 = vld [vmem:[#allocation2 + $0xa8] sm:$0xff]
    %v68 = vld [vmem:[#allocation2 + $0xb0] sm:$0xff]
    %v69 = vld [vmem:[#allocation2 + $0xb8] sm:$0xff]
    %v70 = vld [vmem:[#allocation2 + $0xc0] sm:$0xff]
    %v71 = vld [vmem:[#allocation2 + $0xc8] sm:$0xff]
    %v72 = vld [vmem:[#allocation2 + $0xd0] sm:$0xff]
    %v73 = vld [vmem:[#allocation2 + $0xd8] sm:$0xff]
    %v74 = vld [vmem:[#allocation2 + $0xe0] sm:$0xff]
    %v75 = vld [vmem:[#allocation2 + $0xe8] sm:$0xff]
    %v76 = vld [vmem:[#allocation2 + $0xf0] sm:$0xff]
    %v77 = vld [vmem:[#allocation2 + $0xf8] sm:$0xff]
    %v78 = vld [vmem:[#allocation2 + $0x100] sm:$0xff]
    %v79 = vld [vmem:[#allocation2 + $0x108] sm:$0xff]
    %v80 = vld [vmem:[#allocation2 + $0x110] sm:$0xff]
    %v81 = vld [vmem:[#allocation2 + $0x118] sm:$0xff]
    %v82 = vld [vmem:[#allocation2 + $0x120] sm:$0xff]
    %v83 = vld [vmem:[#allocation2 + $0x128] sm:$0xff]
    %v84 = vld [vmem:[#allocation2 + $0x130] sm:$0xff]
    %v85 = vld [vmem:[#allocation2 + $0x138] sm:$0xff]
    %v86 = vld [vmem:[#allocation2 + $0x140] sm:$0xff]
    %v87 = vld [vmem:[#allocation2 + $0x148] sm:$0xff]
    %v88 = vld [vmem:[#allocation2 + $0x150] sm:$0xff]
    %v89 = vld [vmem:[#allocation2 + $0x158] sm:$0xff]
    %v90 = vld [vmem:[#allocation2 + $0x160] sm:$0xff]
    %v91 = vld [vmem:[#allocation2 + $0x168] sm:$0xff]
    %v92 = vld [vmem:[#allocation2 + $0x170] sm:$0xff]
    %v93 = vld [vmem:[#allocation2 + $0x178] sm:$0xff]
    %v94 = vld [vmem:[#allocation2 + $0x180] sm:$0xff]
    %v95 = vld [vmem:[#allocation2 + $0x188] sm:$0xff]
    %v96 = vld [vmem:[#allocation2 + $0x190] sm:$0xff]
    %v97 = vld [vmem:[#allocation2 + $0x198] sm:$0xff]
    %v98 = vld [vmem:[#allocation2 + $0x1a0] sm:$0xff]
    %v99 = vld [vmem:[#allocation2 + $0x1a8] sm:$0xff]
    %v100 = vld [vmem:[#allocation2 + $0x1b0] sm:$0xff]
    %v101 = vld [vmem:[#allocation2 + $0x1b8] sm:$0xff]
    %v102 = vld [vmem:[#allocation2 + $0x1c0] sm:$0xff]
    %v103 = vld [vmem:[#allocation2 + $0x1c8] sm:$0xff]
    %v104 = vld [vmem:[#allocation2 + $0x1d0] sm:$0xff]
    %v105 = vld [vmem:[#allocation2 + $0x1d8] sm:$0xff]
    %v106 = vld [vmem:[#allocation2 + $0x1e0] sm:$0xff]
    %v107 = vld [vmem:[#allocation2 + $0x1e8] sm:$0xff]
    %v108 = vld [vmem:[#allocation2 + $0x1f0] sm:$0xff]
    %v109 = vld [vmem:[#allocation2 + $0x1f8] sm:$0xff]
    %v110 = vld [vmem:[#allocation2 + $0x200] sm:$0xff]
    %v111 = vld [vmem:[#allocation2 + $0x208] sm:$0xff]
    %v112 = vld [vmem:[#allocation2 + $0x210] sm:$0xff]
    %v113 = vld [vmem:[#allocation2 + $0x218] sm:$0xff]
    %v114 = vld [vmem:[#allocation2 + $0x220] sm:$0xff]
    %v115 = vld [vmem:[#allocation2 + $0x228] sm:$0xff]
    %v116 = vld [vmem:[#allocation2 + $0x230] sm:$0xff]
    %v117 = vld [vmem:[#allocation2 + $0x238] sm:$0xff]
    %v118 = vld [vmem:[#allocation2 + $0x240] sm:$0xff]
    %v119 = vld [vmem:[#allocation2 + $0x248] sm:$0xff]
    %v120 = vld [vmem:[#allocation2 + $0x250] sm:$0xff]
    %v121 = vld [vmem:[#allocation2 + $0x258] sm:$0xff]
    %v122 = vld [vmem:[#allocation2 + $0x260] sm:$0xff]
    %v123 = vld [vmem:[#allocation2 + $0x268] sm:$0xff]
    %v124 = vld [vmem:[#allocation2 + $0x270] sm:$0xff]
    %v125 = vld [vmem:[#allocation2 + $0x278] sm:$0xff]
    %v126 = vld [vmem:[#allocation2 + $0x280] sm:$0xff]
    %v127 = vld [vmem:[#allocation2 + $0x288] sm:$0xff]
    %v128 = vld [vmem:[#allocation2 + $0x290] sm:$0xff]
    %v129 = vld [vmem:[#allocation2 + $0x298] sm:$0xff]
    %v130 = vld [vmem:[#allocation2 + $0x2a0] sm:$0xff]
    %v131 = vld [vmem:[#allocation2 + $0x2a8] sm:$0xff]
    %v132 = vld [vmem:[#allocation2 + $0x2b0] sm:$0xff]
    %v133 = vld [vmem:[#allocation2 + $0x2b8] sm:$0xff]
    %v134 = vld [vmem:[#allocation2 + $0x2c0] sm:$0xff]
    %v135 = vld [vmem:[#allocation2 + $0x2c8] sm:$0xff]
    %v136 = vld [vmem:[#allocation2 + $0x2d0] sm:$0xff]
    %v137 = vld [vmem:[#allocation2 + $0x2d8] sm:$0xff]
    %v138 = vld [vmem:[#allocation2 + $0x2e0] sm:$0xff]
    %v139 = vld [vmem:[#allocation2 + $0x2e8] sm:$0xff]
    %v140 = vld [vmem:[#allocation2 + $0x2f0] sm:$0xff]
    %v141 = vld [vmem:[#allocation2 + $0x2f8] sm:$0xff]
    %v142 = vld [vmem:[#allocation2 + $0x300] sm:$0xff]
    %v143 = vld [vmem:[#allocation2 + $0x308] sm:$0xff]
    %v144 = vld [vmem:[#allocation2 + $0x310] sm:$0xff]
    %v145 = vld [vmem:[#allocation2 + $0x318] sm:$0xff]
    %v146 = vld [vmem:[#allocation2 + $0x320] sm:$0xff]
    %v147 = vld [vmem:[#allocation2 + $0x328] sm:$0xff]
    %v148 = vld [vmem:[#allocation2 + $0x330] sm:$0xff]
    %v149 = vld [vmem:[#allocation2 + $0x338] sm:$0xff]
    %v150 = vld [vmem:[#allocation2 + $0x340] sm:$0xff]
    %v151 = vld [vmem:[#allocation2 + $0x348] sm:$0xff]
    %v152 = vld [vmem:[#allocation2 + $0x350] sm:$0xff]
    %v153 = vld [vmem:[#allocation2 + $0x358] sm:$0xff]
    %v154 = vld [vmem:[#allocation2 + $0x360] sm:$0xff]
    %v155 = vld [vmem:[#allocation2 + $0x368] sm:$0xff]
    %v156 = vld [vmem:[#allocation2 + $0x370] sm:$0xff]
    %v157 = vld [vmem:[#allocation2 + $0x378] sm:$0xff]
    %v158 = vld [vmem:[#allocation2 + $0x380] sm:$0xff]
    %v159 = vld [vmem:[#allocation2 + $0x388] sm:$0xff]
    %v160 = vld [vmem:[#allocation2 + $0x390] sm:$0xff]
    %v161 = vld [vmem:[#allocation2 + $0x398] sm:$0xff]
    %v162 = vld [vmem:[#allocation2 + $0x3a0] sm:$0xff]
    %v163 = vld [vmem:[#allocation2 + $0x3a8] sm:$0xff]
    %v164 = vld [vmem:[#allocation2 + $0x3b0] sm:$0xff]
    %v165 = vld [vmem:[#allocation2 + $0x3b8] sm:$0xff]
    %v166 = vld [vmem:[#allocation2 + $0x3c0] sm:$0xff]
    %v167 = vld [vmem:[#allocation2 + $0x3c8] sm:$0xff]
    %v168 = vld [vmem:[#allocation2 + $0x3d0] sm:$0xff]
    %v169 = vld [vmem:[#allocation2 + $0x3d8] sm:$0xff]
    %v170 = vld [vmem:[#allocation2 + $0x3e0] sm:$0xff]
    %v171 = vld [vmem:[#allocation2 + $0x3e8] sm:$0xff]
    %v172 = vld [vmem:[#allocation2 + $0x3f0] sm:$0xff]
    %v173 = vld [vmem:[#allocation2 + $0x3f8] sm:$0xff]
    %v174 = vld [vmem:[#allocation2 + $0x400] sm:$0xff]
    %v175 = vld [vmem:[#allocation2 + $0x408] sm:$0xff]
    %v176 = vld [vmem:[#allocation2 + $0x410] sm:$0xff]
    %v177 = vld [vmem:[#allocation2 + $0x418] sm:$0xff]
    %v178 = vld [vmem:[#allocation2 + $0x420] sm:$0xff]
    %v179 = vld [vmem:[#allocation2 + $0x428] sm:$0xff]
    %v180 = vld [vmem:[#allocation2 + $0x430] sm:$0xff]
    %v181 = vld [vmem:[#allocation2 + $0x438] sm:$0xff]
    %v182 = vld [vmem:[#allocation2 + $0x440] sm:$0xff]
    %v183 = vld [vmem:[#allocation2 + $0x448] sm:$0xff]
    %v184 = vld [vmem:[#allocation2 + $0x450] sm:$0xff]
    %v185 = vld [vmem:[#allocation2 + $0x458] sm:$0xff]
    %v186 = vld [vmem:[#allocation2 + $0x460] sm:$0xff]
    %v187 = vld [vmem:[#allocation2 + $0x468] sm:$0xff]
    %v188 = vld [vmem:[#allocation2 + $0x470] sm:$0xff]
    %v189 = vld [vmem:[#allocation2 + $0x478] sm:$0xff]
    %v190 = vld [vmem:[#allocation2 + $0x480] sm:$0xff]
    %v191 = vld [vmem:[#allocation2 + $0x488] sm:$0xff]
    %v192 = vld [vmem:[#allocation2 + $0x490] sm:$0xff]
    %v193 = vld [vmem:[#allocation2 + $0x498] sm:$0xff]
    %v194 = vld [vmem:[#allocation2 + $0x4a0] sm:$0xff]
    %v195 = vld [vmem:[#allocation2 + $0x4a8] sm:$0xff]
    %v196 = vld [vmem:[#allocation2 + $0x4b0] sm:$0xff]
    %v197 = vld [vmem:[#allocation2 + $0x4b8] sm:$0xff]
    %v198 = vld [vmem:[#allocation2 + $0x4c0] sm:$0xff]
    %v199 = vld [vmem:[#allocation2 + $0x4c8] sm:$0xff]
    %v200 = vld [vmem:[#allocation2 + $0x4d0] sm:$0xff]
    %v201 = vld [vmem:[#allocation2 + $0x4d8] sm:$0xff]
    %v202 = vld [vmem:[#allocation2 + $0x4e0] sm:$0xff]
    %v203 = vld [vmem:[#allocation2 + $0x4e8] sm:$0xff]
    %v204 = vld [vmem:[#allocation2 + $0x4f0] sm:$0xff]
    %v205 = vld [vmem:[#allocation2 + $0x4f8] sm:$0xff]
    %v206 = vld [vmem:[#allocation2 + $0x500] sm:$0xff]
    %v207 = vld [vmem:[#allocation2 + $0x508] sm:$0xff]
    %v208 = vld [vmem:[#allocation2 + $0x510] sm:$0xff]
    %v209 = vld [vmem:[#allocation2 + $0x518] sm:$0xff]
    %v210 = vld [vmem:[#allocation2 + $0x520] sm:$0xff]
    %v211 = vld [vmem:[#allocation2 + $0x528] sm:$0xff]
    %v212 = vld [vmem:[#allocation2 + $0x530] sm:$0xff]
    %v213 = vld [vmem:[#allocation2 + $0x538] sm:$0xff]
    %v214 = vld [vmem:[#allocation2 + $0x540] sm:$0xff]
    %v215 = vld [vmem:[#allocation2 + $0x548] sm:$0xff]
    %v216 = vld [vmem:[#allocation2 + $0x550] sm:$0xff]
    %v217 = vld [vmem:[#allocation2 + $0x558] sm:$0xff]
    %v218 = vld [vmem:[#allocation2 + $0x560] sm:$0xff]
    %v219 = vld [vmem:[#allocation2 + $0x568] sm:$0xff]
    %v220 = vld [vmem:[#allocation2 + $0x570] sm:$0xff]
    %v221 = vld [vmem:[#allocation2 + $0x578] sm:$0xff]
    %v222 = vld [vmem:[#allocation2 + $0x580] sm:$0xff]
    %v223 = vld [vmem:[#allocation2 + $0x588] sm:$0xff]
    %v224 = vld [vmem:[#allocation2 + $0x590] sm:$0xff]
    %v225 = vld [vmem:[#allocation2 + $0x598] sm:$0xff]
    %v226 = vld [vmem:[#allocation2 + $0x5a0] sm:$0xff]
    %v227 = vld [vmem:[#allocation2 + $0x5a8] sm:$0xff]
    %v228 = vld [vmem:[#allocation2 + $0x5b0] sm:$0xff]
    %v229 = vld [vmem:[#allocation2 + $0x5b8] sm:$0xff]
    %v230 = vld [vmem:[#allocation2 + $0x5c0] sm:$0xff]
    %v231 = vld [vmem:[#allocation2 + $0x5c8] sm:$0xff]
    %v232 = vld [vmem:[#allocation2 + $0x5d0] sm:$0xff]
    %v233 = vld [vmem:[#allocation2 + $0x5d8] sm:$0xff]
    %v234 = vld [vmem:[#allocation2 + $0x5e0] sm:$0xff]
    %v235 = vld [vmem:[#allocation2 + $0x5e8] sm:$0xff]
    %v236 = vld [vmem:[#allocation2 + $0x5f0] sm:$0xff]
    %v237 = vld [vmem:[#allocation2 + $0x5f8] sm:$0xff]
    %v238 = vld [vmem:[#allocation2 + $0x600] sm:$0xff]
    %v239 = vld [vmem:[#allocation2 + $0x608] sm:$0xff]
    %v240 = vld [vmem:[#allocation2 + $0x610] sm:$0xff]
    %v241 = vld [vmem:[#allocation2 + $0x618] sm:$0xff]
    %v242 = vld [vmem:[#allocation2 + $0x620] sm:$0xff]
    %v243 = vld [vmem:[#allocation2 + $0x628] sm:$0xff]
    %v244 = vld [vmem:[#allocation2 + $0x630] sm:$0xff]
    %v245 = vld [vmem:[#allocation2 + $0x638] sm:$0xff]
    %v246 = vld [vmem:[#allocation2 + $0x640] sm:$0xff]
    %v247 = vld [vmem:[#allocation2 + $0x648] sm:$0xff]
    %v248 = vld [vmem:[#allocation2 + $0x650] sm:$0xff]
    %v249 = vld [vmem:[#allocation2 + $0x658] sm:$0xff]
    %v250 = vld [vmem:[#allocation2 + $0x660] sm:$0xff]
    %v251 = vld [vmem:[#allocation2 + $0x668] sm:$0xff]
    %v252 = vld [vmem:[#allocation2 + $0x670] sm:$0xff]
    %v253 = vld [vmem:[#allocation2 + $0x678] sm:$0xff]
    %v254 = vld [vmem:[#allocation2 + $0x680] sm:$0xff]
    %v255 = vld [vmem:[#allocation2 + $0x688] sm:$0xff]
    %v256 = vld [vmem:[#allocation2 + $0x690] sm:$0xff]
    %v257 = vld [vmem:[#allocation2 + $0x698] sm:$0xff]
    %v258 = vld [vmem:[#allocation2 + $0x6a0] sm:$0xff]
    %v259 = vld [vmem:[#allocation2 + $0x6a8] sm:$0xff]
    %v260 = vld [vmem:[#allocation2 + $0x6b0] sm:$0xff]
    %v261 = vld [vmem:[#allocation2 + $0x6b8] sm:$0xff]
    %v262 = vld [vmem:[#allocation2 + $0x6c0] sm:$0xff]
    %v263 = vld [vmem:[#allocation2 + $0x6c8] sm:$0xff]
    %v264 = vld [vmem:[#allocation2 + $0x6d0] sm:$0xff]
    %v265 = vld [vmem:[#allocation2 + $0x6d8] sm:$0xff]
    %v266 = vld [vmem:[#allocation2 + $0x6e0] sm:$0xff]
    %v267 = vld [vmem:[#allocation2 + $0x6e8] sm:$0xff]
    %v268 = vld [vmem:[#allocation2 + $0x6f0] sm:$0xff]
    %v269 = vld [vmem:[#allocation2 + $0x6f8] sm:$0xff]
    %v270 = vld [vmem:[#allocation2 + $0x700] sm:$0xff]
    %v271 = vld [vmem:[#allocation2 + $0x708] sm:$0xff]
    %v272 = vld [vmem:[#allocation2 + $0x710] sm:$0xff]
    %v273 = vld [vmem:[#allocation2 + $0x718] sm:$0xff]
    %v274 = vld [vmem:[#allocation2 + $0x720] sm:$0xff]
    %v275 = vld [vmem:[#allocation2 + $0x728] sm:$0xff]
    %v276 = vld [vmem:[#allocation2 + $0x730] sm:$0xff]
    %v277 = vld [vmem:[#allocation2 + $0x738] sm:$0xff]
    %v278 = vld [vmem:[#allocation2 + $0x740] sm:$0xff]
    %v279 = vld [vmem:[#allocation2 + $0x748] sm:$0xff]
    %v280 = vld [vmem:[#allocation2 + $0x750] sm:$0xff]
    %v281 = vld [vmem:[#allocation2 + $0x758] sm:$0xff]
    %v282 = vld [vmem:[#allocation2 + $0x760] sm:$0xff]
    %v283 = vld [vmem:[#allocation2 + $0x768] sm:$0xff]
    %v284 = vld [vmem:[#allocation2 + $0x770] sm:$0xff]
    %v285 = vld [vmem:[#allocation2 + $0x778] sm:$0xff]
    %v286 = vld [vmem:[#allocation2 + $0x780] sm:$0xff]
    %v287 = vld [vmem:[#allocation2 + $0x788] sm:$0xff]
    %v288 = vld [vmem:[#allocation2 + $0x790] sm:$0xff]
    %v289 = vld [vmem:[#allocation2 + $0x798] sm:$0xff]
    %v290 = vld [vmem:[#allocation2 + $0x7a0] sm:$0xff]
    %v291 = vld [vmem:[#allocation2 + $0x7a8] sm:$0xff]
    %v292 = vld [vmem:[#allocation2 + $0x7b0] sm:$0xff]
    %v293 = vld [vmem:[#allocation2 + $0x7b8] sm:$0xff]
    %v294 = vld [vmem:[#allocation2 + $0x7c0] sm:$0xff]
    %v295 = vld [vmem:[#allocation2 + $0x7c8] sm:$0xff]
    %v296 = vld [vmem:[#allocation2 + $0x7d0] sm:$0xff]
    %v297 = vld [vmem:[#allocation2 + $0x7d8] sm:$0xff]
    %v298 = vld [vmem:[#allocation2 + $0x7e0] sm:$0xff]
    %v299 = vld [vmem:[#allocation2 + $0x7e8] sm:$0xff]
    %v300 = vld [vmem:[#allocation2 + $0x7f0] sm:$0xff]
    %v301 = vld [vmem:[#allocation2 + $0x7f8] sm:$0xff]
    %v302 = vld [vmem:[%s2] sm:$0x1]
    %v304 = vperm.slane %v302, 0
    %322 = vst [vmem:[#allocation1] ss:$2 sm:$0xff] %v30
    %s323 = scalar_lea.vmem [#allocation1], 1
    %324 = vst [vmem:[%s323] ss:$2 sm:$0xff] %v38
    %s325 = scalar_lea.vmem [#allocation1], 16
    %326 = vst [vmem:[%s325] ss:$2 sm:$0xff] %v31
    %s327 = scalar_lea.vmem [#allocation1], 17
    %328 = vst [vmem:[%s327] ss:$2 sm:$0xff] %v39
    %s329 = scalar_lea.vmem [#allocation1], 32
    %330 = vst [vmem:[%s329] ss:$2 sm:$0xff] %v32
    %s331 = scalar_lea.vmem [#allocation1], 33
    %332 = vst [vmem:[%s331] ss:$2 sm:$0xff] %v40
    %s333 = scalar_lea.vmem [#allocation1], 48
    %334 = vst [vmem:[%s333] ss:$2 sm:$0xff] %v33
    %s335 = scalar_lea.vmem [#allocation1], 49
    %336 = vst [vmem:[%s335] ss:$2 sm:$0xff] %v41
    %v337 = vld.sshfl [vmem:[#allocation1] sm:$0xff pattern:$0x75316420]
    %v338 = vld.sshfl [vmem:[#allocation1 + $0x8] sm:$0xff pattern:$0x75316420]
    %v339 = vld.sshfl [vmem:[#allocation1 + $0x10] sm:$0xff pattern:$0x75316420]
    %v340 = vld.sshfl [vmem:[#allocation1 + $0x18] sm:$0xff pattern:$0x75316420]
    %v341 = vld.sshfl [vmem:[#allocation1 + $0x20] sm:$0xff pattern:$0x75316420]
    %v342 = vld.sshfl [vmem:[#allocation1 + $0x28] sm:$0xff pattern:$0x75316420]
    %v343 = vld.sshfl [vmem:[#allocation1 + $0x30] sm:$0xff pattern:$0x75316420]
    %v344 = vld.sshfl [vmem:[#allocation1 + $0x38] sm:$0xff pattern:$0x75316420]
    %345 = vst [vmem:[#allocation1] ss:$2 sm:$0xff] %v34
    %346 = vst [vmem:[%s323] ss:$2 sm:$0xff] %v42
    %347 = vst [vmem:[%s325] ss:$2 sm:$0xff] %v35
    %348 = vst [vmem:[%s327] ss:$2 sm:$0xff] %v43
    %349 = vst [vmem:[%s329] ss:$2 sm:$0xff] %v36
    %350 = vst [vmem:[%s331] ss:$2 sm:$0xff] %v44
    %351 = vst [vmem:[%s333] ss:$2 sm:$0xff] %v37
    %352 = vst [vmem:[%s335] ss:$2 sm:$0xff] %v45
    %v353 = vld.sshfl [vmem:[#allocation1] sm:$0xff pattern:$0x75316420]
    %v354 = vld.sshfl [vmem:[#allocation1 + $0x8] sm:$0xff pattern:$0x75316420]
    %v355 = vld.sshfl [vmem:[#allocation1 + $0x10] sm:$0xff pattern:$0x75316420]
    %v356 = vld.sshfl [vmem:[#allocation1 + $0x18] sm:$0xff pattern:$0x75316420]
    %v357 = vld.sshfl [vmem:[#allocation1 + $0x20] sm:$0xff pattern:$0x75316420]
    %v358 = vld.sshfl [vmem:[#allocation1 + $0x28] sm:$0xff pattern:$0x75316420]
    %v359 = vld.sshfl [vmem:[#allocation1 + $0x30] sm:$0xff pattern:$0x75316420]
    %v360 = vld.sshfl [vmem:[#allocation1 + $0x38] sm:$0xff pattern:$0x75316420]
    %v377 = vand.u32 %v61, 4294901760
    %378 = vmatpush.msra.mxu0 %v377
    %v379 = vand.u32 %v60, 4294901760
    %380 = vmatpush.msra.mxu0 %v379
    %v381 = vand.u32 %v59, 4294901760
    %382 = vmatpush.msra.mxu0 %v381
    %v383 = vand.u32 %v58, 4294901760
    %384 = vmatpush.msra.mxu0 %v383
    %v385 = vand.u32 %v57, 4294901760
    %386 = vmatpush.msra.mxu0 %v385
    %v387 = vand.u32 %v56, 4294901760
    %388 = vmatpush.msra.mxu0 %v387
    %v389 = vand.u32 %v55, 4294901760
    %390 = vmatpush.msra.mxu0 %v389
    %v391 = vand.u32 %v54, 4294901760
    %392 = vmatpush.msra.mxu0 %v391
    %v393 = vand.u32 %v53, 4294901760
    %394 = vmatpush.msra.mxu0 %v393
    %v395 = vand.u32 %v52, 4294901760
    %396 = vmatpush.msra.mxu0 %v395
    %v397 = vand.u32 %v51, 4294901760
    %398 = vmatpush.msra.mxu0 %v397
    %v399 = vand.u32 %v50, 4294901760
    %400 = vmatpush.msra.mxu0 %v399
    %v401 = vand.u32 %v49, 4294901760
    %402 = vmatpush.msra.mxu0 %v401
    %v403 = vand.u32 %v48, 4294901760
    %404 = vmatpush.msra.mxu0 %v403
    %v405 = vand.u32 %v47, 4294901760
    %406 = vmatpush.msra.mxu0 %v405
    %v407 = vand.u32 %v46, 4294901760
    %408 = vmatpush.msra.mxu0 %v407
    %v409 = vand.u32 %v337, 4294901760
    %v410 = vsub.f32 %v337, %v409
    %v411 = vand.u32 %v410, 4294901760
    %v412 = vsub.f32 %v410, %v411
    %v413 = vand.u32 %v412, 4294901760
    %414 = vmatmul.f32.gmra.mxu0 %v413
    %v415 = vpop.f32.mrf.mxu0
    %v416 = vadd.f32 %v304, %v415
    %417 = vdwg.mxu0
    %v418 = vand.u32 %v61, 4294901760
    %v419 = vsub.f32 %v61, %v418
    %v420 = vand.u32 %v419, 4294901760
    %v421 = vsub.f32 %v419, %v420
    %v422 = vand.u32 %v421, 4294901760
    %423 = vmatpush.msra.mxu0 %v422
    %v424 = vand.u32 %v60, 4294901760
    %v425 = vsub.f32 %v60, %v424
    %v426 = vand.u32 %v425, 4294901760
    %v427 = vsub.f32 %v425, %v426
    %v428 = vand.u32 %v427, 4294901760
    %429 = vmatpush.msra.mxu0 %v428
    %v430 = vand.u32 %v59, 4294901760
    %v431 = vsub.f32 %v59, %v430
    %v432 = vand.u32 %v431, 4294901760
    %v433 = vsub.f32 %v431, %v432
    %v434 = vand.u32 %v433, 4294901760
    %435 = vmatpush.msra.mxu0 %v434
    %v436 = vand.u32 %v58, 4294901760
    %v437 = vsub.f32 %v58, %v436
    %v438 = vand.u32 %v437, 4294901760
    %v439 = vsub.f32 %v437, %v438
    %v440 = vand.u32 %v439, 4294901760
    %441 = vmatpush.msra.mxu0 %v440
    %v442 = vand.u32 %v57, 4294901760
    %v443 = vsub.f32 %v57, %v442
    %v444 = vand.u32 %v443, 4294901760
    %v445 = vsub.f32 %v443, %v444
    %v446 = vand.u32 %v445, 4294901760
    %447 = vmatpush.msra.mxu0 %v446
    %v448 = vand.u32 %v56, 4294901760
    %v449 = vsub.f32 %v56, %v448
    %v450 = vand.u32 %v449, 4294901760
    %v451 = vsub.f32 %v449, %v450
    %v452 = vand.u32 %v451, 4294901760
    %453 = vmatpush.msra.mxu0 %v452
    %v454 = vand.u32 %v55, 4294901760
    %v455 = vsub.f32 %v55, %v454
    %v456 = vand.u32 %v455, 4294901760
    %v457 = vsub.f32 %v455, %v456
    %v458 = vand.u32 %v457, 4294901760
    %459 = vmatpush.msra.mxu0 %v458
    %v460 = vand.u32 %v54, 4294901760
    %v461 = vsub.f32 %v54, %v460
    %v462 = vand.u32 %v461, 4294901760
    %v463 = vsub.f32 %v461, %v462
    %v464 = vand.u32 %v463, 4294901760
    %465 = vmatpush.msra.mxu0 %v464
    %v466 = vand.u32 %v53, 4294901760
    %v467 = vsub.f32 %v53, %v466
    %v468 = vand.u32 %v467, 4294901760
    %v469 = vsub.f32 %v467, %v468
    %v470 = vand.u32 %v469, 4294901760
    %471 = vmatpush.msra.mxu0 %v470
    %v472 = vand.u32 %v52, 4294901760
    %v473 = vsub.f32 %v52, %v472
    %v474 = vand.u32 %v473, 4294901760
    %v475 = vsub.f32 %v473, %v474
    %v476 = vand.u32 %v475, 4294901760
    %477 = vmatpush.msra.mxu0 %v476
    %v478 = vand.u32 %v51, 4294901760
    %v479 = vsub.f32 %v51, %v478
    %v480 = vand.u32 %v479, 4294901760
    %v481 = vsub.f32 %v479, %v480
    %v482 = vand.u32 %v481, 4294901760
    %483 = vmatpush.msra.mxu0 %v482
    %v484 = vand.u32 %v50, 4294901760
    %v485 = vsub.f32 %v50, %v484
    %v486 = vand.u32 %v485, 4294901760
    %v487 = vsub.f32 %v485, %v486
    %v488 = vand.u32 %v487, 4294901760
    %489 = vmatpush.msra.mxu0 %v488
    %v490 = vand.u32 %v49, 4294901760
    %v491 = vsub.f32 %v49, %v490
    %v492 = vand.u32 %v491, 4294901760
    %v493 = vsub.f32 %v491, %v492
    %v494 = vand.u32 %v493, 4294901760
    %495 = vmatpush.msra.mxu0 %v494
    %v496 = vand.u32 %v48, 4294901760
    %v497 = vsub.f32 %v48, %v496
    %v498 = vand.u32 %v497, 4294901760
    %v499 = vsub.f32 %v497, %v498
    %v500 = vand.u32 %v499, 4294901760
    %501 = vmatpush.msra.mxu0 %v500
    %v502 = vand.u32 %v47, 4294901760
    %v503 = vsub.f32 %v47, %v502
    %v504 = vand.u32 %v503, 4294901760
    %v505 = vsub.f32 %v503, %v504
    %v506 = vand.u32 %v505, 4294901760
    %507 = vmatpush.msra.mxu0 %v506
    %v508 = vand.u32 %v46, 4294901760
    %v509 = vsub.f32 %v46, %v508
    %v510 = vand.u32 %v509, 4294901760
    %v511 = vsub.f32 %v509, %v510
    %v512 = vand.u32 %v511, 4294901760
    %513 = vmatpush.msra.mxu0 %v512
    %v514 = vand.u32 %v337, 4294901760
    %515 = vmatmul.f32.gmra.mxu0 %v514
    %v516 = vpop.f32.mrf.mxu0
    %v517 = vadd.f32 %v416, %v516
    %518 = vdwg.mxu0
    %v519 = vand.u32 %v61, 4294901760
    %v520 = vsub.f32 %v61, %v519
    %521 = vmatpush.msra.mxu0 %v520
    %v522 = vand.u32 %v60, 4294901760
    %v523 = vsub.f32 %v60, %v522
    %524 = vmatpush.msra.mxu0 %v523
    %v525 = vand.u32 %v59, 4294901760
    %v526 = vsub.f32 %v59, %v525
    %527 = vmatpush.msra.mxu0 %v526
    %v528 = vand.u32 %v58, 4294901760
    %v529 = vsub.f32 %v58, %v528
    %530 = vmatpush.msra.mxu0 %v529
    %v531 = vand.u32 %v57, 4294901760
    %v532 = vsub.f32 %v57, %v531
    %533 = vmatpush.msra.mxu0 %v532
    %v534 = vand.u32 %v56, 4294901760
    %v535 = vsub.f32 %v56, %v534
    %536 = vmatpush.msra.mxu0 %v535
    %v537 = vand.u32 %v55, 4294901760
    %v538 = vsub.f32 %v55, %v537
    %539 = vmatpush.msra.mxu0 %v538
    %v540 = vand.u32 %v54, 4294901760
    %v541 = vsub.f32 %v54, %v540
    %542 = vmatpush.msra.mxu0 %v541
    %v543 = vand.u32 %v53, 4294901760
    %v544 = vsub.f32 %v53, %v543
    %545 = vmatpush.msra.mxu0 %v544
    %v546 = vand.u32 %v52, 4294901760
    %v547 = vsub.f32 %v52, %v546
    %548 = vmatpush.msra.mxu0 %v547
    %v549 = vand.u32 %v51, 4294901760
    %v550 = vsub.f32 %v51, %v549
    %551 = vmatpush.msra.mxu0 %v550
    %v552 = vand.u32 %v50, 4294901760
    %v553 = vsub.f32 %v50, %v552
    %554 = vmatpush.msra.mxu0 %v553
    %v555 = vand.u32 %v49, 4294901760
    %v556 = vsub.f32 %v49, %v555
    %557 = vmatpush.msra.mxu0 %v556
    %v558 = vand.u32 %v48, 4294901760
    %v559 = vsub.f32 %v48, %v558
    %560 = vmatpush.msra.mxu0 %v559
    %v561 = vand.u32 %v47, 4294901760
    %v562 = vsub.f32 %v47, %v561
    %563 = vmatpush.msra.mxu0 %v562
    %v564 = vand.u32 %v46, 4294901760
    %v565 = vsub.f32 %v46, %v564
    %566 = vmatpush.msra.mxu0 %v565
    %v567 = vand.u32 %v337, 4294901760
    %v568 = vsub.f32 %v337, %v567
    %569 = vmatmul.f32.gmra.mxu0 %v568
    %v570 = vpop.f32.mrf.mxu0
    %v571 = vadd.f32 %v517, %v570
    %572 = vdwg.mxu0
    %v573 = vand.u32 %v61, 4294901760
    %574 = vmatpush.msra.mxu0 %v573
    %v575 = vand.u32 %v60, 4294901760
    %576 = vmatpush.msra.mxu0 %v575
    %v577 = vand.u32 %v59, 4294901760
    %578 = vmatpush.msra.mxu0 %v577
    %v579 = vand.u32 %v58, 4294901760
    %580 = vmatpush.msra.mxu0 %v579
    %v581 = vand.u32 %v57, 4294901760
    %582 = vmatpush.msra.mxu0 %v581
    %v583 = vand.u32 %v56, 4294901760
    %584 = vmatpush.msra.mxu0 %v583
    %v585 = vand.u32 %v55, 4294901760
    %586 = vmatpush.msra.mxu0 %v585
    %v587 = vand.u32 %v54, 4294901760
    %588 = vmatpush.msra.mxu0 %v587
    %v589 = vand.u32 %v53, 4294901760
    %590 = vmatpush.msra.mxu0 %v589
    %v591 = vand.u32 %v52, 4294901760
    %592 = vmatpush.msra.mxu0 %v591
    %v593 = vand.u32 %v51, 4294901760
    %594 = vmatpush.msra.mxu0 %v593
    %v595 = vand.u32 %v50, 4294901760
    %596 = vmatpush.msra.mxu0 %v595
    %v597 = vand.u32 %v49, 4294901760
    %598 = vmatpush.msra.mxu0 %v597
    %v599 = vand.u32 %v48, 4294901760
    %600 = vmatpush.msra.mxu0 %v599
    %v601 = vand.u32 %v47, 4294901760
    %602 = vmatpush.msra.mxu0 %v601
    %v603 = vand.u32 %v46, 4294901760
    %604 = vmatpush.msra.mxu0 %v603
    %v605 = vand.u32 %v337, 4294901760
    %v606 = vsub.f32 %v337, %v605
    %v607 = vand.u32 %v606, 4294901760
    %608 = vmatmul.f32.gmra.mxu0 %v607
    %v609 = vpop.f32.mrf.mxu0
    %v610 = vadd.f32 %v571, %v609
    %611 = vdwg.mxu0
    %v612 = vand.u32 %v61, 4294901760
    %v613 = vsub.f32 %v61, %v612
    %v614 = vand.u32 %v613, 4294901760
    %615 = vmatpush.msra.mxu0 %v614
    %v616 = vand.u32 %v60, 4294901760
    %v617 = vsub.f32 %v60, %v616
    %v618 = vand.u32 %v617, 4294901760
    %619 = vmatpush.msra.mxu0 %v618
    %v620 = vand.u32 %v59, 4294901760
    %v621 = vsub.f32 %v59, %v620
    %v622 = vand.u32 %v621, 4294901760
    %623 = vmatpush.msra.mxu0 %v622
    %v624 = vand.u32 %v58, 4294901760
    %v625 = vsub.f32 %v58, %v624
    %v626 = vand.u32 %v625, 4294901760
    %627 = vmatpush.msra.mxu0 %v626
    %v628 = vand.u32 %v57, 4294901760
    %v629 = vsub.f32 %v57, %v628
    %v630 = vand.u32 %v629, 4294901760
    %631 = vmatpush.msra.mxu0 %v630
    %v632 = vand.u32 %v56, 4294901760
    %v633 = vsub.f32 %v56, %v632
    %v634 = vand.u32 %v633, 4294901760
    %635 = vmatpush.msra.mxu0 %v634
    %v636 = vand.u32 %v55, 4294901760
    %v637 = vsub.f32 %v55, %v636
    %v638 = vand.u32 %v637, 4294901760
    %639 = vmatpush.msra.mxu0 %v638
    %v640 = vand.u32 %v54, 4294901760
    %v641 = vsub.f32 %v54, %v640
    %v642 = vand.u32 %v641, 4294901760
    %643 = vmatpush.msra.mxu0 %v642
    %v644 = vand.u32 %v53, 4294901760
    %v645 = vsub.f32 %v53, %v644
    %v646 = vand.u32 %v645, 4294901760
    %647 = vmatpush.msra.mxu0 %v646
    %v648 = vand.u32 %v52, 4294901760
    %v649 = vsub.f32 %v52, %v648
    %v650 = vand.u32 %v649, 4294901760
    %651 = vmatpush.msra.mxu0 %v650
    %v652 = vand.u32 %v51, 4294901760
    %v653 = vsub.f32 %v51, %v652
    %v654 = vand.u32 %v653, 4294901760
    %655 = vmatpush.msra.mxu0 %v654
    %v656 = vand.u32 %v50, 4294901760
    %v657 = vsub.f32 %v50, %v656
    %v658 = vand.u32 %v657, 4294901760
    %659 = vmatpush.msra.mxu0 %v658
    %v660 = vand.u32 %v49, 4294901760
    %v661 = vsub.f32 %v49, %v660
    %v662 = vand.u32 %v661, 4294901760
    %663 = vmatpush.msra.mxu0 %v662
    %v664 = vand.u32 %v48, 4294901760
    %v665 = vsub.f32 %v48, %v664
    %v666 = vand.u32 %v665, 4294901760
    %667 = vmatpush.msra.mxu0 %v666
    %v668 = vand.u32 %v47, 4294901760
    %v669 = vsub.f32 %v47, %v668
    %v670 = vand.u32 %v669, 4294901760
    %671 = vmatpush.msra.mxu0 %v670
    %v672 = vand.u32 %v46, 4294901760
    %v673 = vsub.f32 %v46, %v672
    %v674 = vand.u32 %v673, 4294901760
    %675 = vmatpush.msra.mxu0 %v674
    %v676 = vand.u32 %v337, 4294901760
    %677 = vmatmul.f32.gmra.mxu0 %v676
    %v678 = vpop.f32.mrf.mxu0
    %v679 = vadd.f32 %v610, %v678
    %680 = vdwg.mxu0
    %v681 = vand.u32 %v61, 4294901760
    %682 = vmatpush.msra.mxu0 %v681
    %v683 = vand.u32 %v60, 4294901760
    %684 = vmatpush.msra.mxu0 %v683
    %v685 = vand.u32 %v59, 4294901760
    %686 = vmatpush.msra.mxu0 %v685
    %v687 = vand.u32 %v58, 4294901760
    %688 = vmatpush.msra.mxu0 %v687
    %v689 = vand.u32 %v57, 4294901760
    %690 = vmatpush.msra.mxu0 %v689
    %v691 = vand.u32 %v56, 4294901760
    %692 = vmatpush.msra.mxu0 %v691
    %v693 = vand.u32 %v55, 4294901760
    %694 = vmatpush.msra.mxu0 %v693
    %v695 = vand.u32 %v54, 4294901760
    %696 = vmatpush.msra.mxu0 %v695
    %v697 = vand.u32 %v53, 4294901760
    %698 = vmatpush.msra.mxu0 %v697
    %v699 = vand.u32 %v52, 4294901760
    %700 = vmatpush.msra.mxu0 %v699
    %v701 = vand.u32 %v51, 4294901760
    %702 = vmatpush.msra.mxu0 %v701
    %v703 = vand.u32 %v50, 4294901760
    %704 = vmatpush.msra.mxu0 %v703
    %v705 = vand.u32 %v49, 4294901760
    %706 = vmatpush.msra.mxu0 %v705
    %v707 = vand.u32 %v48, 4294901760
    %708 = vmatpush.msra.mxu0 %v707
    %v709 = vand.u32 %v47, 4294901760
    %710 = vmatpush.msra.mxu0 %v709
    %v711 = vand.u32 %v46, 4294901760
    %712 = vmatpush.msra.mxu0 %v711
    %v713 = vand.u32 %v337, 4294901760
    %714 = vmatmul.f32.gmra.mxu0 %v713
    %v715 = vpop.f32.mrf.mxu0
    %v716 = vadd.f32 %v679, %v715
    %717 = vdwg.mxu0
    %v718 = vand.u32 %v77, 4294901760
    %719 = vmatpush.msra.mxu0 %v718
    %v720 = vand.u32 %v76, 4294901760
    %721 = vmatpush.msra.mxu0 %v720
    %v722 = vand.u32 %v75, 4294901760
    %723 = vmatpush.msra.mxu0 %v722
    %v724 = vand.u32 %v74, 4294901760
    %725 = vmatpush.msra.mxu0 %v724
    %v726 = vand.u32 %v73, 4294901760
    %727 = vmatpush.msra.mxu0 %v726
    %v728 = vand.u32 %v72, 4294901760
    %729 = vmatpush.msra.mxu0 %v728
    %v730 = vand.u32 %v71, 4294901760
    %731 = vmatpush.msra.mxu0 %v730
    %v732 = vand.u32 %v70, 4294901760
    %733 = vmatpush.msra.mxu0 %v732
    %v734 = vand.u32 %v69, 4294901760
    %735 = vmatpush.msra.mxu0 %v734
    %v736 = vand.u32 %v68, 4294901760
    %737 = vmatpush.msra.mxu0 %v736
    %v738 = vand.u32 %v67, 4294901760
    %739 = vmatpush.msra.mxu0 %v738
    %v740 = vand.u32 %v66, 4294901760
    %741 = vmatpush.msra.mxu0 %v740
    %v742 = vand.u32 %v65, 4294901760
    %743 = vmatpush.msra.mxu0 %v742
    %v744 = vand.u32 %v64, 4294901760
    %745 = vmatpush.msra.mxu0 %v744
    %v746 = vand.u32 %v63, 4294901760
    %747 = vmatpush.msra.mxu0 %v746
    %v748 = vand.u32 %v62, 4294901760
    %749 = vmatpush.msra.mxu0 %v748
    %v750 = vand.u32 %v338, 4294901760
    %v751 = vsub.f32 %v338, %v750
    %v752 = vand.u32 %v751, 4294901760
    %v753 = vsub.f32 %v751, %v752
    %v754 = vand.u32 %v753, 4294901760
    %755 = vmatmul.f32.gmra.mxu0 %v754
    %v756 = vpop.f32.mrf.mxu0
    %v757 = vadd.f32 %v716, %v756
    %758 = vdwg.mxu0
    %v759 = vand.u32 %v77, 4294901760
    %v760 = vsub.f32 %v77, %v759
    %v761 = vand.u32 %v760, 4294901760
    %v762 = vsub.f32 %v760, %v761
    %v763 = vand.u32 %v762, 4294901760
    %764 = vmatpush.msra.mxu0 %v763
    %v765 = vand.u32 %v76, 4294901760
    %v766 = vsub.f32 %v76, %v765
    %v767 = vand.u32 %v766, 4294901760
    %v768 = vsub.f32 %v766, %v767
    %v769 = vand.u32 %v768, 4294901760
    %770 = vmatpush.msra.mxu0 %v769
    %v771 = vand.u32 %v75, 4294901760
    %v772 = vsub.f32 %v75, %v771
    %v773 = vand.u32 %v772, 4294901760
    %v774 = vsub.f32 %v772, %v773
    %v775 = vand.u32 %v774, 4294901760
    %776 = vmatpush.msra.mxu0 %v775
    %v777 = vand.u32 %v74, 4294901760
    %v778 = vsub.f32 %v74, %v777
    %v779 = vand.u32 %v778, 4294901760
    %v780 = vsub.f32 %v778, %v779
    %v781 = vand.u32 %v780, 4294901760
    %782 = vmatpush.msra.mxu0 %v781
    %v783 = vand.u32 %v73, 4294901760
    %v784 = vsub.f32 %v73, %v783
    %v785 = vand.u32 %v784, 4294901760
    %v786 = vsub.f32 %v784, %v785
    %v787 = vand.u32 %v786, 4294901760
    %788 = vmatpush.msra.mxu0 %v787
    %v789 = vand.u32 %v72, 4294901760
    %v790 = vsub.f32 %v72, %v789
    %v791 = vand.u32 %v790, 4294901760
    %v792 = vsub.f32 %v790, %v791
    %v793 = vand.u32 %v792, 4294901760
    %794 = vmatpush.msra.mxu0 %v793
    %v795 = vand.u32 %v71, 4294901760
    %v796 = vsub.f32 %v71, %v795
    %v797 = vand.u32 %v796, 4294901760
    %v798 = vsub.f32 %v796, %v797
    %v799 = vand.u32 %v798, 4294901760
    %800 = vmatpush.msra.mxu0 %v799
    %v801 = vand.u32 %v70, 4294901760
    %v802 = vsub.f32 %v70, %v801
    %v803 = vand.u32 %v802, 4294901760
    %v804 = vsub.f32 %v802, %v803
    %v805 = vand.u32 %v804, 4294901760
    %806 = vmatpush.msra.mxu0 %v805
    %v807 = vand.u32 %v69, 4294901760
    %v808 = vsub.f32 %v69, %v807
    %v809 = vand.u32 %v808, 4294901760
    %v810 = vsub.f32 %v808, %v809
    %v811 = vand.u32 %v810, 4294901760
    %812 = vmatpush.msra.mxu0 %v811
    %v813 = vand.u32 %v68, 4294901760
    %v814 = vsub.f32 %v68, %v813
    %v815 = vand.u32 %v814, 4294901760
    %v816 = vsub.f32 %v814, %v815
    %v817 = vand.u32 %v816, 4294901760
    %818 = vmatpush.msra.mxu0 %v817
    %v819 = vand.u32 %v67, 4294901760
    %v820 = vsub.f32 %v67, %v819
    %v821 = vand.u32 %v820, 4294901760
    %v822 = vsub.f32 %v820, %v821
    %v823 = vand.u32 %v822, 4294901760
    %824 = vmatpush.msra.mxu0 %v823
    %v825 = vand.u32 %v66, 4294901760
    %v826 = vsub.f32 %v66, %v825
    %v827 = vand.u32 %v826, 4294901760
    %v828 = vsub.f32 %v826, %v827
    %v829 = vand.u32 %v828, 4294901760
    %830 = vmatpush.msra.mxu0 %v829
    %v831 = vand.u32 %v65, 4294901760
    %v832 = vsub.f32 %v65, %v831
    %v833 = vand.u32 %v832, 4294901760
    %v834 = vsub.f32 %v832, %v833
    %v835 = vand.u32 %v834, 4294901760
    %836 = vmatpush.msra.mxu0 %v835
    %v837 = vand.u32 %v64, 4294901760
    %v838 = vsub.f32 %v64, %v837
    %v839 = vand.u32 %v838, 4294901760
    %v840 = vsub.f32 %v838, %v839
    %v841 = vand.u32 %v840, 4294901760
    %842 = vmatpush.msra.mxu0 %v841
    %v843 = vand.u32 %v63, 4294901760
    %v844 = vsub.f32 %v63, %v843
    %v845 = vand.u32 %v844, 4294901760
    %v846 = vsub.f32 %v844, %v845
    %v847 = vand.u32 %v846, 4294901760
    %848 = vmatpush.msra.mxu0 %v847
    %v849 = vand.u32 %v62, 4294901760
    %v850 = vsub.f32 %v62, %v849
    %v851 = vand.u32 %v850, 4294901760
    %v852 = vsub.f32 %v850, %v851
    %v853 = vand.u32 %v852, 4294901760
    %854 = vmatpush.msra.mxu0 %v853
    %v855 = vand.u32 %v338, 4294901760
    %856 = vmatmul.f32.gmra.mxu0 %v855
    %v857 = vpop.f32.mrf.mxu0
    %v858 = vadd.f32 %v757, %v857
    %859 = vdwg.mxu0
    %v860 = vand.u32 %v77, 4294901760
    %v861 = vsub.f32 %v77, %v860
    %862 = vmatpush.msra.mxu0 %v861
    %v863 = vand.u32 %v76, 4294901760
    %v864 = vsub.f32 %v76, %v863
    %865 = vmatpush.msra.mxu0 %v864
    %v866 = vand.u32 %v75, 4294901760
    %v867 = vsub.f32 %v75, %v866
    %868 = vmatpush.msra.mxu0 %v867
    %v869 = vand.u32 %v74, 4294901760
    %v870 = vsub.f32 %v74, %v869
    %871 = vmatpush.msra.mxu0 %v870
    %v872 = vand.u32 %v73, 4294901760
    %v873 = vsub.f32 %v73, %v872
    %874 = vmatpush.msra.mxu0 %v873
    %v875 = vand.u32 %v72, 4294901760
    %v876 = vsub.f32 %v72, %v875
    %877 = vmatpush.msra.mxu0 %v876
    %v878 = vand.u32 %v71, 4294901760
    %v879 = vsub.f32 %v71, %v878
    %880 = vmatpush.msra.mxu0 %v879
    %v881 = vand.u32 %v70, 4294901760
    %v882 = vsub.f32 %v70, %v881
    %883 = vmatpush.msra.mxu0 %v882
    %v884 = vand.u32 %v69, 4294901760
    %v885 = vsub.f32 %v69, %v884
    %886 = vmatpush.msra.mxu0 %v885
    %v887 = vand.u32 %v68, 4294901760
    %v888 = vsub.f32 %v68, %v887
    %889 = vmatpush.msra.mxu0 %v888
    %v890 = vand.u32 %v67, 4294901760
    %v891 = vsub.f32 %v67, %v890
    %892 = vmatpush.msra.mxu0 %v891
    %v893 = vand.u32 %v66, 4294901760
    %v894 = vsub.f32 %v66, %v893
    %895 = vmatpush.msra.mxu0 %v894
    %v896 = vand.u32 %v65, 4294901760
    %v897 = vsub.f32 %v65, %v896
    %898 = vmatpush.msra.mxu0 %v897
    %v899 = vand.u32 %v64, 4294901760
    %v900 = vsub.f32 %v64, %v899
    %901 = vmatpush.msra.mxu0 %v900
    %v902 = vand.u32 %v63, 4294901760
    %v903 = vsub.f32 %v63, %v902
    %904 = vmatpush.msra.mxu0 %v903
    %v905 = vand.u32 %v62, 4294901760
    %v906 = vsub.f32 %v62, %v905
    %907 = vmatpush.msra.mxu0 %v906
    %v908 = vand.u32 %v338, 4294901760
    %v909 = vsub.f32 %v338, %v908
    %910 = vmatmul.f32.gmra.mxu0 %v909
    %v911 = vpop.f32.mrf.mxu0
    %v912 = vadd.f32 %v858, %v911
    %913 = vdwg.mxu0
    %v914 = vand.u32 %v77, 4294901760
    %915 = vmatpush.msra.mxu0 %v914
    %v916 = vand.u32 %v76, 4294901760
    %917 = vmatpush.msra.mxu0 %v916
    %v918 = vand.u32 %v75, 4294901760
    %919 = vmatpush.msra.mxu0 %v918
    %v920 = vand.u32 %v74, 4294901760
    %921 = vmatpush.msra.mxu0 %v920
    %v922 = vand.u32 %v73, 4294901760
    %923 = vmatpush.msra.mxu0 %v922
    %v924 = vand.u32 %v72, 4294901760
    %925 = vmatpush.msra.mxu0 %v924
    %v926 = vand.u32 %v71, 4294901760
    %927 = vmatpush.msra.mxu0 %v926
    %v928 = vand.u32 %v70, 4294901760
    %929 = vmatpush.msra.mxu0 %v928
    %v930 = vand.u32 %v69, 4294901760
    %931 = vmatpush.msra.mxu0 %v930
    %v932 = vand.u32 %v68, 4294901760
    %933 = vmatpush.msra.mxu0 %v932
    %v934 = vand.u32 %v67, 4294901760
    %935 = vmatpush.msra.mxu0 %v934
    %v936 = vand.u32 %v66, 4294901760
    %937 = vmatpush.msra.mxu0 %v936
    %v938 = vand.u32 %v65, 4294901760
    %939 = vmatpush.msra.mxu0 %v938
    %v940 = vand.u32 %v64, 4294901760
    %941 = vmatpush.msra.mxu0 %v940
    %v942 = vand.u32 %v63, 4294901760
    %943 = vmatpush.msra.mxu0 %v942
    %v944 = vand.u32 %v62, 4294901760
    %945 = vmatpush.msra.mxu0 %v944
    %v946 = vand.u32 %v338, 4294901760
    %v947 = vsub.f32 %v338, %v946
    %v948 = vand.u32 %v947, 4294901760
    %949 = vmatmul.f32.gmra.mxu0 %v948
    %v950 = vpop.f32.mrf.mxu0
    %v951 = vadd.f32 %v912, %v950
    %952 = vdwg.mxu0
    %v953 = vand.u32 %v77, 4294901760
    %v954 = vsub.f32 %v77, %v953
    %v955 = vand.u32 %v954, 4294901760
    %956 = vmatpush.msra.mxu0 %v955
    %v957 = vand.u32 %v76, 4294901760
    %v958 = vsub.f32 %v76, %v957
    %v959 = vand.u32 %v958, 4294901760
    %960 = vmatpush.msra.mxu0 %v959
    %v961 = vand.u32 %v75, 4294901760
    %v962 = vsub.f32 %v75, %v961
    %v963 = vand.u32 %v962, 4294901760
    %964 = vmatpush.msra.mxu0 %v963
    %v965 = vand.u32 %v74, 4294901760
    %v966 = vsub.f32 %v74, %v965
    %v967 = vand.u32 %v966, 4294901760
    %968 = vmatpush.msra.mxu0 %v967
    %v969 = vand.u32 %v73, 4294901760
    %v970 = vsub.f32 %v73, %v969
    %v971 = vand.u32 %v970, 4294901760
    %972 = vmatpush.msra.mxu0 %v971
    %v973 = vand.u32 %v72, 4294901760
    %v974 = vsub.f32 %v72, %v973
    %v975 = vand.u32 %v974, 4294901760
    %976 = vmatpush.msra.mxu0 %v975
    %v977 = vand.u32 %v71, 4294901760
    %v978 = vsub.f32 %v71, %v977
    %v979 = vand.u32 %v978, 4294901760
    %980 = vmatpush.msra.mxu0 %v979
    %v981 = vand.u32 %v70, 4294901760
    %v982 = vsub.f32 %v70, %v981
    %v983 = vand.u32 %v982, 4294901760
    %984 = vmatpush.msra.mxu0 %v983
    %v985 = vand.u32 %v69, 4294901760
    %v986 = vsub.f32 %v69, %v985
    %v987 = vand.u32 %v986, 4294901760
    %988 = vmatpush.msra.mxu0 %v987
    %v989 = vand.u32 %v68, 4294901760
    %v990 = vsub.f32 %v68, %v989
    %v991 = vand.u32 %v990, 4294901760
    %992 = vmatpush.msra.mxu0 %v991
    %v993 = vand.u32 %v67, 4294901760
    %v994 = vsub.f32 %v67, %v993
    %v995 = vand.u32 %v994, 4294901760
    %996 = vmatpush.msra.mxu0 %v995
    %v997 = vand.u32 %v66, 4294901760
    %v998 = vsub.f32 %v66, %v997
    %v999 = vand.u32 %v998, 4294901760
    %1000 = vmatpush.msra.mxu0 %v999
    %v1001 = vand.u32 %v65, 4294901760
    %v1002 = vsub.f32 %v65, %v1001
    %v1003 = vand.u32 %v1002, 4294901760
    %1004 = vmatpush.msra.mxu0 %v1003
    %v1005 = vand.u32 %v64, 4294901760
    %v1006 = vsub.f32 %v64, %v1005
    %v1007 = vand.u32 %v1006, 4294901760
    %1008 = vmatpush.msra.mxu0 %v1007
    %v1009 = vand.u32 %v63, 4294901760
    %v1010 = vsub.f32 %v63, %v1009
    %v1011 = vand.u32 %v1010, 4294901760
    %1012 = vmatpush.msra.mxu0 %v1011
    %v1013 = vand.u32 %v62, 4294901760
    %v1014 = vsub.f32 %v62, %v1013
    %v1015 = vand.u32 %v1014, 4294901760
    %1016 = vmatpush.msra.mxu0 %v1015
    %v1017 = vand.u32 %v338, 4294901760
    %1018 = vmatmul.f32.gmra.mxu0 %v1017
    %v1019 = vpop.f32.mrf.mxu0
    %v1020 = vadd.f32 %v951, %v1019
    %1021 = vdwg.mxu0
    %v1022 = vand.u32 %v77, 4294901760
    %1023 = vmatpush.msra.mxu0 %v1022
    %v1024 = vand.u32 %v76, 4294901760
    %1025 = vmatpush.msra.mxu0 %v1024
    %v1026 = vand.u32 %v75, 4294901760
    %1027 = vmatpush.msra.mxu0 %v1026
    %v1028 = vand.u32 %v74, 4294901760
    %1029 = vmatpush.msra.mxu0 %v1028
    %v1030 = vand.u32 %v73, 4294901760
    %1031 = vmatpush.msra.mxu0 %v1030
    %v1032 = vand.u32 %v72, 4294901760
    %1033 = vmatpush.msra.mxu0 %v1032
    %v1034 = vand.u32 %v71, 4294901760
    %1035 = vmatpush.msra.mxu0 %v1034
    %v1036 = vand.u32 %v70, 4294901760
    %1037 = vmatpush.msra.mxu0 %v1036
    %v1038 = vand.u32 %v69, 4294901760
    %1039 = vmatpush.msra.mxu0 %v1038
    %v1040 = vand.u32 %v68, 4294901760
    %1041 = vmatpush.msra.mxu0 %v1040
    %v1042 = vand.u32 %v67, 4294901760
    %1043 = vmatpush.msra.mxu0 %v1042
    %v1044 = vand.u32 %v66, 4294901760
    %1045 = vmatpush.msra.mxu0 %v1044
    %v1046 = vand.u32 %v65, 4294901760
    %1047 = vmatpush.msra.mxu0 %v1046
    %v1048 = vand.u32 %v64, 4294901760
    %1049 = vmatpush.msra.mxu0 %v1048
    %v1050 = vand.u32 %v63, 4294901760
    %1051 = vmatpush.msra.mxu0 %v1050
    %v1052 = vand.u32 %v62, 4294901760
    %1053 = vmatpush.msra.mxu0 %v1052
    %v1054 = vand.u32 %v338, 4294901760
    %1055 = vmatmul.f32.gmra.mxu0 %v1054
    %v1056 = vpop.f32.mrf.mxu0
    %v1057 = vadd.f32 %v1020, %v1056
    %1058 = vdwg.mxu0
    %v1059 = vand.u32 %v93, 4294901760
    %1060 = vmatpush.msra.mxu0 %v1059
    %v1061 = vand.u32 %v92, 4294901760
    %1062 = vmatpush.msra.mxu0 %v1061
    %v1063 = vand.u32 %v91, 4294901760
    %1064 = vmatpush.msra.mxu0 %v1063
    %v1065 = vand.u32 %v90, 4294901760
    %1066 = vmatpush.msra.mxu0 %v1065
    %v1067 = vand.u32 %v89, 4294901760
    %1068 = vmatpush.msra.mxu0 %v1067
    %v1069 = vand.u32 %v88, 4294901760
    %1070 = vmatpush.msra.mxu0 %v1069
    %v1071 = vand.u32 %v87, 4294901760
    %1072 = vmatpush.msra.mxu0 %v1071
    %v1073 = vand.u32 %v86, 4294901760
    %1074 = vmatpush.msra.mxu0 %v1073
    %v1075 = vand.u32 %v85, 4294901760
    %1076 = vmatpush.msra.mxu0 %v1075
    %v1077 = vand.u32 %v84, 4294901760
    %1078 = vmatpush.msra.mxu0 %v1077
    %v1079 = vand.u32 %v83, 4294901760
    %1080 = vmatpush.msra.mxu0 %v1079
    %v1081 = vand.u32 %v82, 4294901760
    %1082 = vmatpush.msra.mxu0 %v1081
    %v1083 = vand.u32 %v81, 4294901760
    %1084 = vmatpush.msra.mxu0 %v1083
    %v1085 = vand.u32 %v80, 4294901760
    %1086 = vmatpush.msra.mxu0 %v1085
    %v1087 = vand.u32 %v79, 4294901760
    %1088 = vmatpush.msra.mxu0 %v1087
    %v1089 = vand.u32 %v78, 4294901760
    %1090 = vmatpush.msra.mxu0 %v1089
    %v1091 = vand.u32 %v339, 4294901760
    %v1092 = vsub.f32 %v339, %v1091
    %v1093 = vand.u32 %v1092, 4294901760
    %v1094 = vsub.f32 %v1092, %v1093
    %v1095 = vand.u32 %v1094, 4294901760
    %1096 = vmatmul.f32.gmra.mxu0 %v1095
    %v1097 = vpop.f32.mrf.mxu0
    %v1098 = vadd.f32 %v1057, %v1097
    %1099 = vdwg.mxu0
    %v1100 = vand.u32 %v93, 4294901760
    %v1101 = vsub.f32 %v93, %v1100
    %v1102 = vand.u32 %v1101, 4294901760
    %v1103 = vsub.f32 %v1101, %v1102
    %v1104 = vand.u32 %v1103, 4294901760
    %1105 = vmatpush.msra.mxu0 %v1104
    %v1106 = vand.u32 %v92, 4294901760
    %v1107 = vsub.f32 %v92, %v1106
    %v1108 = vand.u32 %v1107, 4294901760
    %v1109 = vsub.f32 %v1107, %v1108
    %v1110 = vand.u32 %v1109, 4294901760
    %1111 = vmatpush.msra.mxu0 %v1110
    %v1112 = vand.u32 %v91, 4294901760
    %v1113 = vsub.f32 %v91, %v1112
    %v1114 = vand.u32 %v1113, 4294901760
    %v1115 = vsub.f32 %v1113, %v1114
    %v1116 = vand.u32 %v1115, 4294901760
    %1117 = vmatpush.msra.mxu0 %v1116
    %v1118 = vand.u32 %v90, 4294901760
    %v1119 = vsub.f32 %v90, %v1118
    %v1120 = vand.u32 %v1119, 4294901760
    %v1121 = vsub.f32 %v1119, %v1120
    %v1122 = vand.u32 %v1121, 4294901760
    %1123 = vmatpush.msra.mxu0 %v1122
    %v1124 = vand.u32 %v89, 4294901760
    %v1125 = vsub.f32 %v89, %v1124
    %v1126 = vand.u32 %v1125, 4294901760
    %v1127 = vsub.f32 %v1125, %v1126
    %v1128 = vand.u32 %v1127, 4294901760
    %1129 = vmatpush.msra.mxu0 %v1128
    %v1130 = vand.u32 %v88, 4294901760
    %v1131 = vsub.f32 %v88, %v1130
    %v1132 = vand.u32 %v1131, 4294901760
    %v1133 = vsub.f32 %v1131, %v1132
    %v1134 = vand.u32 %v1133, 4294901760
    %1135 = vmatpush.msra.mxu0 %v1134
    %v1136 = vand.u32 %v87, 4294901760
    %v1137 = vsub.f32 %v87, %v1136
    %v1138 = vand.u32 %v1137, 4294901760
    %v1139 = vsub.f32 %v1137, %v1138
    %v1140 = vand.u32 %v1139, 4294901760
    %1141 = vmatpush.msra.mxu0 %v1140
    %v1142 = vand.u32 %v86, 4294901760
    %v1143 = vsub.f32 %v86, %v1142
    %v1144 = vand.u32 %v1143, 4294901760
    %v1145 = vsub.f32 %v1143, %v1144
    %v1146 = vand.u32 %v1145, 4294901760
    %1147 = vmatpush.msra.mxu0 %v1146
    %v1148 = vand.u32 %v85, 4294901760
    %v1149 = vsub.f32 %v85, %v1148
    %v1150 = vand.u32 %v1149, 4294901760
    %v1151 = vsub.f32 %v1149, %v1150
    %v1152 = vand.u32 %v1151, 4294901760
    %1153 = vmatpush.msra.mxu0 %v1152
    %v1154 = vand.u32 %v84, 4294901760
    %v1155 = vsub.f32 %v84, %v1154
    %v1156 = vand.u32 %v1155, 4294901760
    %v1157 = vsub.f32 %v1155, %v1156
    %v1158 = vand.u32 %v1157, 4294901760
    %1159 = vmatpush.msra.mxu0 %v1158
    %v1160 = vand.u32 %v83, 4294901760
    %v1161 = vsub.f32 %v83, %v1160
    %v1162 = vand.u32 %v1161, 4294901760
    %v1163 = vsub.f32 %v1161, %v1162
    %v1164 = vand.u32 %v1163, 4294901760
    %1165 = vmatpush.msra.mxu0 %v1164
    %v1166 = vand.u32 %v82, 4294901760
    %v1167 = vsub.f32 %v82, %v1166
    %v1168 = vand.u32 %v1167, 4294901760
    %v1169 = vsub.f32 %v1167, %v1168
    %v1170 = vand.u32 %v1169, 4294901760
    %1171 = vmatpush.msra.mxu0 %v1170
    %v1172 = vand.u32 %v81, 4294901760
    %v1173 = vsub.f32 %v81, %v1172
    %v1174 = vand.u32 %v1173, 4294901760
    %v1175 = vsub.f32 %v1173, %v1174
    %v1176 = vand.u32 %v1175, 4294901760
    %1177 = vmatpush.msra.mxu0 %v1176
    %v1178 = vand.u32 %v80, 4294901760
    %v1179 = vsub.f32 %v80, %v1178
    %v1180 = vand.u32 %v1179, 4294901760
    %v1181 = vsub.f32 %v1179, %v1180
    %v1182 = vand.u32 %v1181, 4294901760
    %1183 = vmatpush.msra.mxu0 %v1182
    %v1184 = vand.u32 %v79, 4294901760
    %v1185 = vsub.f32 %v79, %v1184
    %v1186 = vand.u32 %v1185, 4294901760
    %v1187 = vsub.f32 %v1185, %v1186
    %v1188 = vand.u32 %v1187, 4294901760
    %1189 = vmatpush.msra.mxu0 %v1188
    %v1190 = vand.u32 %v78, 4294901760
    %v1191 = vsub.f32 %v78, %v1190
    %v1192 = vand.u32 %v1191, 4294901760
    %v1193 = vsub.f32 %v1191, %v1192
    %v1194 = vand.u32 %v1193, 4294901760
    %1195 = vmatpush.msra.mxu0 %v1194
    %v1196 = vand.u32 %v339, 4294901760
    %1197 = vmatmul.f32.gmra.mxu0 %v1196
    %v1198 = vpop.f32.mrf.mxu0
    %v1199 = vadd.f32 %v1098, %v1198
    %1200 = vdwg.mxu0
    %v1201 = vand.u32 %v93, 4294901760
    %v1202 = vsub.f32 %v93, %v1201
    %1203 = vmatpush.msra.mxu0 %v1202
    %v1204 = vand.u32 %v92, 4294901760
    %v1205 = vsub.f32 %v92, %v1204
    %1206 = vmatpush.msra.mxu0 %v1205
    %v1207 = vand.u32 %v91, 4294901760
    %v1208 = vsub.f32 %v91, %v1207
    %1209 = vmatpush.msra.mxu0 %v1208
    %v1210 = vand.u32 %v90, 4294901760
    %v1211 = vsub.f32 %v90, %v1210
    %1212 = vmatpush.msra.mxu0 %v1211
    %v1213 = vand.u32 %v89, 4294901760
    %v1214 = vsub.f32 %v89, %v1213
    %1215 = vmatpush.msra.mxu0 %v1214
    %v1216 = vand.u32 %v88, 4294901760
    %v1217 = vsub.f32 %v88, %v1216
    %1218 = vmatpush.msra.mxu0 %v1217
    %v1219 = vand.u32 %v87, 4294901760
    %v1220 = vsub.f32 %v87, %v1219
    %1221 = vmatpush.msra.mxu0 %v1220
    %v1222 = vand.u32 %v86, 4294901760
    %v1223 = vsub.f32 %v86, %v1222
    %1224 = vmatpush.msra.mxu0 %v1223
    %v1225 = vand.u32 %v85, 4294901760
    %v1226 = vsub.f32 %v85, %v1225
    %1227 = vmatpush.msra.mxu0 %v1226
    %v1228 = vand.u32 %v84, 4294901760
    %v1229 = vsub.f32 %v84, %v1228
    %1230 = vmatpush.msra.mxu0 %v1229
    %v1231 = vand.u32 %v83, 4294901760
    %v1232 = vsub.f32 %v83, %v1231
    %1233 = vmatpush.msra.mxu0 %v1232
    %v1234 = vand.u32 %v82, 4294901760
    %v1235 = vsub.f32 %v82, %v1234
    %1236 = vmatpush.msra.mxu0 %v1235
    %v1237 = vand.u32 %v81, 4294901760
    %v1238 = vsub.f32 %v81, %v1237
    %1239 = vmatpush.msra.mxu0 %v1238
    %v1240 = vand.u32 %v80, 4294901760
    %v1241 = vsub.f32 %v80, %v1240
    %1242 = vmatpush.msra.mxu0 %v1241
    %v1243 = vand.u32 %v79, 4294901760
    %v1244 = vsub.f32 %v79, %v1243
    %1245 = vmatpush.msra.mxu0 %v1244
    %v1246 = vand.u32 %v78, 4294901760
    %v1247 = vsub.f32 %v78, %v1246
    %1248 = vmatpush.msra.mxu0 %v1247
    %v1249 = vand.u32 %v339, 4294901760
    %v1250 = vsub.f32 %v339, %v1249
    %1251 = vmatmul.f32.gmra.mxu0 %v1250
    %v1252 = vpop.f32.mrf.mxu0
    %v1253 = vadd.f32 %v1199, %v1252
    %1254 = vdwg.mxu0
    %v1255 = vand.u32 %v93, 4294901760
    %1256 = vmatpush.msra.mxu0 %v1255
    %v1257 = vand.u32 %v92, 4294901760
    %1258 = vmatpush.msra.mxu0 %v1257
    %v1259 = vand.u32 %v91, 4294901760
    %1260 = vmatpush.msra.mxu0 %v1259
    %v1261 = vand.u32 %v90, 4294901760
    %1262 = vmatpush.msra.mxu0 %v1261
    %v1263 = vand.u32 %v89, 4294901760
    %1264 = vmatpush.msra.mxu0 %v1263
    %v1265 = vand.u32 %v88, 4294901760
    %1266 = vmatpush.msra.mxu0 %v1265
    %v1267 = vand.u32 %v87, 4294901760
    %1268 = vmatpush.msra.mxu0 %v1267
    %v1269 = vand.u32 %v86, 4294901760
    %1270 = vmatpush.msra.mxu0 %v1269
    %v1271 = vand.u32 %v85, 4294901760
    %1272 = vmatpush.msra.mxu0 %v1271
    %v1273 = vand.u32 %v84, 4294901760
    %1274 = vmatpush.msra.mxu0 %v1273
    %v1275 = vand.u32 %v83, 4294901760
    %1276 = vmatpush.msra.mxu0 %v1275
    %v1277 = vand.u32 %v82, 4294901760
    %1278 = vmatpush.msra.mxu0 %v1277
    %v1279 = vand.u32 %v81, 4294901760
    %1280 = vmatpush.msra.mxu0 %v1279
    %v1281 = vand.u32 %v80, 4294901760
    %1282 = vmatpush.msra.mxu0 %v1281
    %v1283 = vand.u32 %v79, 4294901760
    %1284 = vmatpush.msra.mxu0 %v1283
    %v1285 = vand.u32 %v78, 4294901760
    %1286 = vmatpush.msra.mxu0 %v1285
    %v1287 = vand.u32 %v339, 4294901760
    %v1288 = vsub.f32 %v339, %v1287
    %v1289 = vand.u32 %v1288, 4294901760
    %1290 = vmatmul.f32.gmra.mxu0 %v1289
    %v1291 = vpop.f32.mrf.mxu0
    %v1292 = vadd.f32 %v1253, %v1291
    %1293 = vdwg.mxu0
    %v1294 = vand.u32 %v93, 4294901760
    %v1295 = vsub.f32 %v93, %v1294
    %v1296 = vand.u32 %v1295, 4294901760
    %1297 = vmatpush.msra.mxu0 %v1296
    %v1298 = vand.u32 %v92, 4294901760
    %v1299 = vsub.f32 %v92, %v1298
    %v1300 = vand.u32 %v1299, 4294901760
    %1301 = vmatpush.msra.mxu0 %v1300
    %v1302 = vand.u32 %v91, 4294901760
    %v1303 = vsub.f32 %v91, %v1302
    %v1304 = vand.u32 %v1303, 4294901760
    %1305 = vmatpush.msra.mxu0 %v1304
    %v1306 = vand.u32 %v90, 4294901760
    %v1307 = vsub.f32 %v90, %v1306
    %v1308 = vand.u32 %v1307, 4294901760
    %1309 = vmatpush.msra.mxu0 %v1308
    %v1310 = vand.u32 %v89, 4294901760
    %v1311 = vsub.f32 %v89, %v1310
    %v1312 = vand.u32 %v1311, 4294901760
    %1313 = vmatpush.msra.mxu0 %v1312
    %v1314 = vand.u32 %v88, 4294901760
    %v1315 = vsub.f32 %v88, %v1314
    %v1316 = vand.u32 %v1315, 4294901760
    %1317 = vmatpush.msra.mxu0 %v1316
    %v1318 = vand.u32 %v87, 4294901760
    %v1319 = vsub.f32 %v87, %v1318
    %v1320 = vand.u32 %v1319, 4294901760
    %1321 = vmatpush.msra.mxu0 %v1320
    %v1322 = vand.u32 %v86, 4294901760
    %v1323 = vsub.f32 %v86, %v1322
    %v1324 = vand.u32 %v1323, 4294901760
    %1325 = vmatpush.msra.mxu0 %v1324
    %v1326 = vand.u32 %v85, 4294901760
    %v1327 = vsub.f32 %v85, %v1326
    %v1328 = vand.u32 %v1327, 4294901760
    %1329 = vmatpush.msra.mxu0 %v1328
    %v1330 = vand.u32 %v84, 4294901760
    %v1331 = vsub.f32 %v84, %v1330
    %v1332 = vand.u32 %v1331, 4294901760
    %1333 = vmatpush.msra.mxu0 %v1332
    %v1334 = vand.u32 %v83, 4294901760
    %v1335 = vsub.f32 %v83, %v1334
    %v1336 = vand.u32 %v1335, 4294901760
    %1337 = vmatpush.msra.mxu0 %v1336
    %v1338 = vand.u32 %v82, 4294901760
    %v1339 = vsub.f32 %v82, %v1338
    %v1340 = vand.u32 %v1339, 4294901760
    %1341 = vmatpush.msra.mxu0 %v1340
    %v1342 = vand.u32 %v81, 4294901760
    %v1343 = vsub.f32 %v81, %v1342
    %v1344 = vand.u32 %v1343, 4294901760
    %1345 = vmatpush.msra.mxu0 %v1344
    %v1346 = vand.u32 %v80, 4294901760
    %v1347 = vsub.f32 %v80, %v1346
    %v1348 = vand.u32 %v1347, 4294901760
    %1349 = vmatpush.msra.mxu0 %v1348
    %v1350 = vand.u32 %v79, 4294901760
    %v1351 = vsub.f32 %v79, %v1350
    %v1352 = vand.u32 %v1351, 4294901760
    %1353 = vmatpush.msra.mxu0 %v1352
    %v1354 = vand.u32 %v78, 4294901760
    %v1355 = vsub.f32 %v78, %v1354
    %v1356 = vand.u32 %v1355, 4294901760
    %1357 = vmatpush.msra.mxu0 %v1356
    %v1358 = vand.u32 %v339, 4294901760
    %1359 = vmatmul.f32.gmra.mxu0 %v1358
    %v1360 = vpop.f32.mrf.mxu0
    %v1361 = vadd.f32 %v1292, %v1360
    %1362 = vdwg.mxu0
    %v1363 = vand.u32 %v93, 4294901760
    %1364 = vmatpush.msra.mxu0 %v1363
    %v1365 = vand.u32 %v92, 4294901760
    %1366 = vmatpush.msra.mxu0 %v1365
    %v1367 = vand.u32 %v91, 4294901760
    %1368 = vmatpush.msra.mxu0 %v1367
    %v1369 = vand.u32 %v90, 4294901760
    %1370 = vmatpush.msra.mxu0 %v1369
    %v1371 = vand.u32 %v89, 4294901760
    %1372 = vmatpush.msra.mxu0 %v1371
    %v1373 = vand.u32 %v88, 4294901760
    %1374 = vmatpush.msra.mxu0 %v1373
    %v1375 = vand.u32 %v87, 4294901760
    %1376 = vmatpush.msra.mxu0 %v1375
    %v1377 = vand.u32 %v86, 4294901760
    %1378 = vmatpush.msra.mxu0 %v1377
    %v1379 = vand.u32 %v85, 4294901760
    %1380 = vmatpush.msra.mxu0 %v1379
    %v1381 = vand.u32 %v84, 4294901760
    %1382 = vmatpush.msra.mxu0 %v1381
    %v1383 = vand.u32 %v83, 4294901760
    %1384 = vmatpush.msra.mxu0 %v1383
    %v1385 = vand.u32 %v82, 4294901760
    %1386 = vmatpush.msra.mxu0 %v1385
    %v1387 = vand.u32 %v81, 4294901760
    %1388 = vmatpush.msra.mxu0 %v1387
    %v1389 = vand.u32 %v80, 4294901760
    %1390 = vmatpush.msra.mxu0 %v1389
    %v1391 = vand.u32 %v79, 4294901760
    %1392 = vmatpush.msra.mxu0 %v1391
    %v1393 = vand.u32 %v78, 4294901760
    %1394 = vmatpush.msra.mxu0 %v1393
    %v1395 = vand.u32 %v339, 4294901760
    %1396 = vmatmul.f32.gmra.mxu0 %v1395
    %v1397 = vpop.f32.mrf.mxu0
    %v1398 = vadd.f32 %v1361, %v1397
    %1399 = vdwg.mxu0
    %v1400 = vand.u32 %v109, 4294901760
    %1401 = vmatpush.msra.mxu0 %v1400
    %v1402 = vand.u32 %v108, 4294901760
    %1403 = vmatpush.msra.mxu0 %v1402
    %v1404 = vand.u32 %v107, 4294901760
    %1405 = vmatpush.msra.mxu0 %v1404
    %v1406 = vand.u32 %v106, 4294901760
    %1407 = vmatpush.msra.mxu0 %v1406
    %v1408 = vand.u32 %v105, 4294901760
    %1409 = vmatpush.msra.mxu0 %v1408
    %v1410 = vand.u32 %v104, 4294901760
    %1411 = vmatpush.msra.mxu0 %v1410
    %v1412 = vand.u32 %v103, 4294901760
    %1413 = vmatpush.msra.mxu0 %v1412
    %v1414 = vand.u32 %v102, 4294901760
    %1415 = vmatpush.msra.mxu0 %v1414
    %v1416 = vand.u32 %v101, 4294901760
    %1417 = vmatpush.msra.mxu0 %v1416
    %v1418 = vand.u32 %v100, 4294901760
    %1419 = vmatpush.msra.mxu0 %v1418
    %v1420 = vand.u32 %v99, 4294901760
    %1421 = vmatpush.msra.mxu0 %v1420
    %v1422 = vand.u32 %v98, 4294901760
    %1423 = vmatpush.msra.mxu0 %v1422
    %v1424 = vand.u32 %v97, 4294901760
    %1425 = vmatpush.msra.mxu0 %v1424
    %v1426 = vand.u32 %v96, 4294901760
    %1427 = vmatpush.msra.mxu0 %v1426
    %v1428 = vand.u32 %v95, 4294901760
    %1429 = vmatpush.msra.mxu0 %v1428
    %v1430 = vand.u32 %v94, 4294901760
    %1431 = vmatpush.msra.mxu0 %v1430
    %v1432 = vand.u32 %v340, 4294901760
    %v1433 = vsub.f32 %v340, %v1432
    %v1434 = vand.u32 %v1433, 4294901760
    %v1435 = vsub.f32 %v1433, %v1434
    %v1436 = vand.u32 %v1435, 4294901760
    %1437 = vmatmul.f32.gmra.mxu0 %v1436
    %v1438 = vpop.f32.mrf.mxu0
    %v1439 = vadd.f32 %v1398, %v1438
    %1440 = vdwg.mxu0
    %v1441 = vand.u32 %v109, 4294901760
    %v1442 = vsub.f32 %v109, %v1441
    %v1443 = vand.u32 %v1442, 4294901760
    %v1444 = vsub.f32 %v1442, %v1443
    %v1445 = vand.u32 %v1444, 4294901760
    %1446 = vmatpush.msra.mxu0 %v1445
    %v1447 = vand.u32 %v108, 4294901760
    %v1448 = vsub.f32 %v108, %v1447
    %v1449 = vand.u32 %v1448, 4294901760
    %v1450 = vsub.f32 %v1448, %v1449
    %v1451 = vand.u32 %v1450, 4294901760
    %1452 = vmatpush.msra.mxu0 %v1451
    %v1453 = vand.u32 %v107, 4294901760
    %v1454 = vsub.f32 %v107, %v1453
    %v1455 = vand.u32 %v1454, 4294901760
    %v1456 = vsub.f32 %v1454, %v1455
    %v1457 = vand.u32 %v1456, 4294901760
    %1458 = vmatpush.msra.mxu0 %v1457
    %v1459 = vand.u32 %v106, 4294901760
    %v1460 = vsub.f32 %v106, %v1459
    %v1461 = vand.u32 %v1460, 4294901760
    %v1462 = vsub.f32 %v1460, %v1461
    %v1463 = vand.u32 %v1462, 4294901760
    %1464 = vmatpush.msra.mxu0 %v1463
    %v1465 = vand.u32 %v105, 4294901760
    %v1466 = vsub.f32 %v105, %v1465
    %v1467 = vand.u32 %v1466, 4294901760
    %v1468 = vsub.f32 %v1466, %v1467
    %v1469 = vand.u32 %v1468, 4294901760
    %1470 = vmatpush.msra.mxu0 %v1469
    %v1471 = vand.u32 %v104, 4294901760
    %v1472 = vsub.f32 %v104, %v1471
    %v1473 = vand.u32 %v1472, 4294901760
    %v1474 = vsub.f32 %v1472, %v1473
    %v1475 = vand.u32 %v1474, 4294901760
    %1476 = vmatpush.msra.mxu0 %v1475
    %v1477 = vand.u32 %v103, 4294901760
    %v1478 = vsub.f32 %v103, %v1477
    %v1479 = vand.u32 %v1478, 4294901760
    %v1480 = vsub.f32 %v1478, %v1479
    %v1481 = vand.u32 %v1480, 4294901760
    %1482 = vmatpush.msra.mxu0 %v1481
    %v1483 = vand.u32 %v102, 4294901760
    %v1484 = vsub.f32 %v102, %v1483
    %v1485 = vand.u32 %v1484, 4294901760
    %v1486 = vsub.f32 %v1484, %v1485
    %v1487 = vand.u32 %v1486, 4294901760
    %1488 = vmatpush.msra.mxu0 %v1487
    %v1489 = vand.u32 %v101, 4294901760
    %v1490 = vsub.f32 %v101, %v1489
    %v1491 = vand.u32 %v1490, 4294901760
    %v1492 = vsub.f32 %v1490, %v1491
    %v1493 = vand.u32 %v1492, 4294901760
    %1494 = vmatpush.msra.mxu0 %v1493
    %v1495 = vand.u32 %v100, 4294901760
    %v1496 = vsub.f32 %v100, %v1495
    %v1497 = vand.u32 %v1496, 4294901760
    %v1498 = vsub.f32 %v1496, %v1497
    %v1499 = vand.u32 %v1498, 4294901760
    %1500 = vmatpush.msra.mxu0 %v1499
    %v1501 = vand.u32 %v99, 4294901760
    %v1502 = vsub.f32 %v99, %v1501
    %v1503 = vand.u32 %v1502, 4294901760
    %v1504 = vsub.f32 %v1502, %v1503
    %v1505 = vand.u32 %v1504, 4294901760
    %1506 = vmatpush.msra.mxu0 %v1505
    %v1507 = vand.u32 %v98, 4294901760
    %v1508 = vsub.f32 %v98, %v1507
    %v1509 = vand.u32 %v1508, 4294901760
    %v1510 = vsub.f32 %v1508, %v1509
    %v1511 = vand.u32 %v1510, 4294901760
    %1512 = vmatpush.msra.mxu0 %v1511
    %v1513 = vand.u32 %v97, 4294901760
    %v1514 = vsub.f32 %v97, %v1513
    %v1515 = vand.u32 %v1514, 4294901760
    %v1516 = vsub.f32 %v1514, %v1515
    %v1517 = vand.u32 %v1516, 4294901760
    %1518 = vmatpush.msra.mxu0 %v1517
    %v1519 = vand.u32 %v96, 4294901760
    %v1520 = vsub.f32 %v96, %v1519
    %v1521 = vand.u32 %v1520, 4294901760
    %v1522 = vsub.f32 %v1520, %v1521
    %v1523 = vand.u32 %v1522, 4294901760
    %1524 = vmatpush.msra.mxu0 %v1523
    %v1525 = vand.u32 %v95, 4294901760
    %v1526 = vsub.f32 %v95, %v1525
    %v1527 = vand.u32 %v1526, 4294901760
    %v1528 = vsub.f32 %v1526, %v1527
    %v1529 = vand.u32 %v1528, 4294901760
    %1530 = vmatpush.msra.mxu0 %v1529
    %v1531 = vand.u32 %v94, 4294901760
    %v1532 = vsub.f32 %v94, %v1531
    %v1533 = vand.u32 %v1532, 4294901760
    %v1534 = vsub.f32 %v1532, %v1533
    %v1535 = vand.u32 %v1534, 4294901760
    %1536 = vmatpush.msra.mxu0 %v1535
    %v1537 = vand.u32 %v340, 4294901760
    %1538 = vmatmul.f32.gmra.mxu0 %v1537
    %v1539 = vpop.f32.mrf.mxu0
    %v1540 = vadd.f32 %v1439, %v1539
    %1541 = vdwg.mxu0
    %v1542 = vand.u32 %v109, 4294901760
    %v1543 = vsub.f32 %v109, %v1542
    %1544 = vmatpush.msra.mxu0 %v1543
    %v1545 = vand.u32 %v108, 4294901760
    %v1546 = vsub.f32 %v108, %v1545
    %1547 = vmatpush.msra.mxu0 %v1546
    %v1548 = vand.u32 %v107, 4294901760
    %v1549 = vsub.f32 %v107, %v1548
    %1550 = vmatpush.msra.mxu0 %v1549
    %v1551 = vand.u32 %v106, 4294901760
    %v1552 = vsub.f32 %v106, %v1551
    %1553 = vmatpush.msra.mxu0 %v1552
    %v1554 = vand.u32 %v105, 4294901760
    %v1555 = vsub.f32 %v105, %v1554
    %1556 = vmatpush.msra.mxu0 %v1555
    %v1557 = vand.u32 %v104, 4294901760
    %v1558 = vsub.f32 %v104, %v1557
    %1559 = vmatpush.msra.mxu0 %v1558
    %v1560 = vand.u32 %v103, 4294901760
    %v1561 = vsub.f32 %v103, %v1560
    %1562 = vmatpush.msra.mxu0 %v1561
    %v1563 = vand.u32 %v102, 4294901760
    %v1564 = vsub.f32 %v102, %v1563
    %1565 = vmatpush.msra.mxu0 %v1564
    %v1566 = vand.u32 %v101, 4294901760
    %v1567 = vsub.f32 %v101, %v1566
    %1568 = vmatpush.msra.mxu0 %v1567
    %v1569 = vand.u32 %v100, 4294901760
    %v1570 = vsub.f32 %v100, %v1569
    %1571 = vmatpush.msra.mxu0 %v1570
    %v1572 = vand.u32 %v99, 4294901760
    %v1573 = vsub.f32 %v99, %v1572
    %1574 = vmatpush.msra.mxu0 %v1573
    %v1575 = vand.u32 %v98, 4294901760
    %v1576 = vsub.f32 %v98, %v1575
    %1577 = vmatpush.msra.mxu0 %v1576
    %v1578 = vand.u32 %v97, 4294901760
    %v1579 = vsub.f32 %v97, %v1578
    %1580 = vmatpush.msra.mxu0 %v1579
    %v1581 = vand.u32 %v96, 4294901760
    %v1582 = vsub.f32 %v96, %v1581
    %1583 = vmatpush.msra.mxu0 %v1582
    %v1584 = vand.u32 %v95, 4294901760
    %v1585 = vsub.f32 %v95, %v1584
    %1586 = vmatpush.msra.mxu0 %v1585
    %v1587 = vand.u32 %v94, 4294901760
    %v1588 = vsub.f32 %v94, %v1587
    %1589 = vmatpush.msra.mxu0 %v1588
    %v1590 = vand.u32 %v340, 4294901760
    %v1591 = vsub.f32 %v340, %v1590
    %1592 = vmatmul.f32.gmra.mxu0 %v1591
    %v1593 = vpop.f32.mrf.mxu0
    %v1594 = vadd.f32 %v1540, %v1593
    %1595 = vdwg.mxu0
    %v1596 = vand.u32 %v109, 4294901760
    %1597 = vmatpush.msra.mxu0 %v1596
    %v1598 = vand.u32 %v108, 4294901760
    %1599 = vmatpush.msra.mxu0 %v1598
    %v1600 = vand.u32 %v107, 4294901760
    %1601 = vmatpush.msra.mxu0 %v1600
    %v1602 = vand.u32 %v106, 4294901760
    %1603 = vmatpush.msra.mxu0 %v1602
    %v1604 = vand.u32 %v105, 4294901760
    %1605 = vmatpush.msra.mxu0 %v1604
    %v1606 = vand.u32 %v104, 4294901760
    %1607 = vmatpush.msra.mxu0 %v1606
    %v1608 = vand.u32 %v103, 4294901760
    %1609 = vmatpush.msra.mxu0 %v1608
    %v1610 = vand.u32 %v102, 4294901760
    %1611 = vmatpush.msra.mxu0 %v1610
    %v1612 = vand.u32 %v101, 4294901760
    %1613 = vmatpush.msra.mxu0 %v1612
    %v1614 = vand.u32 %v100, 4294901760
    %1615 = vmatpush.msra.mxu0 %v1614
    %v1616 = vand.u32 %v99, 4294901760
    %1617 = vmatpush.msra.mxu0 %v1616
    %v1618 = vand.u32 %v98, 4294901760
    %1619 = vmatpush.msra.mxu0 %v1618
    %v1620 = vand.u32 %v97, 4294901760
    %1621 = vmatpush.msra.mxu0 %v1620
    %v1622 = vand.u32 %v96, 4294901760
    %1623 = vmatpush.msra.mxu0 %v1622
    %v1624 = vand.u32 %v95, 4294901760
    %1625 = vmatpush.msra.mxu0 %v1624
    %v1626 = vand.u32 %v94, 4294901760
    %1627 = vmatpush.msra.mxu0 %v1626
    %v1628 = vand.u32 %v340, 4294901760
    %v1629 = vsub.f32 %v340, %v1628
    %v1630 = vand.u32 %v1629, 4294901760
    %1631 = vmatmul.f32.gmra.mxu0 %v1630
    %v1632 = vpop.f32.mrf.mxu0
    %v1633 = vadd.f32 %v1594, %v1632
    %1634 = vdwg.mxu0
    %v1635 = vand.u32 %v109, 4294901760
    %v1636 = vsub.f32 %v109, %v1635
    %v1637 = vand.u32 %v1636, 4294901760
    %1638 = vmatpush.msra.mxu0 %v1637
    %v1639 = vand.u32 %v108, 4294901760
    %v1640 = vsub.f32 %v108, %v1639
    %v1641 = vand.u32 %v1640, 4294901760
    %1642 = vmatpush.msra.mxu0 %v1641
    %v1643 = vand.u32 %v107, 4294901760
    %v1644 = vsub.f32 %v107, %v1643
    %v1645 = vand.u32 %v1644, 4294901760
    %1646 = vmatpush.msra.mxu0 %v1645
    %v1647 = vand.u32 %v106, 4294901760
    %v1648 = vsub.f32 %v106, %v1647
    %v1649 = vand.u32 %v1648, 4294901760
    %1650 = vmatpush.msra.mxu0 %v1649
    %v1651 = vand.u32 %v105, 4294901760
    %v1652 = vsub.f32 %v105, %v1651
    %v1653 = vand.u32 %v1652, 4294901760
    %1654 = vmatpush.msra.mxu0 %v1653
    %v1655 = vand.u32 %v104, 4294901760
    %v1656 = vsub.f32 %v104, %v1655
    %v1657 = vand.u32 %v1656, 4294901760
    %1658 = vmatpush.msra.mxu0 %v1657
    %v1659 = vand.u32 %v103, 4294901760
    %v1660 = vsub.f32 %v103, %v1659
    %v1661 = vand.u32 %v1660, 4294901760
    %1662 = vmatpush.msra.mxu0 %v1661
    %v1663 = vand.u32 %v102, 4294901760
    %v1664 = vsub.f32 %v102, %v1663
    %v1665 = vand.u32 %v1664, 4294901760
    %1666 = vmatpush.msra.mxu0 %v1665
    %v1667 = vand.u32 %v101, 4294901760
    %v1668 = vsub.f32 %v101, %v1667
    %v1669 = vand.u32 %v1668, 4294901760
    %1670 = vmatpush.msra.mxu0 %v1669
    %v1671 = vand.u32 %v100, 4294901760
    %v1672 = vsub.f32 %v100, %v1671
    %v1673 = vand.u32 %v1672, 4294901760
    %1674 = vmatpush.msra.mxu0 %v1673
    %v1675 = vand.u32 %v99, 4294901760
    %v1676 = vsub.f32 %v99, %v1675
    %v1677 = vand.u32 %v1676, 4294901760
    %1678 = vmatpush.msra.mxu0 %v1677
    %v1679 = vand.u32 %v98, 4294901760
    %v1680 = vsub.f32 %v98, %v1679
    %v1681 = vand.u32 %v1680, 4294901760
    %1682 = vmatpush.msra.mxu0 %v1681
    %v1683 = vand.u32 %v97, 4294901760
    %v1684 = vsub.f32 %v97, %v1683
    %v1685 = vand.u32 %v1684, 4294901760
    %1686 = vmatpush.msra.mxu0 %v1685
    %v1687 = vand.u32 %v96, 4294901760
    %v1688 = vsub.f32 %v96, %v1687
    %v1689 = vand.u32 %v1688, 4294901760
    %1690 = vmatpush.msra.mxu0 %v1689
    %v1691 = vand.u32 %v95, 4294901760
    %v1692 = vsub.f32 %v95, %v1691
    %v1693 = vand.u32 %v1692, 4294901760
    %1694 = vmatpush.msra.mxu0 %v1693
    %v1695 = vand.u32 %v94, 4294901760
    %v1696 = vsub.f32 %v94, %v1695
    %v1697 = vand.u32 %v1696, 4294901760
    %1698 = vmatpush.msra.mxu0 %v1697
    %v1699 = vand.u32 %v340, 4294901760
    %1700 = vmatmul.f32.gmra.mxu0 %v1699
    %v1701 = vpop.f32.mrf.mxu0
    %v1702 = vadd.f32 %v1633, %v1701
    %1703 = vdwg.mxu0
    %v1704 = vand.u32 %v109, 4294901760
    %1705 = vmatpush.msra.mxu0 %v1704
    %v1706 = vand.u32 %v108, 4294901760
    %1707 = vmatpush.msra.mxu0 %v1706
    %v1708 = vand.u32 %v107, 4294901760
    %1709 = vmatpush.msra.mxu0 %v1708
    %v1710 = vand.u32 %v106, 4294901760
    %1711 = vmatpush.msra.mxu0 %v1710
    %v1712 = vand.u32 %v105, 4294901760
    %1713 = vmatpush.msra.mxu0 %v1712
    %v1714 = vand.u32 %v104, 4294901760
    %1715 = vmatpush.msra.mxu0 %v1714
    %v1716 = vand.u32 %v103, 4294901760
    %1717 = vmatpush.msra.mxu0 %v1716
    %v1718 = vand.u32 %v102, 4294901760
    %1719 = vmatpush.msra.mxu0 %v1718
    %v1720 = vand.u32 %v101, 4294901760
    %1721 = vmatpush.msra.mxu0 %v1720
    %v1722 = vand.u32 %v100, 4294901760
    %1723 = vmatpush.msra.mxu0 %v1722
    %v1724 = vand.u32 %v99, 4294901760
    %1725 = vmatpush.msra.mxu0 %v1724
    %v1726 = vand.u32 %v98, 4294901760
    %1727 = vmatpush.msra.mxu0 %v1726
    %v1728 = vand.u32 %v97, 4294901760
    %1729 = vmatpush.msra.mxu0 %v1728
    %v1730 = vand.u32 %v96, 4294901760
    %1731 = vmatpush.msra.mxu0 %v1730
    %v1732 = vand.u32 %v95, 4294901760
    %1733 = vmatpush.msra.mxu0 %v1732
    %v1734 = vand.u32 %v94, 4294901760
    %1735 = vmatpush.msra.mxu0 %v1734
    %v1736 = vand.u32 %v340, 4294901760
    %1737 = vmatmul.f32.gmra.mxu0 %v1736
    %v1738 = vpop.f32.mrf.mxu0
    %v1739 = vadd.f32 %v1702, %v1738
    %1740 = vdwg.mxu0
    %v1741 = vand.u32 %v125, 4294901760
    %1742 = vmatpush.msra.mxu0 %v1741
    %v1743 = vand.u32 %v124, 4294901760
    %1744 = vmatpush.msra.mxu0 %v1743
    %v1745 = vand.u32 %v123, 4294901760
    %1746 = vmatpush.msra.mxu0 %v1745
    %v1747 = vand.u32 %v122, 4294901760
    %1748 = vmatpush.msra.mxu0 %v1747
    %v1749 = vand.u32 %v121, 4294901760
    %1750 = vmatpush.msra.mxu0 %v1749
    %v1751 = vand.u32 %v120, 4294901760
    %1752 = vmatpush.msra.mxu0 %v1751
    %v1753 = vand.u32 %v119, 4294901760
    %1754 = vmatpush.msra.mxu0 %v1753
    %v1755 = vand.u32 %v118, 4294901760
    %1756 = vmatpush.msra.mxu0 %v1755
    %v1757 = vand.u32 %v117, 4294901760
    %1758 = vmatpush.msra.mxu0 %v1757
    %v1759 = vand.u32 %v116, 4294901760
    %1760 = vmatpush.msra.mxu0 %v1759
    %v1761 = vand.u32 %v115, 4294901760
    %1762 = vmatpush.msra.mxu0 %v1761
    %v1763 = vand.u32 %v114, 4294901760
    %1764 = vmatpush.msra.mxu0 %v1763
    %v1765 = vand.u32 %v113, 4294901760
    %1766 = vmatpush.msra.mxu0 %v1765
    %v1767 = vand.u32 %v112, 4294901760
    %1768 = vmatpush.msra.mxu0 %v1767
    %v1769 = vand.u32 %v111, 4294901760
    %1770 = vmatpush.msra.mxu0 %v1769
    %v1771 = vand.u32 %v110, 4294901760
    %1772 = vmatpush.msra.mxu0 %v1771
    %v1773 = vand.u32 %v341, 4294901760
    %v1774 = vsub.f32 %v341, %v1773
    %v1775 = vand.u32 %v1774, 4294901760
    %v1776 = vsub.f32 %v1774, %v1775
    %v1777 = vand.u32 %v1776, 4294901760
    %1778 = vmatmul.f32.gmra.mxu0 %v1777
    %v1779 = vpop.f32.mrf.mxu0
    %v1780 = vadd.f32 %v1739, %v1779
    %1781 = vdwg.mxu0
    %v1782 = vand.u32 %v125, 4294901760
    %v1783 = vsub.f32 %v125, %v1782
    %v1784 = vand.u32 %v1783, 4294901760
    %v1785 = vsub.f32 %v1783, %v1784
    %v1786 = vand.u32 %v1785, 4294901760
    %1787 = vmatpush.msra.mxu0 %v1786
    %v1788 = vand.u32 %v124, 4294901760
    %v1789 = vsub.f32 %v124, %v1788
    %v1790 = vand.u32 %v1789, 4294901760
    %v1791 = vsub.f32 %v1789, %v1790
    %v1792 = vand.u32 %v1791, 4294901760
    %1793 = vmatpush.msra.mxu0 %v1792
    %v1794 = vand.u32 %v123, 4294901760
    %v1795 = vsub.f32 %v123, %v1794
    %v1796 = vand.u32 %v1795, 4294901760
    %v1797 = vsub.f32 %v1795, %v1796
    %v1798 = vand.u32 %v1797, 4294901760
    %1799 = vmatpush.msra.mxu0 %v1798
    %v1800 = vand.u32 %v122, 4294901760
    %v1801 = vsub.f32 %v122, %v1800
    %v1802 = vand.u32 %v1801, 4294901760
    %v1803 = vsub.f32 %v1801, %v1802
    %v1804 = vand.u32 %v1803, 4294901760
    %1805 = vmatpush.msra.mxu0 %v1804
    %v1806 = vand.u32 %v121, 4294901760
    %v1807 = vsub.f32 %v121, %v1806
    %v1808 = vand.u32 %v1807, 4294901760
    %v1809 = vsub.f32 %v1807, %v1808
    %v1810 = vand.u32 %v1809, 4294901760
    %1811 = vmatpush.msra.mxu0 %v1810
    %v1812 = vand.u32 %v120, 4294901760
    %v1813 = vsub.f32 %v120, %v1812
    %v1814 = vand.u32 %v1813, 4294901760
    %v1815 = vsub.f32 %v1813, %v1814
    %v1816 = vand.u32 %v1815, 4294901760
    %1817 = vmatpush.msra.mxu0 %v1816
    %v1818 = vand.u32 %v119, 4294901760
    %v1819 = vsub.f32 %v119, %v1818
    %v1820 = vand.u32 %v1819, 4294901760
    %v1821 = vsub.f32 %v1819, %v1820
    %v1822 = vand.u32 %v1821, 4294901760
    %1823 = vmatpush.msra.mxu0 %v1822
    %v1824 = vand.u32 %v118, 4294901760
    %v1825 = vsub.f32 %v118, %v1824
    %v1826 = vand.u32 %v1825, 4294901760
    %v1827 = vsub.f32 %v1825, %v1826
    %v1828 = vand.u32 %v1827, 4294901760
    %1829 = vmatpush.msra.mxu0 %v1828
    %v1830 = vand.u32 %v117, 4294901760
    %v1831 = vsub.f32 %v117, %v1830
    %v1832 = vand.u32 %v1831, 4294901760
    %v1833 = vsub.f32 %v1831, %v1832
    %v1834 = vand.u32 %v1833, 4294901760
    %1835 = vmatpush.msra.mxu0 %v1834
    %v1836 = vand.u32 %v116, 4294901760
    %v1837 = vsub.f32 %v116, %v1836
    %v1838 = vand.u32 %v1837, 4294901760
    %v1839 = vsub.f32 %v1837, %v1838
    %v1840 = vand.u32 %v1839, 4294901760
    %1841 = vmatpush.msra.mxu0 %v1840
    %v1842 = vand.u32 %v115, 4294901760
    %v1843 = vsub.f32 %v115, %v1842
    %v1844 = vand.u32 %v1843, 4294901760
    %v1845 = vsub.f32 %v1843, %v1844
    %v1846 = vand.u32 %v1845, 4294901760
    %1847 = vmatpush.msra.mxu0 %v1846
    %v1848 = vand.u32 %v114, 4294901760
    %v1849 = vsub.f32 %v114, %v1848
    %v1850 = vand.u32 %v1849, 4294901760
    %v1851 = vsub.f32 %v1849, %v1850
    %v1852 = vand.u32 %v1851, 4294901760
    %1853 = vmatpush.msra.mxu0 %v1852
    %v1854 = vand.u32 %v113, 4294901760
    %v1855 = vsub.f32 %v113, %v1854
    %v1856 = vand.u32 %v1855, 4294901760
    %v1857 = vsub.f32 %v1855, %v1856
    %v1858 = vand.u32 %v1857, 4294901760
    %1859 = vmatpush.msra.mxu0 %v1858
    %v1860 = vand.u32 %v112, 4294901760
    %v1861 = vsub.f32 %v112, %v1860
    %v1862 = vand.u32 %v1861, 4294901760
    %v1863 = vsub.f32 %v1861, %v1862
    %v1864 = vand.u32 %v1863, 4294901760
    %1865 = vmatpush.msra.mxu0 %v1864
    %v1866 = vand.u32 %v111, 4294901760
    %v1867 = vsub.f32 %v111, %v1866
    %v1868 = vand.u32 %v1867, 4294901760
    %v1869 = vsub.f32 %v1867, %v1868
    %v1870 = vand.u32 %v1869, 4294901760
    %1871 = vmatpush.msra.mxu0 %v1870
    %v1872 = vand.u32 %v110, 4294901760
    %v1873 = vsub.f32 %v110, %v1872
    %v1874 = vand.u32 %v1873, 4294901760
    %v1875 = vsub.f32 %v1873, %v1874
    %v1876 = vand.u32 %v1875, 4294901760
    %1877 = vmatpush.msra.mxu0 %v1876
    %v1878 = vand.u32 %v341, 4294901760
    %1879 = vmatmul.f32.gmra.mxu0 %v1878
    %v1880 = vpop.f32.mrf.mxu0
    %v1881 = vadd.f32 %v1780, %v1880
    %1882 = vdwg.mxu0
    %v1883 = vand.u32 %v125, 4294901760
    %v1884 = vsub.f32 %v125, %v1883
    %1885 = vmatpush.msra.mxu0 %v1884
    %v1886 = vand.u32 %v124, 4294901760
    %v1887 = vsub.f32 %v124, %v1886
    %1888 = vmatpush.msra.mxu0 %v1887
    %v1889 = vand.u32 %v123, 4294901760
    %v1890 = vsub.f32 %v123, %v1889
    %1891 = vmatpush.msra.mxu0 %v1890
    %v1892 = vand.u32 %v122, 4294901760
    %v1893 = vsub.f32 %v122, %v1892
    %1894 = vmatpush.msra.mxu0 %v1893
    %v1895 = vand.u32 %v121, 4294901760
    %v1896 = vsub.f32 %v121, %v1895
    %1897 = vmatpush.msra.mxu0 %v1896
    %v1898 = vand.u32 %v120, 4294901760
    %v1899 = vsub.f32 %v120, %v1898
    %1900 = vmatpush.msra.mxu0 %v1899
    %v1901 = vand.u32 %v119, 4294901760
    %v1902 = vsub.f32 %v119, %v1901
    %1903 = vmatpush.msra.mxu0 %v1902
    %v1904 = vand.u32 %v118, 4294901760
    %v1905 = vsub.f32 %v118, %v1904
    %1906 = vmatpush.msra.mxu0 %v1905
    %v1907 = vand.u32 %v117, 4294901760
    %v1908 = vsub.f32 %v117, %v1907
    %1909 = vmatpush.msra.mxu0 %v1908
    %v1910 = vand.u32 %v116, 4294901760
    %v1911 = vsub.f32 %v116, %v1910
    %1912 = vmatpush.msra.mxu0 %v1911
    %v1913 = vand.u32 %v115, 4294901760
    %v1914 = vsub.f32 %v115, %v1913
    %1915 = vmatpush.msra.mxu0 %v1914
    %v1916 = vand.u32 %v114, 4294901760
    %v1917 = vsub.f32 %v114, %v1916
    %1918 = vmatpush.msra.mxu0 %v1917
    %v1919 = vand.u32 %v113, 4294901760
    %v1920 = vsub.f32 %v113, %v1919
    %1921 = vmatpush.msra.mxu0 %v1920
    %v1922 = vand.u32 %v112, 4294901760
    %v1923 = vsub.f32 %v112, %v1922
    %1924 = vmatpush.msra.mxu0 %v1923
    %v1925 = vand.u32 %v111, 4294901760
    %v1926 = vsub.f32 %v111, %v1925
    %1927 = vmatpush.msra.mxu0 %v1926
    %v1928 = vand.u32 %v110, 4294901760
    %v1929 = vsub.f32 %v110, %v1928
    %1930 = vmatpush.msra.mxu0 %v1929
    %v1931 = vand.u32 %v341, 4294901760
    %v1932 = vsub.f32 %v341, %v1931
    %1933 = vmatmul.f32.gmra.mxu0 %v1932
    %v1934 = vpop.f32.mrf.mxu0
    %v1935 = vadd.f32 %v1881, %v1934
    %1936 = vdwg.mxu0
    %v1937 = vand.u32 %v125, 4294901760
    %1938 = vmatpush.msra.mxu0 %v1937
    %v1939 = vand.u32 %v124, 4294901760
    %1940 = vmatpush.msra.mxu0 %v1939
    %v1941 = vand.u32 %v123, 4294901760
    %1942 = vmatpush.msra.mxu0 %v1941
    %v1943 = vand.u32 %v122, 4294901760
    %1944 = vmatpush.msra.mxu0 %v1943
    %v1945 = vand.u32 %v121, 4294901760
    %1946 = vmatpush.msra.mxu0 %v1945
    %v1947 = vand.u32 %v120, 4294901760
    %1948 = vmatpush.msra.mxu0 %v1947
    %v1949 = vand.u32 %v119, 4294901760
    %1950 = vmatpush.msra.mxu0 %v1949
    %v1951 = vand.u32 %v118, 4294901760
    %1952 = vmatpush.msra.mxu0 %v1951
    %v1953 = vand.u32 %v117, 4294901760
    %1954 = vmatpush.msra.mxu0 %v1953
    %v1955 = vand.u32 %v116, 4294901760
    %1956 = vmatpush.msra.mxu0 %v1955
    %v1957 = vand.u32 %v115, 4294901760
    %1958 = vmatpush.msra.mxu0 %v1957
    %v1959 = vand.u32 %v114, 4294901760
    %1960 = vmatpush.msra.mxu0 %v1959
    %v1961 = vand.u32 %v113, 4294901760
    %1962 = vmatpush.msra.mxu0 %v1961
    %v1963 = vand.u32 %v112, 4294901760
    %1964 = vmatpush.msra.mxu0 %v1963
    %v1965 = vand.u32 %v111, 4294901760
    %1966 = vmatpush.msra.mxu0 %v1965
    %v1967 = vand.u32 %v110, 4294901760
    %1968 = vmatpush.msra.mxu0 %v1967
    %v1969 = vand.u32 %v341, 4294901760
    %v1970 = vsub.f32 %v341, %v1969
    %v1971 = vand.u32 %v1970, 4294901760
    %1972 = vmatmul.f32.gmra.mxu0 %v1971
    %v1973 = vpop.f32.mrf.mxu0
    %v1974 = vadd.f32 %v1935, %v1973
    %1975 = vdwg.mxu0
    %v1976 = vand.u32 %v125, 4294901760
    %v1977 = vsub.f32 %v125, %v1976
    %v1978 = vand.u32 %v1977, 4294901760
    %1979 = vmatpush.msra.mxu0 %v1978
    %v1980 = vand.u32 %v124, 4294901760
    %v1981 = vsub.f32 %v124, %v1980
    %v1982 = vand.u32 %v1981, 4294901760
    %1983 = vmatpush.msra.mxu0 %v1982
    %v1984 = vand.u32 %v123, 4294901760
    %v1985 = vsub.f32 %v123, %v1984
    %v1986 = vand.u32 %v1985, 4294901760
    %1987 = vmatpush.msra.mxu0 %v1986
    %v1988 = vand.u32 %v122, 4294901760
    %v1989 = vsub.f32 %v122, %v1988
    %v1990 = vand.u32 %v1989, 4294901760
    %1991 = vmatpush.msra.mxu0 %v1990
    %v1992 = vand.u32 %v121, 4294901760
    %v1993 = vsub.f32 %v121, %v1992
    %v1994 = vand.u32 %v1993, 4294901760
    %1995 = vmatpush.msra.mxu0 %v1994
    %v1996 = vand.u32 %v120, 4294901760
    %v1997 = vsub.f32 %v120, %v1996
    %v1998 = vand.u32 %v1997, 4294901760
    %1999 = vmatpush.msra.mxu0 %v1998
    %v2000 = vand.u32 %v119, 4294901760
    %v2001 = vsub.f32 %v119, %v2000
    %v2002 = vand.u32 %v2001, 4294901760
    %2003 = vmatpush.msra.mxu0 %v2002
    %v2004 = vand.u32 %v118, 4294901760
    %v2005 = vsub.f32 %v118, %v2004
    %v2006 = vand.u32 %v2005, 4294901760
    %2007 = vmatpush.msra.mxu0 %v2006
    %v2008 = vand.u32 %v117, 4294901760
    %v2009 = vsub.f32 %v117, %v2008
    %v2010 = vand.u32 %v2009, 4294901760
    %2011 = vmatpush.msra.mxu0 %v2010
    %v2012 = vand.u32 %v116, 4294901760
    %v2013 = vsub.f32 %v116, %v2012
    %v2014 = vand.u32 %v2013, 4294901760
    %2015 = vmatpush.msra.mxu0 %v2014
    %v2016 = vand.u32 %v115, 4294901760
    %v2017 = vsub.f32 %v115, %v2016
    %v2018 = vand.u32 %v2017, 4294901760
    %2019 = vmatpush.msra.mxu0 %v2018
    %v2020 = vand.u32 %v114, 4294901760
    %v2021 = vsub.f32 %v114, %v2020
    %v2022 = vand.u32 %v2021, 4294901760
    %2023 = vmatpush.msra.mxu0 %v2022
    %v2024 = vand.u32 %v113, 4294901760
    %v2025 = vsub.f32 %v113, %v2024
    %v2026 = vand.u32 %v2025, 4294901760
    %2027 = vmatpush.msra.mxu0 %v2026
    %v2028 = vand.u32 %v112, 4294901760
    %v2029 = vsub.f32 %v112, %v2028
    %v2030 = vand.u32 %v2029, 4294901760
    %2031 = vmatpush.msra.mxu0 %v2030
    %v2032 = vand.u32 %v111, 4294901760
    %v2033 = vsub.f32 %v111, %v2032
    %v2034 = vand.u32 %v2033, 4294901760
    %2035 = vmatpush.msra.mxu0 %v2034
    %v2036 = vand.u32 %v110, 4294901760
    %v2037 = vsub.f32 %v110, %v2036
    %v2038 = vand.u32 %v2037, 4294901760
    %2039 = vmatpush.msra.mxu0 %v2038
    %v2040 = vand.u32 %v341, 4294901760
    %2041 = vmatmul.f32.gmra.mxu0 %v2040
    %v2042 = vpop.f32.mrf.mxu0
    %v2043 = vadd.f32 %v1974, %v2042
    %2044 = vdwg.mxu0
    %v2045 = vand.u32 %v125, 4294901760
    %2046 = vmatpush.msra.mxu0 %v2045
    %v2047 = vand.u32 %v124, 4294901760
    %2048 = vmatpush.msra.mxu0 %v2047
    %v2049 = vand.u32 %v123, 4294901760
    %2050 = vmatpush.msra.mxu0 %v2049
    %v2051 = vand.u32 %v122, 4294901760
    %2052 = vmatpush.msra.mxu0 %v2051
    %v2053 = vand.u32 %v121, 4294901760
    %2054 = vmatpush.msra.mxu0 %v2053
    %v2055 = vand.u32 %v120, 4294901760
    %2056 = vmatpush.msra.mxu0 %v2055
    %v2057 = vand.u32 %v119, 4294901760
    %2058 = vmatpush.msra.mxu0 %v2057
    %v2059 = vand.u32 %v118, 4294901760
    %2060 = vmatpush.msra.mxu0 %v2059
    %v2061 = vand.u32 %v117, 4294901760
    %2062 = vmatpush.msra.mxu0 %v2061
    %v2063 = vand.u32 %v116, 4294901760
    %2064 = vmatpush.msra.mxu0 %v2063
    %v2065 = vand.u32 %v115, 4294901760
    %2066 = vmatpush.msra.mxu0 %v2065
    %v2067 = vand.u32 %v114, 4294901760
    %2068 = vmatpush.msra.mxu0 %v2067
    %v2069 = vand.u32 %v113, 4294901760
    %2070 = vmatpush.msra.mxu0 %v2069
    %v2071 = vand.u32 %v112, 4294901760
    %2072 = vmatpush.msra.mxu0 %v2071
    %v2073 = vand.u32 %v111, 4294901760
    %2074 = vmatpush.msra.mxu0 %v2073
    %v2075 = vand.u32 %v110, 4294901760
    %2076 = vmatpush.msra.mxu0 %v2075
    %v2077 = vand.u32 %v341, 4294901760
    %2078 = vmatmul.f32.gmra.mxu0 %v2077
    %v2079 = vpop.f32.mrf.mxu0
    %v2080 = vadd.f32 %v2043, %v2079
    %2081 = vdwg.mxu0
    %v2082 = vand.u32 %v141, 4294901760
    %2083 = vmatpush.msra.mxu0 %v2082
    %v2084 = vand.u32 %v140, 4294901760
    %2085 = vmatpush.msra.mxu0 %v2084
    %v2086 = vand.u32 %v139, 4294901760
    %2087 = vmatpush.msra.mxu0 %v2086
    %v2088 = vand.u32 %v138, 4294901760
    %2089 = vmatpush.msra.mxu0 %v2088
    %v2090 = vand.u32 %v137, 4294901760
    %2091 = vmatpush.msra.mxu0 %v2090
    %v2092 = vand.u32 %v136, 4294901760
    %2093 = vmatpush.msra.mxu0 %v2092
    %v2094 = vand.u32 %v135, 4294901760
    %2095 = vmatpush.msra.mxu0 %v2094
    %v2096 = vand.u32 %v134, 4294901760
    %2097 = vmatpush.msra.mxu0 %v2096
    %v2098 = vand.u32 %v133, 4294901760
    %2099 = vmatpush.msra.mxu0 %v2098
    %v2100 = vand.u32 %v132, 4294901760
    %2101 = vmatpush.msra.mxu0 %v2100
    %v2102 = vand.u32 %v131, 4294901760
    %2103 = vmatpush.msra.mxu0 %v2102
    %v2104 = vand.u32 %v130, 4294901760
    %2105 = vmatpush.msra.mxu0 %v2104
    %v2106 = vand.u32 %v129, 4294901760
    %2107 = vmatpush.msra.mxu0 %v2106
    %v2108 = vand.u32 %v128, 4294901760
    %2109 = vmatpush.msra.mxu0 %v2108
    %v2110 = vand.u32 %v127, 4294901760
    %2111 = vmatpush.msra.mxu0 %v2110
    %v2112 = vand.u32 %v126, 4294901760
    %2113 = vmatpush.msra.mxu0 %v2112
    %v2114 = vand.u32 %v342, 4294901760
    %v2115 = vsub.f32 %v342, %v2114
    %v2116 = vand.u32 %v2115, 4294901760
    %v2117 = vsub.f32 %v2115, %v2116
    %v2118 = vand.u32 %v2117, 4294901760
    %2119 = vmatmul.f32.gmra.mxu0 %v2118
    %v2120 = vpop.f32.mrf.mxu0
    %v2121 = vadd.f32 %v2080, %v2120
    %2122 = vdwg.mxu0
    %v2123 = vand.u32 %v141, 4294901760
    %v2124 = vsub.f32 %v141, %v2123
    %v2125 = vand.u32 %v2124, 4294901760
    %v2126 = vsub.f32 %v2124, %v2125
    %v2127 = vand.u32 %v2126, 4294901760
    %2128 = vmatpush.msra.mxu0 %v2127
    %v2129 = vand.u32 %v140, 4294901760
    %v2130 = vsub.f32 %v140, %v2129
    %v2131 = vand.u32 %v2130, 4294901760
    %v2132 = vsub.f32 %v2130, %v2131
    %v2133 = vand.u32 %v2132, 4294901760
    %2134 = vmatpush.msra.mxu0 %v2133
    %v2135 = vand.u32 %v139, 4294901760
    %v2136 = vsub.f32 %v139, %v2135
    %v2137 = vand.u32 %v2136, 4294901760
    %v2138 = vsub.f32 %v2136, %v2137
    %v2139 = vand.u32 %v2138, 4294901760
    %2140 = vmatpush.msra.mxu0 %v2139
    %v2141 = vand.u32 %v138, 4294901760
    %v2142 = vsub.f32 %v138, %v2141
    %v2143 = vand.u32 %v2142, 4294901760
    %v2144 = vsub.f32 %v2142, %v2143
    %v2145 = vand.u32 %v2144, 4294901760
    %2146 = vmatpush.msra.mxu0 %v2145
    %v2147 = vand.u32 %v137, 4294901760
    %v2148 = vsub.f32 %v137, %v2147
    %v2149 = vand.u32 %v2148, 4294901760
    %v2150 = vsub.f32 %v2148, %v2149
    %v2151 = vand.u32 %v2150, 4294901760
    %2152 = vmatpush.msra.mxu0 %v2151
    %v2153 = vand.u32 %v136, 4294901760
    %v2154 = vsub.f32 %v136, %v2153
    %v2155 = vand.u32 %v2154, 4294901760
    %v2156 = vsub.f32 %v2154, %v2155
    %v2157 = vand.u32 %v2156, 4294901760
    %2158 = vmatpush.msra.mxu0 %v2157
    %v2159 = vand.u32 %v135, 4294901760
    %v2160 = vsub.f32 %v135, %v2159
    %v2161 = vand.u32 %v2160, 4294901760
    %v2162 = vsub.f32 %v2160, %v2161
    %v2163 = vand.u32 %v2162, 4294901760
    %2164 = vmatpush.msra.mxu0 %v2163
    %v2165 = vand.u32 %v134, 4294901760
    %v2166 = vsub.f32 %v134, %v2165
    %v2167 = vand.u32 %v2166, 4294901760
    %v2168 = vsub.f32 %v2166, %v2167
    %v2169 = vand.u32 %v2168, 4294901760
    %2170 = vmatpush.msra.mxu0 %v2169
    %v2171 = vand.u32 %v133, 4294901760
    %v2172 = vsub.f32 %v133, %v2171
    %v2173 = vand.u32 %v2172, 4294901760
    %v2174 = vsub.f32 %v2172, %v2173
    %v2175 = vand.u32 %v2174, 4294901760
    %2176 = vmatpush.msra.mxu0 %v2175
    %v2177 = vand.u32 %v132, 4294901760
    %v2178 = vsub.f32 %v132, %v2177
    %v2179 = vand.u32 %v2178, 4294901760
    %v2180 = vsub.f32 %v2178, %v2179
    %v2181 = vand.u32 %v2180, 4294901760
    %2182 = vmatpush.msra.mxu0 %v2181
    %v2183 = vand.u32 %v131, 4294901760
    %v2184 = vsub.f32 %v131, %v2183
    %v2185 = vand.u32 %v2184, 4294901760
    %v2186 = vsub.f32 %v2184, %v2185
    %v2187 = vand.u32 %v2186, 4294901760
    %2188 = vmatpush.msra.mxu0 %v2187
    %v2189 = vand.u32 %v130, 4294901760
    %v2190 = vsub.f32 %v130, %v2189
    %v2191 = vand.u32 %v2190, 4294901760
    %v2192 = vsub.f32 %v2190, %v2191
    %v2193 = vand.u32 %v2192, 4294901760
    %2194 = vmatpush.msra.mxu0 %v2193
    %v2195 = vand.u32 %v129, 4294901760
    %v2196 = vsub.f32 %v129, %v2195
    %v2197 = vand.u32 %v2196, 4294901760
    %v2198 = vsub.f32 %v2196, %v2197
    %v2199 = vand.u32 %v2198, 4294901760
    %2200 = vmatpush.msra.mxu0 %v2199
    %v2201 = vand.u32 %v128, 4294901760
    %v2202 = vsub.f32 %v128, %v2201
    %v2203 = vand.u32 %v2202, 4294901760
    %v2204 = vsub.f32 %v2202, %v2203
    %v2205 = vand.u32 %v2204, 4294901760
    %2206 = vmatpush.msra.mxu0 %v2205
    %v2207 = vand.u32 %v127, 4294901760
    %v2208 = vsub.f32 %v127, %v2207
    %v2209 = vand.u32 %v2208, 4294901760
    %v2210 = vsub.f32 %v2208, %v2209
    %v2211 = vand.u32 %v2210, 4294901760
    %2212 = vmatpush.msra.mxu0 %v2211
    %v2213 = vand.u32 %v126, 4294901760
    %v2214 = vsub.f32 %v126, %v2213
    %v2215 = vand.u32 %v2214, 4294901760
    %v2216 = vsub.f32 %v2214, %v2215
    %v2217 = vand.u32 %v2216, 4294901760
    %2218 = vmatpush.msra.mxu0 %v2217
    %v2219 = vand.u32 %v342, 4294901760
    %2220 = vmatmul.f32.gmra.mxu0 %v2219
    %v2221 = vpop.f32.mrf.mxu0
    %v2222 = vadd.f32 %v2121, %v2221
    %2223 = vdwg.mxu0
    %v2224 = vand.u32 %v141, 4294901760
    %v2225 = vsub.f32 %v141, %v2224
    %2226 = vmatpush.msra.mxu0 %v2225
    %v2227 = vand.u32 %v140, 4294901760
    %v2228 = vsub.f32 %v140, %v2227
    %2229 = vmatpush.msra.mxu0 %v2228
    %v2230 = vand.u32 %v139, 4294901760
    %v2231 = vsub.f32 %v139, %v2230
    %2232 = vmatpush.msra.mxu0 %v2231
    %v2233 = vand.u32 %v138, 4294901760
    %v2234 = vsub.f32 %v138, %v2233
    %2235 = vmatpush.msra.mxu0 %v2234
    %v2236 = vand.u32 %v137, 4294901760
    %v2237 = vsub.f32 %v137, %v2236
    %2238 = vmatpush.msra.mxu0 %v2237
    %v2239 = vand.u32 %v136, 4294901760
    %v2240 = vsub.f32 %v136, %v2239
    %2241 = vmatpush.msra.mxu0 %v2240
    %v2242 = vand.u32 %v135, 4294901760
    %v2243 = vsub.f32 %v135, %v2242
    %2244 = vmatpush.msra.mxu0 %v2243
    %v2245 = vand.u32 %v134, 4294901760
    %v2246 = vsub.f32 %v134, %v2245
    %2247 = vmatpush.msra.mxu0 %v2246
    %v2248 = vand.u32 %v133, 4294901760
    %v2249 = vsub.f32 %v133, %v2248
    %2250 = vmatpush.msra.mxu0 %v2249
    %v2251 = vand.u32 %v132, 4294901760
    %v2252 = vsub.f32 %v132, %v2251
    %2253 = vmatpush.msra.mxu0 %v2252
    %v2254 = vand.u32 %v131, 4294901760
    %v2255 = vsub.f32 %v131, %v2254
    %2256 = vmatpush.msra.mxu0 %v2255
    %v2257 = vand.u32 %v130, 4294901760
    %v2258 = vsub.f32 %v130, %v2257
    %2259 = vmatpush.msra.mxu0 %v2258
    %v2260 = vand.u32 %v129, 4294901760
    %v2261 = vsub.f32 %v129, %v2260
    %2262 = vmatpush.msra.mxu0 %v2261
    %v2263 = vand.u32 %v128, 4294901760
    %v2264 = vsub.f32 %v128, %v2263
    %2265 = vmatpush.msra.mxu0 %v2264
    %v2266 = vand.u32 %v127, 4294901760
    %v2267 = vsub.f32 %v127, %v2266
    %2268 = vmatpush.msra.mxu0 %v2267
    %v2269 = vand.u32 %v126, 4294901760
    %v2270 = vsub.f32 %v126, %v2269
    %2271 = vmatpush.msra.mxu0 %v2270
    %v2272 = vand.u32 %v342, 4294901760
    %v2273 = vsub.f32 %v342, %v2272
    %2274 = vmatmul.f32.gmra.mxu0 %v2273
    %v2275 = vpop.f32.mrf.mxu0
    %v2276 = vadd.f32 %v2222, %v2275
    %2277 = vdwg.mxu0
    %v2278 = vand.u32 %v141, 4294901760
    %2279 = vmatpush.msra.mxu0 %v2278
    %v2280 = vand.u32 %v140, 4294901760
    %2281 = vmatpush.msra.mxu0 %v2280
    %v2282 = vand.u32 %v139, 4294901760
    %2283 = vmatpush.msra.mxu0 %v2282
    %v2284 = vand.u32 %v138, 4294901760
    %2285 = vmatpush.msra.mxu0 %v2284
    %v2286 = vand.u32 %v137, 4294901760
    %2287 = vmatpush.msra.mxu0 %v2286
    %v2288 = vand.u32 %v136, 4294901760
    %2289 = vmatpush.msra.mxu0 %v2288
    %v2290 = vand.u32 %v135, 4294901760
    %2291 = vmatpush.msra.mxu0 %v2290
    %v2292 = vand.u32 %v134, 4294901760
    %2293 = vmatpush.msra.mxu0 %v2292
    %v2294 = vand.u32 %v133, 4294901760
    %2295 = vmatpush.msra.mxu0 %v2294
    %v2296 = vand.u32 %v132, 4294901760
    %2297 = vmatpush.msra.mxu0 %v2296
    %v2298 = vand.u32 %v131, 4294901760
    %2299 = vmatpush.msra.mxu0 %v2298
    %v2300 = vand.u32 %v130, 4294901760
    %2301 = vmatpush.msra.mxu0 %v2300
    %v2302 = vand.u32 %v129, 4294901760
    %2303 = vmatpush.msra.mxu0 %v2302
    %v2304 = vand.u32 %v128, 4294901760
    %2305 = vmatpush.msra.mxu0 %v2304
    %v2306 = vand.u32 %v127, 4294901760
    %2307 = vmatpush.msra.mxu0 %v2306
    %v2308 = vand.u32 %v126, 4294901760
    %2309 = vmatpush.msra.mxu0 %v2308
    %v2310 = vand.u32 %v342, 4294901760
    %v2311 = vsub.f32 %v342, %v2310
    %v2312 = vand.u32 %v2311, 4294901760
    %2313 = vmatmul.f32.gmra.mxu0 %v2312
    %v2314 = vpop.f32.mrf.mxu0
    %v2315 = vadd.f32 %v2276, %v2314
    %2316 = vdwg.mxu0
    %v2317 = vand.u32 %v141, 4294901760
    %v2318 = vsub.f32 %v141, %v2317
    %v2319 = vand.u32 %v2318, 4294901760
    %2320 = vmatpush.msra.mxu0 %v2319
    %v2321 = vand.u32 %v140, 4294901760
    %v2322 = vsub.f32 %v140, %v2321
    %v2323 = vand.u32 %v2322, 4294901760
    %2324 = vmatpush.msra.mxu0 %v2323
    %v2325 = vand.u32 %v139, 4294901760
    %v2326 = vsub.f32 %v139, %v2325
    %v2327 = vand.u32 %v2326, 4294901760
    %2328 = vmatpush.msra.mxu0 %v2327
    %v2329 = vand.u32 %v138, 4294901760
    %v2330 = vsub.f32 %v138, %v2329
    %v2331 = vand.u32 %v2330, 4294901760
    %2332 = vmatpush.msra.mxu0 %v2331
    %v2333 = vand.u32 %v137, 4294901760
    %v2334 = vsub.f32 %v137, %v2333
    %v2335 = vand.u32 %v2334, 4294901760
    %2336 = vmatpush.msra.mxu0 %v2335
    %v2337 = vand.u32 %v136, 4294901760
    %v2338 = vsub.f32 %v136, %v2337
    %v2339 = vand.u32 %v2338, 4294901760
    %2340 = vmatpush.msra.mxu0 %v2339
    %v2341 = vand.u32 %v135, 4294901760
    %v2342 = vsub.f32 %v135, %v2341
    %v2343 = vand.u32 %v2342, 4294901760
    %2344 = vmatpush.msra.mxu0 %v2343
    %v2345 = vand.u32 %v134, 4294901760
    %v2346 = vsub.f32 %v134, %v2345
    %v2347 = vand.u32 %v2346, 4294901760
    %2348 = vmatpush.msra.mxu0 %v2347
    %v2349 = vand.u32 %v133, 4294901760
    %v2350 = vsub.f32 %v133, %v2349
    %v2351 = vand.u32 %v2350, 4294901760
    %2352 = vmatpush.msra.mxu0 %v2351
    %v2353 = vand.u32 %v132, 4294901760
    %v2354 = vsub.f32 %v132, %v2353
    %v2355 = vand.u32 %v2354, 4294901760
    %2356 = vmatpush.msra.mxu0 %v2355
    %v2357 = vand.u32 %v131, 4294901760
    %v2358 = vsub.f32 %v131, %v2357
    %v2359 = vand.u32 %v2358, 4294901760
    %2360 = vmatpush.msra.mxu0 %v2359
    %v2361 = vand.u32 %v130, 4294901760
    %v2362 = vsub.f32 %v130, %v2361
    %v2363 = vand.u32 %v2362, 4294901760
    %2364 = vmatpush.msra.mxu0 %v2363
    %v2365 = vand.u32 %v129, 4294901760
    %v2366 = vsub.f32 %v129, %v2365
    %v2367 = vand.u32 %v2366, 4294901760
    %2368 = vmatpush.msra.mxu0 %v2367
    %v2369 = vand.u32 %v128, 4294901760
    %v2370 = vsub.f32 %v128, %v2369
    %v2371 = vand.u32 %v2370, 4294901760
    %2372 = vmatpush.msra.mxu0 %v2371
    %v2373 = vand.u32 %v127, 4294901760
    %v2374 = vsub.f32 %v127, %v2373
    %v2375 = vand.u32 %v2374, 4294901760
    %2376 = vmatpush.msra.mxu0 %v2375
    %v2377 = vand.u32 %v126, 4294901760
    %v2378 = vsub.f32 %v126, %v2377
    %v2379 = vand.u32 %v2378, 4294901760
    %2380 = vmatpush.msra.mxu0 %v2379
    %v2381 = vand.u32 %v342, 4294901760
    %2382 = vmatmul.f32.gmra.mxu0 %v2381
    %v2383 = vpop.f32.mrf.mxu0
    %v2384 = vadd.f32 %v2315, %v2383
    %2385 = vdwg.mxu0
    %v2386 = vand.u32 %v141, 4294901760
    %2387 = vmatpush.msra.mxu0 %v2386
    %v2388 = vand.u32 %v140, 4294901760
    %2389 = vmatpush.msra.mxu0 %v2388
    %v2390 = vand.u32 %v139, 4294901760
    %2391 = vmatpush.msra.mxu0 %v2390
    %v2392 = vand.u32 %v138, 4294901760
    %2393 = vmatpush.msra.mxu0 %v2392
    %v2394 = vand.u32 %v137, 4294901760
    %2395 = vmatpush.msra.mxu0 %v2394
    %v2396 = vand.u32 %v136, 4294901760
    %2397 = vmatpush.msra.mxu0 %v2396
    %v2398 = vand.u32 %v135, 4294901760
    %2399 = vmatpush.msra.mxu0 %v2398
    %v2400 = vand.u32 %v134, 4294901760
    %2401 = vmatpush.msra.mxu0 %v2400
    %v2402 = vand.u32 %v133, 4294901760
    %2403 = vmatpush.msra.mxu0 %v2402
    %v2404 = vand.u32 %v132, 4294901760
    %2405 = vmatpush.msra.mxu0 %v2404
    %v2406 = vand.u32 %v131, 4294901760
    %2407 = vmatpush.msra.mxu0 %v2406
    %v2408 = vand.u32 %v130, 4294901760
    %2409 = vmatpush.msra.mxu0 %v2408
    %v2410 = vand.u32 %v129, 4294901760
    %2411 = vmatpush.msra.mxu0 %v2410
    %v2412 = vand.u32 %v128, 4294901760
    %2413 = vmatpush.msra.mxu0 %v2412
    %v2414 = vand.u32 %v127, 4294901760
    %2415 = vmatpush.msra.mxu0 %v2414
    %v2416 = vand.u32 %v126, 4294901760
    %2417 = vmatpush.msra.mxu0 %v2416
    %v2418 = vand.u32 %v342, 4294901760
    %2419 = vmatmul.f32.gmra.mxu0 %v2418
    %v2420 = vpop.f32.mrf.mxu0
    %v2421 = vadd.f32 %v2384, %v2420
    %2422 = vdwg.mxu0
    %v2423 = vand.u32 %v157, 4294901760
    %2424 = vmatpush.msra.mxu0 %v2423
    %v2425 = vand.u32 %v156, 4294901760
    %2426 = vmatpush.msra.mxu0 %v2425
    %v2427 = vand.u32 %v155, 4294901760
    %2428 = vmatpush.msra.mxu0 %v2427
    %v2429 = vand.u32 %v154, 4294901760
    %2430 = vmatpush.msra.mxu0 %v2429
    %v2431 = vand.u32 %v153, 4294901760
    %2432 = vmatpush.msra.mxu0 %v2431
    %v2433 = vand.u32 %v152, 4294901760
    %2434 = vmatpush.msra.mxu0 %v2433
    %v2435 = vand.u32 %v151, 4294901760
    %2436 = vmatpush.msra.mxu0 %v2435
    %v2437 = vand.u32 %v150, 4294901760
    %2438 = vmatpush.msra.mxu0 %v2437
    %v2439 = vand.u32 %v149, 4294901760
    %2440 = vmatpush.msra.mxu0 %v2439
    %v2441 = vand.u32 %v148, 4294901760
    %2442 = vmatpush.msra.mxu0 %v2441
    %v2443 = vand.u32 %v147, 4294901760
    %2444 = vmatpush.msra.mxu0 %v2443
    %v2445 = vand.u32 %v146, 4294901760
    %2446 = vmatpush.msra.mxu0 %v2445
    %v2447 = vand.u32 %v145, 4294901760
    %2448 = vmatpush.msra.mxu0 %v2447
    %v2449 = vand.u32 %v144, 4294901760
    %2450 = vmatpush.msra.mxu0 %v2449
    %v2451 = vand.u32 %v143, 4294901760
    %2452 = vmatpush.msra.mxu0 %v2451
    %v2453 = vand.u32 %v142, 4294901760
    %2454 = vmatpush.msra.mxu0 %v2453
    %v2455 = vand.u32 %v343, 4294901760
    %v2456 = vsub.f32 %v343, %v2455
    %v2457 = vand.u32 %v2456, 4294901760
    %v2458 = vsub.f32 %v2456, %v2457
    %v2459 = vand.u32 %v2458, 4294901760
    %2460 = vmatmul.f32.gmra.mxu0 %v2459
    %v2461 = vpop.f32.mrf.mxu0
    %v2462 = vadd.f32 %v2421, %v2461
    %2463 = vdwg.mxu0
    %v2464 = vand.u32 %v157, 4294901760
    %v2465 = vsub.f32 %v157, %v2464
    %v2466 = vand.u32 %v2465, 4294901760
    %v2467 = vsub.f32 %v2465, %v2466
    %v2468 = vand.u32 %v2467, 4294901760
    %2469 = vmatpush.msra.mxu0 %v2468
    %v2470 = vand.u32 %v156, 4294901760
    %v2471 = vsub.f32 %v156, %v2470
    %v2472 = vand.u32 %v2471, 4294901760
    %v2473 = vsub.f32 %v2471, %v2472
    %v2474 = vand.u32 %v2473, 4294901760
    %2475 = vmatpush.msra.mxu0 %v2474
    %v2476 = vand.u32 %v155, 4294901760
    %v2477 = vsub.f32 %v155, %v2476
    %v2478 = vand.u32 %v2477, 4294901760
    %v2479 = vsub.f32 %v2477, %v2478
    %v2480 = vand.u32 %v2479, 4294901760
    %2481 = vmatpush.msra.mxu0 %v2480
    %v2482 = vand.u32 %v154, 4294901760
    %v2483 = vsub.f32 %v154, %v2482
    %v2484 = vand.u32 %v2483, 4294901760
    %v2485 = vsub.f32 %v2483, %v2484
    %v2486 = vand.u32 %v2485, 4294901760
    %2487 = vmatpush.msra.mxu0 %v2486
    %v2488 = vand.u32 %v153, 4294901760
    %v2489 = vsub.f32 %v153, %v2488
    %v2490 = vand.u32 %v2489, 4294901760
    %v2491 = vsub.f32 %v2489, %v2490
    %v2492 = vand.u32 %v2491, 4294901760
    %2493 = vmatpush.msra.mxu0 %v2492
    %v2494 = vand.u32 %v152, 4294901760
    %v2495 = vsub.f32 %v152, %v2494
    %v2496 = vand.u32 %v2495, 4294901760
    %v2497 = vsub.f32 %v2495, %v2496
    %v2498 = vand.u32 %v2497, 4294901760
    %2499 = vmatpush.msra.mxu0 %v2498
    %v2500 = vand.u32 %v151, 4294901760
    %v2501 = vsub.f32 %v151, %v2500
    %v2502 = vand.u32 %v2501, 4294901760
    %v2503 = vsub.f32 %v2501, %v2502
    %v2504 = vand.u32 %v2503, 4294901760
    %2505 = vmatpush.msra.mxu0 %v2504
    %v2506 = vand.u32 %v150, 4294901760
    %v2507 = vsub.f32 %v150, %v2506
    %v2508 = vand.u32 %v2507, 4294901760
    %v2509 = vsub.f32 %v2507, %v2508
    %v2510 = vand.u32 %v2509, 4294901760
    %2511 = vmatpush.msra.mxu0 %v2510
    %v2512 = vand.u32 %v149, 4294901760
    %v2513 = vsub.f32 %v149, %v2512
    %v2514 = vand.u32 %v2513, 4294901760
    %v2515 = vsub.f32 %v2513, %v2514
    %v2516 = vand.u32 %v2515, 4294901760
    %2517 = vmatpush.msra.mxu0 %v2516
    %v2518 = vand.u32 %v148, 4294901760
    %v2519 = vsub.f32 %v148, %v2518
    %v2520 = vand.u32 %v2519, 4294901760
    %v2521 = vsub.f32 %v2519, %v2520
    %v2522 = vand.u32 %v2521, 4294901760
    %2523 = vmatpush.msra.mxu0 %v2522
    %v2524 = vand.u32 %v147, 4294901760
    %v2525 = vsub.f32 %v147, %v2524
    %v2526 = vand.u32 %v2525, 4294901760
    %v2527 = vsub.f32 %v2525, %v2526
    %v2528 = vand.u32 %v2527, 4294901760
    %2529 = vmatpush.msra.mxu0 %v2528
    %v2530 = vand.u32 %v146, 4294901760
    %v2531 = vsub.f32 %v146, %v2530
    %v2532 = vand.u32 %v2531, 4294901760
    %v2533 = vsub.f32 %v2531, %v2532
    %v2534 = vand.u32 %v2533, 4294901760
    %2535 = vmatpush.msra.mxu0 %v2534
    %v2536 = vand.u32 %v145, 4294901760
    %v2537 = vsub.f32 %v145, %v2536
    %v2538 = vand.u32 %v2537, 4294901760
    %v2539 = vsub.f32 %v2537, %v2538
    %v2540 = vand.u32 %v2539, 4294901760
    %2541 = vmatpush.msra.mxu0 %v2540
    %v2542 = vand.u32 %v144, 4294901760
    %v2543 = vsub.f32 %v144, %v2542
    %v2544 = vand.u32 %v2543, 4294901760
    %v2545 = vsub.f32 %v2543, %v2544
    %v2546 = vand.u32 %v2545, 4294901760
    %2547 = vmatpush.msra.mxu0 %v2546
    %v2548 = vand.u32 %v143, 4294901760
    %v2549 = vsub.f32 %v143, %v2548
    %v2550 = vand.u32 %v2549, 4294901760
    %v2551 = vsub.f32 %v2549, %v2550
    %v2552 = vand.u32 %v2551, 4294901760
    %2553 = vmatpush.msra.mxu0 %v2552
    %v2554 = vand.u32 %v142, 4294901760
    %v2555 = vsub.f32 %v142, %v2554
    %v2556 = vand.u32 %v2555, 4294901760
    %v2557 = vsub.f32 %v2555, %v2556
    %v2558 = vand.u32 %v2557, 4294901760
    %2559 = vmatpush.msra.mxu0 %v2558
    %v2560 = vand.u32 %v343, 4294901760
    %2561 = vmatmul.f32.gmra.mxu0 %v2560
    %v2562 = vpop.f32.mrf.mxu0
    %v2563 = vadd.f32 %v2462, %v2562
    %2564 = vdwg.mxu0
    %v2565 = vand.u32 %v157, 4294901760
    %v2566 = vsub.f32 %v157, %v2565
    %2567 = vmatpush.msra.mxu0 %v2566
    %v2568 = vand.u32 %v156, 4294901760
    %v2569 = vsub.f32 %v156, %v2568
    %2570 = vmatpush.msra.mxu0 %v2569
    %v2571 = vand.u32 %v155, 4294901760
    %v2572 = vsub.f32 %v155, %v2571
    %2573 = vmatpush.msra.mxu0 %v2572
    %v2574 = vand.u32 %v154, 4294901760
    %v2575 = vsub.f32 %v154, %v2574
    %2576 = vmatpush.msra.mxu0 %v2575
    %v2577 = vand.u32 %v153, 4294901760
    %v2578 = vsub.f32 %v153, %v2577
    %2579 = vmatpush.msra.mxu0 %v2578
    %v2580 = vand.u32 %v152, 4294901760
    %v2581 = vsub.f32 %v152, %v2580
    %2582 = vmatpush.msra.mxu0 %v2581
    %v2583 = vand.u32 %v151, 4294901760
    %v2584 = vsub.f32 %v151, %v2583
    %2585 = vmatpush.msra.mxu0 %v2584
    %v2586 = vand.u32 %v150, 4294901760
    %v2587 = vsub.f32 %v150, %v2586
    %2588 = vmatpush.msra.mxu0 %v2587
    %v2589 = vand.u32 %v149, 4294901760
    %v2590 = vsub.f32 %v149, %v2589
    %2591 = vmatpush.msra.mxu0 %v2590
    %v2592 = vand.u32 %v148, 4294901760
    %v2593 = vsub.f32 %v148, %v2592
    %2594 = vmatpush.msra.mxu0 %v2593
    %v2595 = vand.u32 %v147, 4294901760
    %v2596 = vsub.f32 %v147, %v2595
    %2597 = vmatpush.msra.mxu0 %v2596
    %v2598 = vand.u32 %v146, 4294901760
    %v2599 = vsub.f32 %v146, %v2598
    %2600 = vmatpush.msra.mxu0 %v2599
    %v2601 = vand.u32 %v145, 4294901760
    %v2602 = vsub.f32 %v145, %v2601
    %2603 = vmatpush.msra.mxu0 %v2602
    %v2604 = vand.u32 %v144, 4294901760
    %v2605 = vsub.f32 %v144, %v2604
    %2606 = vmatpush.msra.mxu0 %v2605
    %v2607 = vand.u32 %v143, 4294901760
    %v2608 = vsub.f32 %v143, %v2607
    %2609 = vmatpush.msra.mxu0 %v2608
    %v2610 = vand.u32 %v142, 4294901760
    %v2611 = vsub.f32 %v142, %v2610
    %2612 = vmatpush.msra.mxu0 %v2611
    %v2613 = vand.u32 %v343, 4294901760
    %v2614 = vsub.f32 %v343, %v2613
    %2615 = vmatmul.f32.gmra.mxu0 %v2614
    %v2616 = vpop.f32.mrf.mxu0
    %v2617 = vadd.f32 %v2563, %v2616
    %2618 = vdwg.mxu0
    %v2619 = vand.u32 %v157, 4294901760
    %2620 = vmatpush.msra.mxu0 %v2619
    %v2621 = vand.u32 %v156, 4294901760
    %2622 = vmatpush.msra.mxu0 %v2621
    %v2623 = vand.u32 %v155, 4294901760
    %2624 = vmatpush.msra.mxu0 %v2623
    %v2625 = vand.u32 %v154, 4294901760
    %2626 = vmatpush.msra.mxu0 %v2625
    %v2627 = vand.u32 %v153, 4294901760
    %2628 = vmatpush.msra.mxu0 %v2627
    %v2629 = vand.u32 %v152, 4294901760
    %2630 = vmatpush.msra.mxu0 %v2629
    %v2631 = vand.u32 %v151, 4294901760
    %2632 = vmatpush.msra.mxu0 %v2631
    %v2633 = vand.u32 %v150, 4294901760
    %2634 = vmatpush.msra.mxu0 %v2633
    %v2635 = vand.u32 %v149, 4294901760
    %2636 = vmatpush.msra.mxu0 %v2635
    %v2637 = vand.u32 %v148, 4294901760
    %2638 = vmatpush.msra.mxu0 %v2637
    %v2639 = vand.u32 %v147, 4294901760
    %2640 = vmatpush.msra.mxu0 %v2639
    %v2641 = vand.u32 %v146, 4294901760
    %2642 = vmatpush.msra.mxu0 %v2641
    %v2643 = vand.u32 %v145, 4294901760
    %2644 = vmatpush.msra.mxu0 %v2643
    %v2645 = vand.u32 %v144, 4294901760
    %2646 = vmatpush.msra.mxu0 %v2645
    %v2647 = vand.u32 %v143, 4294901760
    %2648 = vmatpush.msra.mxu0 %v2647
    %v2649 = vand.u32 %v142, 4294901760
    %2650 = vmatpush.msra.mxu0 %v2649
    %v2651 = vand.u32 %v343, 4294901760
    %v2652 = vsub.f32 %v343, %v2651
    %v2653 = vand.u32 %v2652, 4294901760
    %2654 = vmatmul.f32.gmra.mxu0 %v2653
    %v2655 = vpop.f32.mrf.mxu0
    %v2656 = vadd.f32 %v2617, %v2655
    %2657 = vdwg.mxu0
    %v2658 = vand.u32 %v157, 4294901760
    %v2659 = vsub.f32 %v157, %v2658
    %v2660 = vand.u32 %v2659, 4294901760
    %2661 = vmatpush.msra.mxu0 %v2660
    %v2662 = vand.u32 %v156, 4294901760
    %v2663 = vsub.f32 %v156, %v2662
    %v2664 = vand.u32 %v2663, 4294901760
    %2665 = vmatpush.msra.mxu0 %v2664
    %v2666 = vand.u32 %v155, 4294901760
    %v2667 = vsub.f32 %v155, %v2666
    %v2668 = vand.u32 %v2667, 4294901760
    %2669 = vmatpush.msra.mxu0 %v2668
    %v2670 = vand.u32 %v154, 4294901760
    %v2671 = vsub.f32 %v154, %v2670
    %v2672 = vand.u32 %v2671, 4294901760
    %2673 = vmatpush.msra.mxu0 %v2672
    %v2674 = vand.u32 %v153, 4294901760
    %v2675 = vsub.f32 %v153, %v2674
    %v2676 = vand.u32 %v2675, 4294901760
    %2677 = vmatpush.msra.mxu0 %v2676
    %v2678 = vand.u32 %v152, 4294901760
    %v2679 = vsub.f32 %v152, %v2678
    %v2680 = vand.u32 %v2679, 4294901760
    %2681 = vmatpush.msra.mxu0 %v2680
    %v2682 = vand.u32 %v151, 4294901760
    %v2683 = vsub.f32 %v151, %v2682
    %v2684 = vand.u32 %v2683, 4294901760
    %2685 = vmatpush.msra.mxu0 %v2684
    %v2686 = vand.u32 %v150, 4294901760
    %v2687 = vsub.f32 %v150, %v2686
    %v2688 = vand.u32 %v2687, 4294901760
    %2689 = vmatpush.msra.mxu0 %v2688
    %v2690 = vand.u32 %v149, 4294901760
    %v2691 = vsub.f32 %v149, %v2690
    %v2692 = vand.u32 %v2691, 4294901760
    %2693 = vmatpush.msra.mxu0 %v2692
    %v2694 = vand.u32 %v148, 4294901760
    %v2695 = vsub.f32 %v148, %v2694
    %v2696 = vand.u32 %v2695, 4294901760
    %2697 = vmatpush.msra.mxu0 %v2696
    %v2698 = vand.u32 %v147, 4294901760
    %v2699 = vsub.f32 %v147, %v2698
    %v2700 = vand.u32 %v2699, 4294901760
    %2701 = vmatpush.msra.mxu0 %v2700
    %v2702 = vand.u32 %v146, 4294901760
    %v2703 = vsub.f32 %v146, %v2702
    %v2704 = vand.u32 %v2703, 4294901760
    %2705 = vmatpush.msra.mxu0 %v2704
    %v2706 = vand.u32 %v145, 4294901760
    %v2707 = vsub.f32 %v145, %v2706
    %v2708 = vand.u32 %v2707, 4294901760
    %2709 = vmatpush.msra.mxu0 %v2708
    %v2710 = vand.u32 %v144, 4294901760
    %v2711 = vsub.f32 %v144, %v2710
    %v2712 = vand.u32 %v2711, 4294901760
    %2713 = vmatpush.msra.mxu0 %v2712
    %v2714 = vand.u32 %v143, 4294901760
    %v2715 = vsub.f32 %v143, %v2714
    %v2716 = vand.u32 %v2715, 4294901760
    %2717 = vmatpush.msra.mxu0 %v2716
    %v2718 = vand.u32 %v142, 4294901760
    %v2719 = vsub.f32 %v142, %v2718
    %v2720 = vand.u32 %v2719, 4294901760
    %2721 = vmatpush.msra.mxu0 %v2720
    %v2722 = vand.u32 %v343, 4294901760
    %2723 = vmatmul.f32.gmra.mxu0 %v2722
    %v2724 = vpop.f32.mrf.mxu0
    %v2725 = vadd.f32 %v2656, %v2724
    %2726 = vdwg.mxu0
    %v2727 = vand.u32 %v157, 4294901760
    %2728 = vmatpush.msra.mxu0 %v2727
    %v2729 = vand.u32 %v156, 4294901760
    %2730 = vmatpush.msra.mxu0 %v2729
    %v2731 = vand.u32 %v155, 4294901760
    %2732 = vmatpush.msra.mxu0 %v2731
    %v2733 = vand.u32 %v154, 4294901760
    %2734 = vmatpush.msra.mxu0 %v2733
    %v2735 = vand.u32 %v153, 4294901760
    %2736 = vmatpush.msra.mxu0 %v2735
    %v2737 = vand.u32 %v152, 4294901760
    %2738 = vmatpush.msra.mxu0 %v2737
    %v2739 = vand.u32 %v151, 4294901760
    %2740 = vmatpush.msra.mxu0 %v2739
    %v2741 = vand.u32 %v150, 4294901760
    %2742 = vmatpush.msra.mxu0 %v2741
    %v2743 = vand.u32 %v149, 4294901760
    %2744 = vmatpush.msra.mxu0 %v2743
    %v2745 = vand.u32 %v148, 4294901760
    %2746 = vmatpush.msra.mxu0 %v2745
    %v2747 = vand.u32 %v147, 4294901760
    %2748 = vmatpush.msra.mxu0 %v2747
    %v2749 = vand.u32 %v146, 4294901760
    %2750 = vmatpush.msra.mxu0 %v2749
    %v2751 = vand.u32 %v145, 4294901760
    %2752 = vmatpush.msra.mxu0 %v2751
    %v2753 = vand.u32 %v144, 4294901760
    %2754 = vmatpush.msra.mxu0 %v2753
    %v2755 = vand.u32 %v143, 4294901760
    %2756 = vmatpush.msra.mxu0 %v2755
    %v2757 = vand.u32 %v142, 4294901760
    %2758 = vmatpush.msra.mxu0 %v2757
    %v2759 = vand.u32 %v343, 4294901760
    %2760 = vmatmul.f32.gmra.mxu0 %v2759
    %v2761 = vpop.f32.mrf.mxu0
    %v2762 = vadd.f32 %v2725, %v2761
    %2763 = vdwg.mxu0
    %v2764 = vand.u32 %v173, 4294901760
    %2765 = vmatpush.msra.mxu0 %v2764
    %v2766 = vand.u32 %v172, 4294901760
    %2767 = vmatpush.msra.mxu0 %v2766
    %v2768 = vand.u32 %v171, 4294901760
    %2769 = vmatpush.msra.mxu0 %v2768
    %v2770 = vand.u32 %v170, 4294901760
    %2771 = vmatpush.msra.mxu0 %v2770
    %v2772 = vand.u32 %v169, 4294901760
    %2773 = vmatpush.msra.mxu0 %v2772
    %v2774 = vand.u32 %v168, 4294901760
    %2775 = vmatpush.msra.mxu0 %v2774
    %v2776 = vand.u32 %v167, 4294901760
    %2777 = vmatpush.msra.mxu0 %v2776
    %v2778 = vand.u32 %v166, 4294901760
    %2779 = vmatpush.msra.mxu0 %v2778
    %v2780 = vand.u32 %v165, 4294901760
    %2781 = vmatpush.msra.mxu0 %v2780
    %v2782 = vand.u32 %v164, 4294901760
    %2783 = vmatpush.msra.mxu0 %v2782
    %v2784 = vand.u32 %v163, 4294901760
    %2785 = vmatpush.msra.mxu0 %v2784
    %v2786 = vand.u32 %v162, 4294901760
    %2787 = vmatpush.msra.mxu0 %v2786
    %v2788 = vand.u32 %v161, 4294901760
    %2789 = vmatpush.msra.mxu0 %v2788
    %v2790 = vand.u32 %v160, 4294901760
    %2791 = vmatpush.msra.mxu0 %v2790
    %v2792 = vand.u32 %v159, 4294901760
    %2793 = vmatpush.msra.mxu0 %v2792
    %v2794 = vand.u32 %v158, 4294901760
    %2795 = vmatpush.msra.mxu0 %v2794
    %v2796 = vand.u32 %v344, 4294901760
    %v2797 = vsub.f32 %v344, %v2796
    %v2798 = vand.u32 %v2797, 4294901760
    %v2799 = vsub.f32 %v2797, %v2798
    %v2800 = vand.u32 %v2799, 4294901760
    %2801 = vmatmul.f32.gmra.mxu0 %v2800
    %v2802 = vpop.f32.mrf.mxu0
    %v2803 = vadd.f32 %v2762, %v2802
    %2804 = vdwg.mxu0
    %v2805 = vand.u32 %v173, 4294901760
    %v2806 = vsub.f32 %v173, %v2805
    %v2807 = vand.u32 %v2806, 4294901760
    %v2808 = vsub.f32 %v2806, %v2807
    %v2809 = vand.u32 %v2808, 4294901760
    %2810 = vmatpush.msra.mxu0 %v2809
    %v2811 = vand.u32 %v172, 4294901760
    %v2812 = vsub.f32 %v172, %v2811
    %v2813 = vand.u32 %v2812, 4294901760
    %v2814 = vsub.f32 %v2812, %v2813
    %v2815 = vand.u32 %v2814, 4294901760
    %2816 = vmatpush.msra.mxu0 %v2815
    %v2817 = vand.u32 %v171, 4294901760
    %v2818 = vsub.f32 %v171, %v2817
    %v2819 = vand.u32 %v2818, 4294901760
    %v2820 = vsub.f32 %v2818, %v2819
    %v2821 = vand.u32 %v2820, 4294901760
    %2822 = vmatpush.msra.mxu0 %v2821
    %v2823 = vand.u32 %v170, 4294901760
    %v2824 = vsub.f32 %v170, %v2823
    %v2825 = vand.u32 %v2824, 4294901760
    %v2826 = vsub.f32 %v2824, %v2825
    %v2827 = vand.u32 %v2826, 4294901760
    %2828 = vmatpush.msra.mxu0 %v2827
    %v2829 = vand.u32 %v169, 4294901760
    %v2830 = vsub.f32 %v169, %v2829
    %v2831 = vand.u32 %v2830, 4294901760
    %v2832 = vsub.f32 %v2830, %v2831
    %v2833 = vand.u32 %v2832, 4294901760
    %2834 = vmatpush.msra.mxu0 %v2833
    %v2835 = vand.u32 %v168, 4294901760
    %v2836 = vsub.f32 %v168, %v2835
    %v2837 = vand.u32 %v2836, 4294901760
    %v2838 = vsub.f32 %v2836, %v2837
    %v2839 = vand.u32 %v2838, 4294901760
    %2840 = vmatpush.msra.mxu0 %v2839
    %v2841 = vand.u32 %v167, 4294901760
    %v2842 = vsub.f32 %v167, %v2841
    %v2843 = vand.u32 %v2842, 4294901760
    %v2844 = vsub.f32 %v2842, %v2843
    %v2845 = vand.u32 %v2844, 4294901760
    %2846 = vmatpush.msra.mxu0 %v2845
    %v2847 = vand.u32 %v166, 4294901760
    %v2848 = vsub.f32 %v166, %v2847
    %v2849 = vand.u32 %v2848, 4294901760
    %v2850 = vsub.f32 %v2848, %v2849
    %v2851 = vand.u32 %v2850, 4294901760
    %2852 = vmatpush.msra.mxu0 %v2851
    %v2853 = vand.u32 %v165, 4294901760
    %v2854 = vsub.f32 %v165, %v2853
    %v2855 = vand.u32 %v2854, 4294901760
    %v2856 = vsub.f32 %v2854, %v2855
    %v2857 = vand.u32 %v2856, 4294901760
    %2858 = vmatpush.msra.mxu0 %v2857
    %v2859 = vand.u32 %v164, 4294901760
    %v2860 = vsub.f32 %v164, %v2859
    %v2861 = vand.u32 %v2860, 4294901760
    %v2862 = vsub.f32 %v2860, %v2861
    %v2863 = vand.u32 %v2862, 4294901760
    %2864 = vmatpush.msra.mxu0 %v2863
    %v2865 = vand.u32 %v163, 4294901760
    %v2866 = vsub.f32 %v163, %v2865
    %v2867 = vand.u32 %v2866, 4294901760
    %v2868 = vsub.f32 %v2866, %v2867
    %v2869 = vand.u32 %v2868, 4294901760
    %2870 = vmatpush.msra.mxu0 %v2869
    %v2871 = vand.u32 %v162, 4294901760
    %v2872 = vsub.f32 %v162, %v2871
    %v2873 = vand.u32 %v2872, 4294901760
    %v2874 = vsub.f32 %v2872, %v2873
    %v2875 = vand.u32 %v2874, 4294901760
    %2876 = vmatpush.msra.mxu0 %v2875
    %v2877 = vand.u32 %v161, 4294901760
    %v2878 = vsub.f32 %v161, %v2877
    %v2879 = vand.u32 %v2878, 4294901760
    %v2880 = vsub.f32 %v2878, %v2879
    %v2881 = vand.u32 %v2880, 4294901760
    %2882 = vmatpush.msra.mxu0 %v2881
    %v2883 = vand.u32 %v160, 4294901760
    %v2884 = vsub.f32 %v160, %v2883
    %v2885 = vand.u32 %v2884, 4294901760
    %v2886 = vsub.f32 %v2884, %v2885
    %v2887 = vand.u32 %v2886, 4294901760
    %2888 = vmatpush.msra.mxu0 %v2887
    %v2889 = vand.u32 %v159, 4294901760
    %v2890 = vsub.f32 %v159, %v2889
    %v2891 = vand.u32 %v2890, 4294901760
    %v2892 = vsub.f32 %v2890, %v2891
    %v2893 = vand.u32 %v2892, 4294901760
    %2894 = vmatpush.msra.mxu0 %v2893
    %v2895 = vand.u32 %v158, 4294901760
    %v2896 = vsub.f32 %v158, %v2895
    %v2897 = vand.u32 %v2896, 4294901760
    %v2898 = vsub.f32 %v2896, %v2897
    %v2899 = vand.u32 %v2898, 4294901760
    %2900 = vmatpush.msra.mxu0 %v2899
    %v2901 = vand.u32 %v344, 4294901760
    %2902 = vmatmul.f32.gmra.mxu0 %v2901
    %v2903 = vpop.f32.mrf.mxu0
    %v2904 = vadd.f32 %v2803, %v2903
    %2905 = vdwg.mxu0
    %v2906 = vand.u32 %v173, 4294901760
    %v2907 = vsub.f32 %v173, %v2906
    %2908 = vmatpush.msra.mxu0 %v2907
    %v2909 = vand.u32 %v172, 4294901760
    %v2910 = vsub.f32 %v172, %v2909
    %2911 = vmatpush.msra.mxu0 %v2910
    %v2912 = vand.u32 %v171, 4294901760
    %v2913 = vsub.f32 %v171, %v2912
    %2914 = vmatpush.msra.mxu0 %v2913
    %v2915 = vand.u32 %v170, 4294901760
    %v2916 = vsub.f32 %v170, %v2915
    %2917 = vmatpush.msra.mxu0 %v2916
    %v2918 = vand.u32 %v169, 4294901760
    %v2919 = vsub.f32 %v169, %v2918
    %2920 = vmatpush.msra.mxu0 %v2919
    %v2921 = vand.u32 %v168, 4294901760
    %v2922 = vsub.f32 %v168, %v2921
    %2923 = vmatpush.msra.mxu0 %v2922
    %v2924 = vand.u32 %v167, 4294901760
    %v2925 = vsub.f32 %v167, %v2924
    %2926 = vmatpush.msra.mxu0 %v2925
    %v2927 = vand.u32 %v166, 4294901760
    %v2928 = vsub.f32 %v166, %v2927
    %2929 = vmatpush.msra.mxu0 %v2928
    %v2930 = vand.u32 %v165, 4294901760
    %v2931 = vsub.f32 %v165, %v2930
    %2932 = vmatpush.msra.mxu0 %v2931
    %v2933 = vand.u32 %v164, 4294901760
    %v2934 = vsub.f32 %v164, %v2933
    %2935 = vmatpush.msra.mxu0 %v2934
    %v2936 = vand.u32 %v163, 4294901760
    %v2937 = vsub.f32 %v163, %v2936
    %2938 = vmatpush.msra.mxu0 %v2937
    %v2939 = vand.u32 %v162, 4294901760
    %v2940 = vsub.f32 %v162, %v2939
    %2941 = vmatpush.msra.mxu0 %v2940
    %v2942 = vand.u32 %v161, 4294901760
    %v2943 = vsub.f32 %v161, %v2942
    %2944 = vmatpush.msra.mxu0 %v2943
    %v2945 = vand.u32 %v160, 4294901760
    %v2946 = vsub.f32 %v160, %v2945
    %2947 = vmatpush.msra.mxu0 %v2946
    %v2948 = vand.u32 %v159, 4294901760
    %v2949 = vsub.f32 %v159, %v2948
    %2950 = vmatpush.msra.mxu0 %v2949
    %v2951 = vand.u32 %v158, 4294901760
    %v2952 = vsub.f32 %v158, %v2951
    %2953 = vmatpush.msra.mxu0 %v2952
    %v2954 = vand.u32 %v344, 4294901760
    %v2955 = vsub.f32 %v344, %v2954
    %2956 = vmatmul.f32.gmra.mxu0 %v2955
    %v2957 = vpop.f32.mrf.mxu0
    %v2958 = vadd.f32 %v2904, %v2957
    %2959 = vdwg.mxu0
    %v2960 = vand.u32 %v173, 4294901760
    %2961 = vmatpush.msra.mxu0 %v2960
    %v2962 = vand.u32 %v172, 4294901760
    %2963 = vmatpush.msra.mxu0 %v2962
    %v2964 = vand.u32 %v171, 4294901760
    %2965 = vmatpush.msra.mxu0 %v2964
    %v2966 = vand.u32 %v170, 4294901760
    %2967 = vmatpush.msra.mxu0 %v2966
    %v2968 = vand.u32 %v169, 4294901760
    %2969 = vmatpush.msra.mxu0 %v2968
    %v2970 = vand.u32 %v168, 4294901760
    %2971 = vmatpush.msra.mxu0 %v2970
    %v2972 = vand.u32 %v167, 4294901760
    %2973 = vmatpush.msra.mxu0 %v2972
    %v2974 = vand.u32 %v166, 4294901760
    %2975 = vmatpush.msra.mxu0 %v2974
    %v2976 = vand.u32 %v165, 4294901760
    %2977 = vmatpush.msra.mxu0 %v2976
    %v2978 = vand.u32 %v164, 4294901760
    %2979 = vmatpush.msra.mxu0 %v2978
    %v2980 = vand.u32 %v163, 4294901760
    %2981 = vmatpush.msra.mxu0 %v2980
    %v2982 = vand.u32 %v162, 4294901760
    %2983 = vmatpush.msra.mxu0 %v2982
    %v2984 = vand.u32 %v161, 4294901760
    %2985 = vmatpush.msra.mxu0 %v2984
    %v2986 = vand.u32 %v160, 4294901760
    %2987 = vmatpush.msra.mxu0 %v2986
    %v2988 = vand.u32 %v159, 4294901760
    %2989 = vmatpush.msra.mxu0 %v2988
    %v2990 = vand.u32 %v158, 4294901760
    %2991 = vmatpush.msra.mxu0 %v2990
    %v2992 = vand.u32 %v344, 4294901760
    %v2993 = vsub.f32 %v344, %v2992
    %v2994 = vand.u32 %v2993, 4294901760
    %2995 = vmatmul.f32.gmra.mxu0 %v2994
    %v2996 = vpop.f32.mrf.mxu0
    %v2997 = vadd.f32 %v2958, %v2996
    %2998 = vdwg.mxu0
    %v2999 = vand.u32 %v173, 4294901760
    %v3000 = vsub.f32 %v173, %v2999
    %v3001 = vand.u32 %v3000, 4294901760
    %3002 = vmatpush.msra.mxu0 %v3001
    %v3003 = vand.u32 %v172, 4294901760
    %v3004 = vsub.f32 %v172, %v3003
    %v3005 = vand.u32 %v3004, 4294901760
    %3006 = vmatpush.msra.mxu0 %v3005
    %v3007 = vand.u32 %v171, 4294901760
    %v3008 = vsub.f32 %v171, %v3007
    %v3009 = vand.u32 %v3008, 4294901760
    %3010 = vmatpush.msra.mxu0 %v3009
    %v3011 = vand.u32 %v170, 4294901760
    %v3012 = vsub.f32 %v170, %v3011
    %v3013 = vand.u32 %v3012, 4294901760
    %3014 = vmatpush.msra.mxu0 %v3013
    %v3015 = vand.u32 %v169, 4294901760
    %v3016 = vsub.f32 %v169, %v3015
    %v3017 = vand.u32 %v3016, 4294901760
    %3018 = vmatpush.msra.mxu0 %v3017
    %v3019 = vand.u32 %v168, 4294901760
    %v3020 = vsub.f32 %v168, %v3019
    %v3021 = vand.u32 %v3020, 4294901760
    %3022 = vmatpush.msra.mxu0 %v3021
    %v3023 = vand.u32 %v167, 4294901760
    %v3024 = vsub.f32 %v167, %v3023
    %v3025 = vand.u32 %v3024, 4294901760
    %3026 = vmatpush.msra.mxu0 %v3025
    %v3027 = vand.u32 %v166, 4294901760
    %v3028 = vsub.f32 %v166, %v3027
    %v3029 = vand.u32 %v3028, 4294901760
    %3030 = vmatpush.msra.mxu0 %v3029
    %v3031 = vand.u32 %v165, 4294901760
    %v3032 = vsub.f32 %v165, %v3031
    %v3033 = vand.u32 %v3032, 4294901760
    %3034 = vmatpush.msra.mxu0 %v3033
    %v3035 = vand.u32 %v164, 4294901760
    %v3036 = vsub.f32 %v164, %v3035
    %v3037 = vand.u32 %v3036, 4294901760
    %3038 = vmatpush.msra.mxu0 %v3037
    %v3039 = vand.u32 %v163, 4294901760
    %v3040 = vsub.f32 %v163, %v3039
    %v3041 = vand.u32 %v3040, 4294901760
    %3042 = vmatpush.msra.mxu0 %v3041
    %v3043 = vand.u32 %v162, 4294901760
    %v3044 = vsub.f32 %v162, %v3043
    %v3045 = vand.u32 %v3044, 4294901760
    %3046 = vmatpush.msra.mxu0 %v3045
    %v3047 = vand.u32 %v161, 4294901760
    %v3048 = vsub.f32 %v161, %v3047
    %v3049 = vand.u32 %v3048, 4294901760
    %3050 = vmatpush.msra.mxu0 %v3049
    %v3051 = vand.u32 %v160, 4294901760
    %v3052 = vsub.f32 %v160, %v3051
    %v3053 = vand.u32 %v3052, 4294901760
    %3054 = vmatpush.msra.mxu0 %v3053
    %v3055 = vand.u32 %v159, 4294901760
    %v3056 = vsub.f32 %v159, %v3055
    %v3057 = vand.u32 %v3056, 4294901760
    %3058 = vmatpush.msra.mxu0 %v3057
    %v3059 = vand.u32 %v158, 4294901760
    %v3060 = vsub.f32 %v158, %v3059
    %v3061 = vand.u32 %v3060, 4294901760
    %3062 = vmatpush.msra.mxu0 %v3061
    %v3063 = vand.u32 %v344, 4294901760
    %3064 = vmatmul.f32.gmra.mxu0 %v3063
    %v3065 = vpop.f32.mrf.mxu0
    %v3066 = vadd.f32 %v2997, %v3065
    %3067 = vdwg.mxu0
    %v3068 = vand.u32 %v173, 4294901760
    %3069 = vmatpush.msra.mxu0 %v3068
    %v3070 = vand.u32 %v172, 4294901760
    %3071 = vmatpush.msra.mxu0 %v3070
    %v3072 = vand.u32 %v171, 4294901760
    %3073 = vmatpush.msra.mxu0 %v3072
    %v3074 = vand.u32 %v170, 4294901760
    %3075 = vmatpush.msra.mxu0 %v3074
    %v3076 = vand.u32 %v169, 4294901760
    %3077 = vmatpush.msra.mxu0 %v3076
    %v3078 = vand.u32 %v168, 4294901760
    %3079 = vmatpush.msra.mxu0 %v3078
    %v3080 = vand.u32 %v167, 4294901760
    %3081 = vmatpush.msra.mxu0 %v3080
    %v3082 = vand.u32 %v166, 4294901760
    %3083 = vmatpush.msra.mxu0 %v3082
    %v3084 = vand.u32 %v165, 4294901760
    %3085 = vmatpush.msra.mxu0 %v3084
    %v3086 = vand.u32 %v164, 4294901760
    %3087 = vmatpush.msra.mxu0 %v3086
    %v3088 = vand.u32 %v163, 4294901760
    %3089 = vmatpush.msra.mxu0 %v3088
    %v3090 = vand.u32 %v162, 4294901760
    %3091 = vmatpush.msra.mxu0 %v3090
    %v3092 = vand.u32 %v161, 4294901760
    %3093 = vmatpush.msra.mxu0 %v3092
    %v3094 = vand.u32 %v160, 4294901760
    %3095 = vmatpush.msra.mxu0 %v3094
    %v3096 = vand.u32 %v159, 4294901760
    %3097 = vmatpush.msra.mxu0 %v3096
    %v3098 = vand.u32 %v158, 4294901760
    %3099 = vmatpush.msra.mxu0 %v3098
    %v3100 = vand.u32 %v344, 4294901760
    %3101 = vmatmul.f32.gmra.mxu0 %v3100
    %v3102 = vpop.f32.mrf.mxu0
    %v3103 = vadd.f32 %v3066, %v3102
    %3104 = vdwg.mxu0
    %v3105 = vand.u32 %v189, 4294901760
    %3106 = vmatpush.msra.mxu0 %v3105
    %v3107 = vand.u32 %v188, 4294901760
    %3108 = vmatpush.msra.mxu0 %v3107
    %v3109 = vand.u32 %v187, 4294901760
    %3110 = vmatpush.msra.mxu0 %v3109
    %v3111 = vand.u32 %v186, 4294901760
    %3112 = vmatpush.msra.mxu0 %v3111
    %v3113 = vand.u32 %v185, 4294901760
    %3114 = vmatpush.msra.mxu0 %v3113
    %v3115 = vand.u32 %v184, 4294901760
    %3116 = vmatpush.msra.mxu0 %v3115
    %v3117 = vand.u32 %v183, 4294901760
    %3118 = vmatpush.msra.mxu0 %v3117
    %v3119 = vand.u32 %v182, 4294901760
    %3120 = vmatpush.msra.mxu0 %v3119
    %v3121 = vand.u32 %v181, 4294901760
    %3122 = vmatpush.msra.mxu0 %v3121
    %v3123 = vand.u32 %v180, 4294901760
    %3124 = vmatpush.msra.mxu0 %v3123
    %v3125 = vand.u32 %v179, 4294901760
    %3126 = vmatpush.msra.mxu0 %v3125
    %v3127 = vand.u32 %v178, 4294901760
    %3128 = vmatpush.msra.mxu0 %v3127
    %v3129 = vand.u32 %v177, 4294901760
    %3130 = vmatpush.msra.mxu0 %v3129
    %v3131 = vand.u32 %v176, 4294901760
    %3132 = vmatpush.msra.mxu0 %v3131
    %v3133 = vand.u32 %v175, 4294901760
    %3134 = vmatpush.msra.mxu0 %v3133
    %v3135 = vand.u32 %v174, 4294901760
    %3136 = vmatpush.msra.mxu0 %v3135
    %v3137 = vand.u32 %v353, 4294901760
    %v3138 = vsub.f32 %v353, %v3137
    %v3139 = vand.u32 %v3138, 4294901760
    %v3140 = vsub.f32 %v3138, %v3139
    %v3141 = vand.u32 %v3140, 4294901760
    %3142 = vmatmul.f32.gmra.mxu0 %v3141
    %v3143 = vpop.f32.mrf.mxu0
    %v3144 = vadd.f32 %v3103, %v3143
    %3145 = vdwg.mxu0
    %v3146 = vand.u32 %v189, 4294901760
    %v3147 = vsub.f32 %v189, %v3146
    %v3148 = vand.u32 %v3147, 4294901760
    %v3149 = vsub.f32 %v3147, %v3148
    %v3150 = vand.u32 %v3149, 4294901760
    %3151 = vmatpush.msra.mxu0 %v3150
    %v3152 = vand.u32 %v188, 4294901760
    %v3153 = vsub.f32 %v188, %v3152
    %v3154 = vand.u32 %v3153, 4294901760
    %v3155 = vsub.f32 %v3153, %v3154
    %v3156 = vand.u32 %v3155, 4294901760
    %3157 = vmatpush.msra.mxu0 %v3156
    %v3158 = vand.u32 %v187, 4294901760
    %v3159 = vsub.f32 %v187, %v3158
    %v3160 = vand.u32 %v3159, 4294901760
    %v3161 = vsub.f32 %v3159, %v3160
    %v3162 = vand.u32 %v3161, 4294901760
    %3163 = vmatpush.msra.mxu0 %v3162
    %v3164 = vand.u32 %v186, 4294901760
    %v3165 = vsub.f32 %v186, %v3164
    %v3166 = vand.u32 %v3165, 4294901760
    %v3167 = vsub.f32 %v3165, %v3166
    %v3168 = vand.u32 %v3167, 4294901760
    %3169 = vmatpush.msra.mxu0 %v3168
    %v3170 = vand.u32 %v185, 4294901760
    %v3171 = vsub.f32 %v185, %v3170
    %v3172 = vand.u32 %v3171, 4294901760
    %v3173 = vsub.f32 %v3171, %v3172
    %v3174 = vand.u32 %v3173, 4294901760
    %3175 = vmatpush.msra.mxu0 %v3174
    %v3176 = vand.u32 %v184, 4294901760
    %v3177 = vsub.f32 %v184, %v3176
    %v3178 = vand.u32 %v3177, 4294901760
    %v3179 = vsub.f32 %v3177, %v3178
    %v3180 = vand.u32 %v3179, 4294901760
    %3181 = vmatpush.msra.mxu0 %v3180
    %v3182 = vand.u32 %v183, 4294901760
    %v3183 = vsub.f32 %v183, %v3182
    %v3184 = vand.u32 %v3183, 4294901760
    %v3185 = vsub.f32 %v3183, %v3184
    %v3186 = vand.u32 %v3185, 4294901760
    %3187 = vmatpush.msra.mxu0 %v3186
    %v3188 = vand.u32 %v182, 4294901760
    %v3189 = vsub.f32 %v182, %v3188
    %v3190 = vand.u32 %v3189, 4294901760
    %v3191 = vsub.f32 %v3189, %v3190
    %v3192 = vand.u32 %v3191, 4294901760
    %3193 = vmatpush.msra.mxu0 %v3192
    %v3194 = vand.u32 %v181, 4294901760
    %v3195 = vsub.f32 %v181, %v3194
    %v3196 = vand.u32 %v3195, 4294901760
    %v3197 = vsub.f32 %v3195, %v3196
    %v3198 = vand.u32 %v3197, 4294901760
    %3199 = vmatpush.msra.mxu0 %v3198
    %v3200 = vand.u32 %v180, 4294901760
    %v3201 = vsub.f32 %v180, %v3200
    %v3202 = vand.u32 %v3201, 4294901760
    %v3203 = vsub.f32 %v3201, %v3202
    %v3204 = vand.u32 %v3203, 4294901760
    %3205 = vmatpush.msra.mxu0 %v3204
    %v3206 = vand.u32 %v179, 4294901760
    %v3207 = vsub.f32 %v179, %v3206
    %v3208 = vand.u32 %v3207, 4294901760
    %v3209 = vsub.f32 %v3207, %v3208
    %v3210 = vand.u32 %v3209, 4294901760
    %3211 = vmatpush.msra.mxu0 %v3210
    %v3212 = vand.u32 %v178, 4294901760
    %v3213 = vsub.f32 %v178, %v3212
    %v3214 = vand.u32 %v3213, 4294901760
    %v3215 = vsub.f32 %v3213, %v3214
    %v3216 = vand.u32 %v3215, 4294901760
    %3217 = vmatpush.msra.mxu0 %v3216
    %v3218 = vand.u32 %v177, 4294901760
    %v3219 = vsub.f32 %v177, %v3218
    %v3220 = vand.u32 %v3219, 4294901760
    %v3221 = vsub.f32 %v3219, %v3220
    %v3222 = vand.u32 %v3221, 4294901760
    %3223 = vmatpush.msra.mxu0 %v3222
    %v3224 = vand.u32 %v176, 4294901760
    %v3225 = vsub.f32 %v176, %v3224
    %v3226 = vand.u32 %v3225, 4294901760
    %v3227 = vsub.f32 %v3225, %v3226
    %v3228 = vand.u32 %v3227, 4294901760
    %3229 = vmatpush.msra.mxu0 %v3228
    %v3230 = vand.u32 %v175, 4294901760
    %v3231 = vsub.f32 %v175, %v3230
    %v3232 = vand.u32 %v3231, 4294901760
    %v3233 = vsub.f32 %v3231, %v3232
    %v3234 = vand.u32 %v3233, 4294901760
    %3235 = vmatpush.msra.mxu0 %v3234
    %v3236 = vand.u32 %v174, 4294901760
    %v3237 = vsub.f32 %v174, %v3236
    %v3238 = vand.u32 %v3237, 4294901760
    %v3239 = vsub.f32 %v3237, %v3238
    %v3240 = vand.u32 %v3239, 4294901760
    %3241 = vmatpush.msra.mxu0 %v3240
    %v3242 = vand.u32 %v353, 4294901760
    %3243 = vmatmul.f32.gmra.mxu0 %v3242
    %v3244 = vpop.f32.mrf.mxu0
    %v3245 = vadd.f32 %v3144, %v3244
    %3246 = vdwg.mxu0
    %v3247 = vand.u32 %v189, 4294901760
    %v3248 = vsub.f32 %v189, %v3247
    %3249 = vmatpush.msra.mxu0 %v3248
    %v3250 = vand.u32 %v188, 4294901760
    %v3251 = vsub.f32 %v188, %v3250
    %3252 = vmatpush.msra.mxu0 %v3251
    %v3253 = vand.u32 %v187, 4294901760
    %v3254 = vsub.f32 %v187, %v3253
    %3255 = vmatpush.msra.mxu0 %v3254
    %v3256 = vand.u32 %v186, 4294901760
    %v3257 = vsub.f32 %v186, %v3256
    %3258 = vmatpush.msra.mxu0 %v3257
    %v3259 = vand.u32 %v185, 4294901760
    %v3260 = vsub.f32 %v185, %v3259
    %3261 = vmatpush.msra.mxu0 %v3260
    %v3262 = vand.u32 %v184, 4294901760
    %v3263 = vsub.f32 %v184, %v3262
    %3264 = vmatpush.msra.mxu0 %v3263
    %v3265 = vand.u32 %v183, 4294901760
    %v3266 = vsub.f32 %v183, %v3265
    %3267 = vmatpush.msra.mxu0 %v3266
    %v3268 = vand.u32 %v182, 4294901760
    %v3269 = vsub.f32 %v182, %v3268
    %3270 = vmatpush.msra.mxu0 %v3269
    %v3271 = vand.u32 %v181, 4294901760
    %v3272 = vsub.f32 %v181, %v3271
    %3273 = vmatpush.msra.mxu0 %v3272
    %v3274 = vand.u32 %v180, 4294901760
    %v3275 = vsub.f32 %v180, %v3274
    %3276 = vmatpush.msra.mxu0 %v3275
    %v3277 = vand.u32 %v179, 4294901760
    %v3278 = vsub.f32 %v179, %v3277
    %3279 = vmatpush.msra.mxu0 %v3278
    %v3280 = vand.u32 %v178, 4294901760
    %v3281 = vsub.f32 %v178, %v3280
    %3282 = vmatpush.msra.mxu0 %v3281
    %v3283 = vand.u32 %v177, 4294901760
    %v3284 = vsub.f32 %v177, %v3283
    %3285 = vmatpush.msra.mxu0 %v3284
    %v3286 = vand.u32 %v176, 4294901760
    %v3287 = vsub.f32 %v176, %v3286
    %3288 = vmatpush.msra.mxu0 %v3287
    %v3289 = vand.u32 %v175, 4294901760
    %v3290 = vsub.f32 %v175, %v3289
    %3291 = vmatpush.msra.mxu0 %v3290
    %v3292 = vand.u32 %v174, 4294901760
    %v3293 = vsub.f32 %v174, %v3292
    %3294 = vmatpush.msra.mxu0 %v3293
    %v3295 = vand.u32 %v353, 4294901760
    %v3296 = vsub.f32 %v353, %v3295
    %3297 = vmatmul.f32.gmra.mxu0 %v3296
    %v3298 = vpop.f32.mrf.mxu0
    %v3299 = vadd.f32 %v3245, %v3298
    %3300 = vdwg.mxu0
    %v3301 = vand.u32 %v189, 4294901760
    %3302 = vmatpush.msra.mxu0 %v3301
    %v3303 = vand.u32 %v188, 4294901760
    %3304 = vmatpush.msra.mxu0 %v3303
    %v3305 = vand.u32 %v187, 4294901760
    %3306 = vmatpush.msra.mxu0 %v3305
    %v3307 = vand.u32 %v186, 4294901760
    %3308 = vmatpush.msra.mxu0 %v3307
    %v3309 = vand.u32 %v185, 4294901760
    %3310 = vmatpush.msra.mxu0 %v3309
    %v3311 = vand.u32 %v184, 4294901760
    %3312 = vmatpush.msra.mxu0 %v3311
    %v3313 = vand.u32 %v183, 4294901760
    %3314 = vmatpush.msra.mxu0 %v3313
    %v3315 = vand.u32 %v182, 4294901760
    %3316 = vmatpush.msra.mxu0 %v3315
    %v3317 = vand.u32 %v181, 4294901760
    %3318 = vmatpush.msra.mxu0 %v3317
    %v3319 = vand.u32 %v180, 4294901760
    %3320 = vmatpush.msra.mxu0 %v3319
    %v3321 = vand.u32 %v179, 4294901760
    %3322 = vmatpush.msra.mxu0 %v3321
    %v3323 = vand.u32 %v178, 4294901760
    %3324 = vmatpush.msra.mxu0 %v3323
    %v3325 = vand.u32 %v177, 4294901760
    %3326 = vmatpush.msra.mxu0 %v3325
    %v3327 = vand.u32 %v176, 4294901760
    %3328 = vmatpush.msra.mxu0 %v3327
    %v3329 = vand.u32 %v175, 4294901760
    %3330 = vmatpush.msra.mxu0 %v3329
    %v3331 = vand.u32 %v174, 4294901760
    %3332 = vmatpush.msra.mxu0 %v3331
    %v3333 = vand.u32 %v353, 4294901760
    %v3334 = vsub.f32 %v353, %v3333
    %v3335 = vand.u32 %v3334, 4294901760
    %3336 = vmatmul.f32.gmra.mxu0 %v3335
    %v3337 = vpop.f32.mrf.mxu0
    %v3338 = vadd.f32 %v3299, %v3337
    %3339 = vdwg.mxu0
    %v3340 = vand.u32 %v189, 4294901760
    %v3341 = vsub.f32 %v189, %v3340
    %v3342 = vand.u32 %v3341, 4294901760
    %3343 = vmatpush.msra.mxu0 %v3342
    %v3344 = vand.u32 %v188, 4294901760
    %v3345 = vsub.f32 %v188, %v3344
    %v3346 = vand.u32 %v3345, 4294901760
    %3347 = vmatpush.msra.mxu0 %v3346
    %v3348 = vand.u32 %v187, 4294901760
    %v3349 = vsub.f32 %v187, %v3348
    %v3350 = vand.u32 %v3349, 4294901760
    %3351 = vmatpush.msra.mxu0 %v3350
    %v3352 = vand.u32 %v186, 4294901760
    %v3353 = vsub.f32 %v186, %v3352
    %v3354 = vand.u32 %v3353, 4294901760
    %3355 = vmatpush.msra.mxu0 %v3354
    %v3356 = vand.u32 %v185, 4294901760
    %v3357 = vsub.f32 %v185, %v3356
    %v3358 = vand.u32 %v3357, 4294901760
    %3359 = vmatpush.msra.mxu0 %v3358
    %v3360 = vand.u32 %v184, 4294901760
    %v3361 = vsub.f32 %v184, %v3360
    %v3362 = vand.u32 %v3361, 4294901760
    %3363 = vmatpush.msra.mxu0 %v3362
    %v3364 = vand.u32 %v183, 4294901760
    %v3365 = vsub.f32 %v183, %v3364
    %v3366 = vand.u32 %v3365, 4294901760
    %3367 = vmatpush.msra.mxu0 %v3366
    %v3368 = vand.u32 %v182, 4294901760
    %v3369 = vsub.f32 %v182, %v3368
    %v3370 = vand.u32 %v3369, 4294901760
    %3371 = vmatpush.msra.mxu0 %v3370
    %v3372 = vand.u32 %v181, 4294901760
    %v3373 = vsub.f32 %v181, %v3372
    %v3374 = vand.u32 %v3373, 4294901760
    %3375 = vmatpush.msra.mxu0 %v3374
    %v3376 = vand.u32 %v180, 4294901760
    %v3377 = vsub.f32 %v180, %v3376
    %v3378 = vand.u32 %v3377, 4294901760
    %3379 = vmatpush.msra.mxu0 %v3378
    %v3380 = vand.u32 %v179, 4294901760
    %v3381 = vsub.f32 %v179, %v3380
    %v3382 = vand.u32 %v3381, 4294901760
    %3383 = vmatpush.msra.mxu0 %v3382
    %v3384 = vand.u32 %v178, 4294901760
    %v3385 = vsub.f32 %v178, %v3384
    %v3386 = vand.u32 %v3385, 4294901760
    %3387 = vmatpush.msra.mxu0 %v3386
    %v3388 = vand.u32 %v177, 4294901760
    %v3389 = vsub.f32 %v177, %v3388
    %v3390 = vand.u32 %v3389, 4294901760
    %3391 = vmatpush.msra.mxu0 %v3390
    %v3392 = vand.u32 %v176, 4294901760
    %v3393 = vsub.f32 %v176, %v3392
    %v3394 = vand.u32 %v3393, 4294901760
    %3395 = vmatpush.msra.mxu0 %v3394
    %v3396 = vand.u32 %v175, 4294901760
    %v3397 = vsub.f32 %v175, %v3396
    %v3398 = vand.u32 %v3397, 4294901760
    %3399 = vmatpush.msra.mxu0 %v3398
    %v3400 = vand.u32 %v174, 4294901760
    %v3401 = vsub.f32 %v174, %v3400
    %v3402 = vand.u32 %v3401, 4294901760
    %3403 = vmatpush.msra.mxu0 %v3402
    %v3404 = vand.u32 %v353, 4294901760
    %3405 = vmatmul.f32.gmra.mxu0 %v3404
    %v3406 = vpop.f32.mrf.mxu0
    %v3407 = vadd.f32 %v3338, %v3406
    %3408 = vdwg.mxu0
    %v3409 = vand.u32 %v189, 4294901760
    %3410 = vmatpush.msra.mxu0 %v3409
    %v3411 = vand.u32 %v188, 4294901760
    %3412 = vmatpush.msra.mxu0 %v3411
    %v3413 = vand.u32 %v187, 4294901760
    %3414 = vmatpush.msra.mxu0 %v3413
    %v3415 = vand.u32 %v186, 4294901760
    %3416 = vmatpush.msra.mxu0 %v3415
    %v3417 = vand.u32 %v185, 4294901760
    %3418 = vmatpush.msra.mxu0 %v3417
    %v3419 = vand.u32 %v184, 4294901760
    %3420 = vmatpush.msra.mxu0 %v3419
    %v3421 = vand.u32 %v183, 4294901760
    %3422 = vmatpush.msra.mxu0 %v3421
    %v3423 = vand.u32 %v182, 4294901760
    %3424 = vmatpush.msra.mxu0 %v3423
    %v3425 = vand.u32 %v181, 4294901760
    %3426 = vmatpush.msra.mxu0 %v3425
    %v3427 = vand.u32 %v180, 4294901760
    %3428 = vmatpush.msra.mxu0 %v3427
    %v3429 = vand.u32 %v179, 4294901760
    %3430 = vmatpush.msra.mxu0 %v3429
    %v3431 = vand.u32 %v178, 4294901760
    %3432 = vmatpush.msra.mxu0 %v3431
    %v3433 = vand.u32 %v177, 4294901760
    %3434 = vmatpush.msra.mxu0 %v3433
    %v3435 = vand.u32 %v176, 4294901760
    %3436 = vmatpush.msra.mxu0 %v3435
    %v3437 = vand.u32 %v175, 4294901760
    %3438 = vmatpush.msra.mxu0 %v3437
    %v3439 = vand.u32 %v174, 4294901760
    %3440 = vmatpush.msra.mxu0 %v3439
    %v3441 = vand.u32 %v353, 4294901760
    %3442 = vmatmul.f32.gmra.mxu0 %v3441
    %v3443 = vpop.f32.mrf.mxu0
    %v3444 = vadd.f32 %v3407, %v3443
    %3445 = vdwg.mxu0
    %v3446 = vand.u32 %v205, 4294901760
    %3447 = vmatpush.msra.mxu0 %v3446
    %v3448 = vand.u32 %v204, 4294901760
    %3449 = vmatpush.msra.mxu0 %v3448
    %v3450 = vand.u32 %v203, 4294901760
    %3451 = vmatpush.msra.mxu0 %v3450
    %v3452 = vand.u32 %v202, 4294901760
    %3453 = vmatpush.msra.mxu0 %v3452
    %v3454 = vand.u32 %v201, 4294901760
    %3455 = vmatpush.msra.mxu0 %v3454
    %v3456 = vand.u32 %v200, 4294901760
    %3457 = vmatpush.msra.mxu0 %v3456
    %v3458 = vand.u32 %v199, 4294901760
    %3459 = vmatpush.msra.mxu0 %v3458
    %v3460 = vand.u32 %v198, 4294901760
    %3461 = vmatpush.msra.mxu0 %v3460
    %v3462 = vand.u32 %v197, 4294901760
    %3463 = vmatpush.msra.mxu0 %v3462
    %v3464 = vand.u32 %v196, 4294901760
    %3465 = vmatpush.msra.mxu0 %v3464
    %v3466 = vand.u32 %v195, 4294901760
    %3467 = vmatpush.msra.mxu0 %v3466
    %v3468 = vand.u32 %v194, 4294901760
    %3469 = vmatpush.msra.mxu0 %v3468
    %v3470 = vand.u32 %v193, 4294901760
    %3471 = vmatpush.msra.mxu0 %v3470
    %v3472 = vand.u32 %v192, 4294901760
    %3473 = vmatpush.msra.mxu0 %v3472
    %v3474 = vand.u32 %v191, 4294901760
    %3475 = vmatpush.msra.mxu0 %v3474
    %v3476 = vand.u32 %v190, 4294901760
    %3477 = vmatpush.msra.mxu0 %v3476
    %v3478 = vand.u32 %v354, 4294901760
    %v3479 = vsub.f32 %v354, %v3478
    %v3480 = vand.u32 %v3479, 4294901760
    %v3481 = vsub.f32 %v3479, %v3480
    %v3482 = vand.u32 %v3481, 4294901760
    %3483 = vmatmul.f32.gmra.mxu0 %v3482
    %v3484 = vpop.f32.mrf.mxu0
    %v3485 = vadd.f32 %v3444, %v3484
    %3486 = vdwg.mxu0
    %v3487 = vand.u32 %v205, 4294901760
    %v3488 = vsub.f32 %v205, %v3487
    %v3489 = vand.u32 %v3488, 4294901760
    %v3490 = vsub.f32 %v3488, %v3489
    %v3491 = vand.u32 %v3490, 4294901760
    %3492 = vmatpush.msra.mxu0 %v3491
    %v3493 = vand.u32 %v204, 4294901760
    %v3494 = vsub.f32 %v204, %v3493
    %v3495 = vand.u32 %v3494, 4294901760
    %v3496 = vsub.f32 %v3494, %v3495
    %v3497 = vand.u32 %v3496, 4294901760
    %3498 = vmatpush.msra.mxu0 %v3497
    %v3499 = vand.u32 %v203, 4294901760
    %v3500 = vsub.f32 %v203, %v3499
    %v3501 = vand.u32 %v3500, 4294901760
    %v3502 = vsub.f32 %v3500, %v3501
    %v3503 = vand.u32 %v3502, 4294901760
    %3504 = vmatpush.msra.mxu0 %v3503
    %v3505 = vand.u32 %v202, 4294901760
    %v3506 = vsub.f32 %v202, %v3505
    %v3507 = vand.u32 %v3506, 4294901760
    %v3508 = vsub.f32 %v3506, %v3507
    %v3509 = vand.u32 %v3508, 4294901760
    %3510 = vmatpush.msra.mxu0 %v3509
    %v3511 = vand.u32 %v201, 4294901760
    %v3512 = vsub.f32 %v201, %v3511
    %v3513 = vand.u32 %v3512, 4294901760
    %v3514 = vsub.f32 %v3512, %v3513
    %v3515 = vand.u32 %v3514, 4294901760
    %3516 = vmatpush.msra.mxu0 %v3515
    %v3517 = vand.u32 %v200, 4294901760
    %v3518 = vsub.f32 %v200, %v3517
    %v3519 = vand.u32 %v3518, 4294901760
    %v3520 = vsub.f32 %v3518, %v3519
    %v3521 = vand.u32 %v3520, 4294901760
    %3522 = vmatpush.msra.mxu0 %v3521
    %v3523 = vand.u32 %v199, 4294901760
    %v3524 = vsub.f32 %v199, %v3523
    %v3525 = vand.u32 %v3524, 4294901760
    %v3526 = vsub.f32 %v3524, %v3525
    %v3527 = vand.u32 %v3526, 4294901760
    %3528 = vmatpush.msra.mxu0 %v3527
    %v3529 = vand.u32 %v198, 4294901760
    %v3530 = vsub.f32 %v198, %v3529
    %v3531 = vand.u32 %v3530, 4294901760
    %v3532 = vsub.f32 %v3530, %v3531
    %v3533 = vand.u32 %v3532, 4294901760
    %3534 = vmatpush.msra.mxu0 %v3533
    %v3535 = vand.u32 %v197, 4294901760
    %v3536 = vsub.f32 %v197, %v3535
    %v3537 = vand.u32 %v3536, 4294901760
    %v3538 = vsub.f32 %v3536, %v3537
    %v3539 = vand.u32 %v3538, 4294901760
    %3540 = vmatpush.msra.mxu0 %v3539
    %v3541 = vand.u32 %v196, 4294901760
    %v3542 = vsub.f32 %v196, %v3541
    %v3543 = vand.u32 %v3542, 4294901760
    %v3544 = vsub.f32 %v3542, %v3543
    %v3545 = vand.u32 %v3544, 4294901760
    %3546 = vmatpush.msra.mxu0 %v3545
    %v3547 = vand.u32 %v195, 4294901760
    %v3548 = vsub.f32 %v195, %v3547
    %v3549 = vand.u32 %v3548, 4294901760
    %v3550 = vsub.f32 %v3548, %v3549
    %v3551 = vand.u32 %v3550, 4294901760
    %3552 = vmatpush.msra.mxu0 %v3551
    %v3553 = vand.u32 %v194, 4294901760
    %v3554 = vsub.f32 %v194, %v3553
    %v3555 = vand.u32 %v3554, 4294901760
    %v3556 = vsub.f32 %v3554, %v3555
    %v3557 = vand.u32 %v3556, 4294901760
    %3558 = vmatpush.msra.mxu0 %v3557
    %v3559 = vand.u32 %v193, 4294901760
    %v3560 = vsub.f32 %v193, %v3559
    %v3561 = vand.u32 %v3560, 4294901760
    %v3562 = vsub.f32 %v3560, %v3561
    %v3563 = vand.u32 %v3562, 4294901760
    %3564 = vmatpush.msra.mxu0 %v3563
    %v3565 = vand.u32 %v192, 4294901760
    %v3566 = vsub.f32 %v192, %v3565
    %v3567 = vand.u32 %v3566, 4294901760
    %v3568 = vsub.f32 %v3566, %v3567
    %v3569 = vand.u32 %v3568, 4294901760
    %3570 = vmatpush.msra.mxu0 %v3569
    %v3571 = vand.u32 %v191, 4294901760
    %v3572 = vsub.f32 %v191, %v3571
    %v3573 = vand.u32 %v3572, 4294901760
    %v3574 = vsub.f32 %v3572, %v3573
    %v3575 = vand.u32 %v3574, 4294901760
    %3576 = vmatpush.msra.mxu0 %v3575
    %v3577 = vand.u32 %v190, 4294901760
    %v3578 = vsub.f32 %v190, %v3577
    %v3579 = vand.u32 %v3578, 4294901760
    %v3580 = vsub.f32 %v3578, %v3579
    %v3581 = vand.u32 %v3580, 4294901760
    %3582 = vmatpush.msra.mxu0 %v3581
    %v3583 = vand.u32 %v354, 4294901760
    %3584 = vmatmul.f32.gmra.mxu0 %v3583
    %v3585 = vpop.f32.mrf.mxu0
    %v3586 = vadd.f32 %v3485, %v3585
    %3587 = vdwg.mxu0
    %v3588 = vand.u32 %v205, 4294901760
    %v3589 = vsub.f32 %v205, %v3588
    %3590 = vmatpush.msra.mxu0 %v3589
    %v3591 = vand.u32 %v204, 4294901760
    %v3592 = vsub.f32 %v204, %v3591
    %3593 = vmatpush.msra.mxu0 %v3592
    %v3594 = vand.u32 %v203, 4294901760
    %v3595 = vsub.f32 %v203, %v3594
    %3596 = vmatpush.msra.mxu0 %v3595
    %v3597 = vand.u32 %v202, 4294901760
    %v3598 = vsub.f32 %v202, %v3597
    %3599 = vmatpush.msra.mxu0 %v3598
    %v3600 = vand.u32 %v201, 4294901760
    %v3601 = vsub.f32 %v201, %v3600
    %3602 = vmatpush.msra.mxu0 %v3601
    %v3603 = vand.u32 %v200, 4294901760
    %v3604 = vsub.f32 %v200, %v3603
    %3605 = vmatpush.msra.mxu0 %v3604
    %v3606 = vand.u32 %v199, 4294901760
    %v3607 = vsub.f32 %v199, %v3606
    %3608 = vmatpush.msra.mxu0 %v3607
    %v3609 = vand.u32 %v198, 4294901760
    %v3610 = vsub.f32 %v198, %v3609
    %3611 = vmatpush.msra.mxu0 %v3610
    %v3612 = vand.u32 %v197, 4294901760
    %v3613 = vsub.f32 %v197, %v3612
    %3614 = vmatpush.msra.mxu0 %v3613
    %v3615 = vand.u32 %v196, 4294901760
    %v3616 = vsub.f32 %v196, %v3615
    %3617 = vmatpush.msra.mxu0 %v3616
    %v3618 = vand.u32 %v195, 4294901760
    %v3619 = vsub.f32 %v195, %v3618
    %3620 = vmatpush.msra.mxu0 %v3619
    %v3621 = vand.u32 %v194, 4294901760
    %v3622 = vsub.f32 %v194, %v3621
    %3623 = vmatpush.msra.mxu0 %v3622
    %v3624 = vand.u32 %v193, 4294901760
    %v3625 = vsub.f32 %v193, %v3624
    %3626 = vmatpush.msra.mxu0 %v3625
    %v3627 = vand.u32 %v192, 4294901760
    %v3628 = vsub.f32 %v192, %v3627
    %3629 = vmatpush.msra.mxu0 %v3628
    %v3630 = vand.u32 %v191, 4294901760
    %v3631 = vsub.f32 %v191, %v3630
    %3632 = vmatpush.msra.mxu0 %v3631
    %v3633 = vand.u32 %v190, 4294901760
    %v3634 = vsub.f32 %v190, %v3633
    %3635 = vmatpush.msra.mxu0 %v3634
    %v3636 = vand.u32 %v354, 4294901760
    %v3637 = vsub.f32 %v354, %v3636
    %3638 = vmatmul.f32.gmra.mxu0 %v3637
    %v3639 = vpop.f32.mrf.mxu0
    %v3640 = vadd.f32 %v3586, %v3639
    %3641 = vdwg.mxu0
    %v3642 = vand.u32 %v205, 4294901760
    %3643 = vmatpush.msra.mxu0 %v3642
    %v3644 = vand.u32 %v204, 4294901760
    %3645 = vmatpush.msra.mxu0 %v3644
    %v3646 = vand.u32 %v203, 4294901760
    %3647 = vmatpush.msra.mxu0 %v3646
    %v3648 = vand.u32 %v202, 4294901760
    %3649 = vmatpush.msra.mxu0 %v3648
    %v3650 = vand.u32 %v201, 4294901760
    %3651 = vmatpush.msra.mxu0 %v3650
    %v3652 = vand.u32 %v200, 4294901760
    %3653 = vmatpush.msra.mxu0 %v3652
    %v3654 = vand.u32 %v199, 4294901760
    %3655 = vmatpush.msra.mxu0 %v3654
    %v3656 = vand.u32 %v198, 4294901760
    %3657 = vmatpush.msra.mxu0 %v3656
    %v3658 = vand.u32 %v197, 4294901760
    %3659 = vmatpush.msra.mxu0 %v3658
    %v3660 = vand.u32 %v196, 4294901760
    %3661 = vmatpush.msra.mxu0 %v3660
    %v3662 = vand.u32 %v195, 4294901760
    %3663 = vmatpush.msra.mxu0 %v3662
    %v3664 = vand.u32 %v194, 4294901760
    %3665 = vmatpush.msra.mxu0 %v3664
    %v3666 = vand.u32 %v193, 4294901760
    %3667 = vmatpush.msra.mxu0 %v3666
    %v3668 = vand.u32 %v192, 4294901760
    %3669 = vmatpush.msra.mxu0 %v3668
    %v3670 = vand.u32 %v191, 4294901760
    %3671 = vmatpush.msra.mxu0 %v3670
    %v3672 = vand.u32 %v190, 4294901760
    %3673 = vmatpush.msra.mxu0 %v3672
    %v3674 = vand.u32 %v354, 4294901760
    %v3675 = vsub.f32 %v354, %v3674
    %v3676 = vand.u32 %v3675, 4294901760
    %3677 = vmatmul.f32.gmra.mxu0 %v3676
    %v3678 = vpop.f32.mrf.mxu0
    %v3679 = vadd.f32 %v3640, %v3678
    %3680 = vdwg.mxu0
    %v3681 = vand.u32 %v205, 4294901760
    %v3682 = vsub.f32 %v205, %v3681
    %v3683 = vand.u32 %v3682, 4294901760
    %3684 = vmatpush.msra.mxu0 %v3683
    %v3685 = vand.u32 %v204, 4294901760
    %v3686 = vsub.f32 %v204, %v3685
    %v3687 = vand.u32 %v3686, 4294901760
    %3688 = vmatpush.msra.mxu0 %v3687
    %v3689 = vand.u32 %v203, 4294901760
    %v3690 = vsub.f32 %v203, %v3689
    %v3691 = vand.u32 %v3690, 4294901760
    %3692 = vmatpush.msra.mxu0 %v3691
    %v3693 = vand.u32 %v202, 4294901760
    %v3694 = vsub.f32 %v202, %v3693
    %v3695 = vand.u32 %v3694, 4294901760
    %3696 = vmatpush.msra.mxu0 %v3695
    %v3697 = vand.u32 %v201, 4294901760
    %v3698 = vsub.f32 %v201, %v3697
    %v3699 = vand.u32 %v3698, 4294901760
    %3700 = vmatpush.msra.mxu0 %v3699
    %v3701 = vand.u32 %v200, 4294901760
    %v3702 = vsub.f32 %v200, %v3701
    %v3703 = vand.u32 %v3702, 4294901760
    %3704 = vmatpush.msra.mxu0 %v3703
    %v3705 = vand.u32 %v199, 4294901760
    %v3706 = vsub.f32 %v199, %v3705
    %v3707 = vand.u32 %v3706, 4294901760
    %3708 = vmatpush.msra.mxu0 %v3707
    %v3709 = vand.u32 %v198, 4294901760
    %v3710 = vsub.f32 %v198, %v3709
    %v3711 = vand.u32 %v3710, 4294901760
    %3712 = vmatpush.msra.mxu0 %v3711
    %v3713 = vand.u32 %v197, 4294901760
    %v3714 = vsub.f32 %v197, %v3713
    %v3715 = vand.u32 %v3714, 4294901760
    %3716 = vmatpush.msra.mxu0 %v3715
    %v3717 = vand.u32 %v196, 4294901760
    %v3718 = vsub.f32 %v196, %v3717
    %v3719 = vand.u32 %v3718, 4294901760
    %3720 = vmatpush.msra.mxu0 %v3719
    %v3721 = vand.u32 %v195, 4294901760
    %v3722 = vsub.f32 %v195, %v3721
    %v3723 = vand.u32 %v3722, 4294901760
    %3724 = vmatpush.msra.mxu0 %v3723
    %v3725 = vand.u32 %v194, 4294901760
    %v3726 = vsub.f32 %v194, %v3725
    %v3727 = vand.u32 %v3726, 4294901760
    %3728 = vmatpush.msra.mxu0 %v3727
    %v3729 = vand.u32 %v193, 4294901760
    %v3730 = vsub.f32 %v193, %v3729
    %v3731 = vand.u32 %v3730, 4294901760
    %3732 = vmatpush.msra.mxu0 %v3731
    %v3733 = vand.u32 %v192, 4294901760
    %v3734 = vsub.f32 %v192, %v3733
    %v3735 = vand.u32 %v3734, 4294901760
    %3736 = vmatpush.msra.mxu0 %v3735
    %v3737 = vand.u32 %v191, 4294901760
    %v3738 = vsub.f32 %v191, %v3737
    %v3739 = vand.u32 %v3738, 4294901760
    %3740 = vmatpush.msra.mxu0 %v3739
    %v3741 = vand.u32 %v190, 4294901760
    %v3742 = vsub.f32 %v190, %v3741
    %v3743 = vand.u32 %v3742, 4294901760
    %3744 = vmatpush.msra.mxu0 %v3743
    %v3745 = vand.u32 %v354, 4294901760
    %3746 = vmatmul.f32.gmra.mxu0 %v3745
    %v3747 = vpop.f32.mrf.mxu0
    %v3748 = vadd.f32 %v3679, %v3747
    %3749 = vdwg.mxu0
    %v3750 = vand.u32 %v205, 4294901760
    %3751 = vmatpush.msra.mxu0 %v3750
    %v3752 = vand.u32 %v204, 4294901760
    %3753 = vmatpush.msra.mxu0 %v3752
    %v3754 = vand.u32 %v203, 4294901760
    %3755 = vmatpush.msra.mxu0 %v3754
    %v3756 = vand.u32 %v202, 4294901760
    %3757 = vmatpush.msra.mxu0 %v3756
    %v3758 = vand.u32 %v201, 4294901760
    %3759 = vmatpush.msra.mxu0 %v3758
    %v3760 = vand.u32 %v200, 4294901760
    %3761 = vmatpush.msra.mxu0 %v3760
    %v3762 = vand.u32 %v199, 4294901760
    %3763 = vmatpush.msra.mxu0 %v3762
    %v3764 = vand.u32 %v198, 4294901760
    %3765 = vmatpush.msra.mxu0 %v3764
    %v3766 = vand.u32 %v197, 4294901760
    %3767 = vmatpush.msra.mxu0 %v3766
    %v3768 = vand.u32 %v196, 4294901760
    %3769 = vmatpush.msra.mxu0 %v3768
    %v3770 = vand.u32 %v195, 4294901760
    %3771 = vmatpush.msra.mxu0 %v3770
    %v3772 = vand.u32 %v194, 4294901760
    %3773 = vmatpush.msra.mxu0 %v3772
    %v3774 = vand.u32 %v193, 4294901760
    %3775 = vmatpush.msra.mxu0 %v3774
    %v3776 = vand.u32 %v192, 4294901760
    %3777 = vmatpush.msra.mxu0 %v3776
    %v3778 = vand.u32 %v191, 4294901760
    %3779 = vmatpush.msra.mxu0 %v3778
    %v3780 = vand.u32 %v190, 4294901760
    %3781 = vmatpush.msra.mxu0 %v3780
    %v3782 = vand.u32 %v354, 4294901760
    %3783 = vmatmul.f32.gmra.mxu0 %v3782
    %v3784 = vpop.f32.mrf.mxu0
    %v3785 = vadd.f32 %v3748, %v3784
    %3786 = vdwg.mxu0
    %v3787 = vand.u32 %v221, 4294901760
    %3788 = vmatpush.msra.mxu0 %v3787
    %v3789 = vand.u32 %v220, 4294901760
    %3790 = vmatpush.msra.mxu0 %v3789
    %v3791 = vand.u32 %v219, 4294901760
    %3792 = vmatpush.msra.mxu0 %v3791
    %v3793 = vand.u32 %v218, 4294901760
    %3794 = vmatpush.msra.mxu0 %v3793
    %v3795 = vand.u32 %v217, 4294901760
    %3796 = vmatpush.msra.mxu0 %v3795
    %v3797 = vand.u32 %v216, 4294901760
    %3798 = vmatpush.msra.mxu0 %v3797
    %v3799 = vand.u32 %v215, 4294901760
    %3800 = vmatpush.msra.mxu0 %v3799
    %v3801 = vand.u32 %v214, 4294901760
    %3802 = vmatpush.msra.mxu0 %v3801
    %v3803 = vand.u32 %v213, 4294901760
    %3804 = vmatpush.msra.mxu0 %v3803
    %v3805 = vand.u32 %v212, 4294901760
    %3806 = vmatpush.msra.mxu0 %v3805
    %v3807 = vand.u32 %v211, 4294901760
    %3808 = vmatpush.msra.mxu0 %v3807
    %v3809 = vand.u32 %v210, 4294901760
    %3810 = vmatpush.msra.mxu0 %v3809
    %v3811 = vand.u32 %v209, 4294901760
    %3812 = vmatpush.msra.mxu0 %v3811
    %v3813 = vand.u32 %v208, 4294901760
    %3814 = vmatpush.msra.mxu0 %v3813
    %v3815 = vand.u32 %v207, 4294901760
    %3816 = vmatpush.msra.mxu0 %v3815
    %v3817 = vand.u32 %v206, 4294901760
    %3818 = vmatpush.msra.mxu0 %v3817
    %v3819 = vand.u32 %v355, 4294901760
    %v3820 = vsub.f32 %v355, %v3819
    %v3821 = vand.u32 %v3820, 4294901760
    %v3822 = vsub.f32 %v3820, %v3821
    %v3823 = vand.u32 %v3822, 4294901760
    %3824 = vmatmul.f32.gmra.mxu0 %v3823
    %v3825 = vpop.f32.mrf.mxu0
    %v3826 = vadd.f32 %v3785, %v3825
    %3827 = vdwg.mxu0
    %v3828 = vand.u32 %v221, 4294901760
    %v3829 = vsub.f32 %v221, %v3828
    %v3830 = vand.u32 %v3829, 4294901760
    %v3831 = vsub.f32 %v3829, %v3830
    %v3832 = vand.u32 %v3831, 4294901760
    %3833 = vmatpush.msra.mxu0 %v3832
    %v3834 = vand.u32 %v220, 4294901760
    %v3835 = vsub.f32 %v220, %v3834
    %v3836 = vand.u32 %v3835, 4294901760
    %v3837 = vsub.f32 %v3835, %v3836
    %v3838 = vand.u32 %v3837, 4294901760
    %3839 = vmatpush.msra.mxu0 %v3838
    %v3840 = vand.u32 %v219, 4294901760
    %v3841 = vsub.f32 %v219, %v3840
    %v3842 = vand.u32 %v3841, 4294901760
    %v3843 = vsub.f32 %v3841, %v3842
    %v3844 = vand.u32 %v3843, 4294901760
    %3845 = vmatpush.msra.mxu0 %v3844
    %v3846 = vand.u32 %v218, 4294901760
    %v3847 = vsub.f32 %v218, %v3846
    %v3848 = vand.u32 %v3847, 4294901760
    %v3849 = vsub.f32 %v3847, %v3848
    %v3850 = vand.u32 %v3849, 4294901760
    %3851 = vmatpush.msra.mxu0 %v3850
    %v3852 = vand.u32 %v217, 4294901760
    %v3853 = vsub.f32 %v217, %v3852
    %v3854 = vand.u32 %v3853, 4294901760
    %v3855 = vsub.f32 %v3853, %v3854
    %v3856 = vand.u32 %v3855, 4294901760
    %3857 = vmatpush.msra.mxu0 %v3856
    %v3858 = vand.u32 %v216, 4294901760
    %v3859 = vsub.f32 %v216, %v3858
    %v3860 = vand.u32 %v3859, 4294901760
    %v3861 = vsub.f32 %v3859, %v3860
    %v3862 = vand.u32 %v3861, 4294901760
    %3863 = vmatpush.msra.mxu0 %v3862
    %v3864 = vand.u32 %v215, 4294901760
    %v3865 = vsub.f32 %v215, %v3864
    %v3866 = vand.u32 %v3865, 4294901760
    %v3867 = vsub.f32 %v3865, %v3866
    %v3868 = vand.u32 %v3867, 4294901760
    %3869 = vmatpush.msra.mxu0 %v3868
    %v3870 = vand.u32 %v214, 4294901760
    %v3871 = vsub.f32 %v214, %v3870
    %v3872 = vand.u32 %v3871, 4294901760
    %v3873 = vsub.f32 %v3871, %v3872
    %v3874 = vand.u32 %v3873, 4294901760
    %3875 = vmatpush.msra.mxu0 %v3874
    %v3876 = vand.u32 %v213, 4294901760
    %v3877 = vsub.f32 %v213, %v3876
    %v3878 = vand.u32 %v3877, 4294901760
    %v3879 = vsub.f32 %v3877, %v3878
    %v3880 = vand.u32 %v3879, 4294901760
    %3881 = vmatpush.msra.mxu0 %v3880
    %v3882 = vand.u32 %v212, 4294901760
    %v3883 = vsub.f32 %v212, %v3882
    %v3884 = vand.u32 %v3883, 4294901760
    %v3885 = vsub.f32 %v3883, %v3884
    %v3886 = vand.u32 %v3885, 4294901760
    %3887 = vmatpush.msra.mxu0 %v3886
    %v3888 = vand.u32 %v211, 4294901760
    %v3889 = vsub.f32 %v211, %v3888
    %v3890 = vand.u32 %v3889, 4294901760
    %v3891 = vsub.f32 %v3889, %v3890
    %v3892 = vand.u32 %v3891, 4294901760
    %3893 = vmatpush.msra.mxu0 %v3892
    %v3894 = vand.u32 %v210, 4294901760
    %v3895 = vsub.f32 %v210, %v3894
    %v3896 = vand.u32 %v3895, 4294901760
    %v3897 = vsub.f32 %v3895, %v3896
    %v3898 = vand.u32 %v3897, 4294901760
    %3899 = vmatpush.msra.mxu0 %v3898
    %v3900 = vand.u32 %v209, 4294901760
    %v3901 = vsub.f32 %v209, %v3900
    %v3902 = vand.u32 %v3901, 4294901760
    %v3903 = vsub.f32 %v3901, %v3902
    %v3904 = vand.u32 %v3903, 4294901760
    %3905 = vmatpush.msra.mxu0 %v3904
    %v3906 = vand.u32 %v208, 4294901760
    %v3907 = vsub.f32 %v208, %v3906
    %v3908 = vand.u32 %v3907, 4294901760
    %v3909 = vsub.f32 %v3907, %v3908
    %v3910 = vand.u32 %v3909, 4294901760
    %3911 = vmatpush.msra.mxu0 %v3910
    %v3912 = vand.u32 %v207, 4294901760
    %v3913 = vsub.f32 %v207, %v3912
    %v3914 = vand.u32 %v3913, 4294901760
    %v3915 = vsub.f32 %v3913, %v3914
    %v3916 = vand.u32 %v3915, 4294901760
    %3917 = vmatpush.msra.mxu0 %v3916
    %v3918 = vand.u32 %v206, 4294901760
    %v3919 = vsub.f32 %v206, %v3918
    %v3920 = vand.u32 %v3919, 4294901760
    %v3921 = vsub.f32 %v3919, %v3920
    %v3922 = vand.u32 %v3921, 4294901760
    %3923 = vmatpush.msra.mxu0 %v3922
    %v3924 = vand.u32 %v355, 4294901760
    %3925 = vmatmul.f32.gmra.mxu0 %v3924
    %v3926 = vpop.f32.mrf.mxu0
    %v3927 = vadd.f32 %v3826, %v3926
    %3928 = vdwg.mxu0
    %v3929 = vand.u32 %v221, 4294901760
    %v3930 = vsub.f32 %v221, %v3929
    %3931 = vmatpush.msra.mxu0 %v3930
    %v3932 = vand.u32 %v220, 4294901760
    %v3933 = vsub.f32 %v220, %v3932
    %3934 = vmatpush.msra.mxu0 %v3933
    %v3935 = vand.u32 %v219, 4294901760
    %v3936 = vsub.f32 %v219, %v3935
    %3937 = vmatpush.msra.mxu0 %v3936
    %v3938 = vand.u32 %v218, 4294901760
    %v3939 = vsub.f32 %v218, %v3938
    %3940 = vmatpush.msra.mxu0 %v3939
    %v3941 = vand.u32 %v217, 4294901760
    %v3942 = vsub.f32 %v217, %v3941
    %3943 = vmatpush.msra.mxu0 %v3942
    %v3944 = vand.u32 %v216, 4294901760
    %v3945 = vsub.f32 %v216, %v3944
    %3946 = vmatpush.msra.mxu0 %v3945
    %v3947 = vand.u32 %v215, 4294901760
    %v3948 = vsub.f32 %v215, %v3947
    %3949 = vmatpush.msra.mxu0 %v3948
    %v3950 = vand.u32 %v214, 4294901760
    %v3951 = vsub.f32 %v214, %v3950
    %3952 = vmatpush.msra.mxu0 %v3951
    %v3953 = vand.u32 %v213, 4294901760
    %v3954 = vsub.f32 %v213, %v3953
    %3955 = vmatpush.msra.mxu0 %v3954
    %v3956 = vand.u32 %v212, 4294901760
    %v3957 = vsub.f32 %v212, %v3956
    %3958 = vmatpush.msra.mxu0 %v3957
    %v3959 = vand.u32 %v211, 4294901760
    %v3960 = vsub.f32 %v211, %v3959
    %3961 = vmatpush.msra.mxu0 %v3960
    %v3962 = vand.u32 %v210, 4294901760
    %v3963 = vsub.f32 %v210, %v3962
    %3964 = vmatpush.msra.mxu0 %v3963
    %v3965 = vand.u32 %v209, 4294901760
    %v3966 = vsub.f32 %v209, %v3965
    %3967 = vmatpush.msra.mxu0 %v3966
    %v3968 = vand.u32 %v208, 4294901760
    %v3969 = vsub.f32 %v208, %v3968
    %3970 = vmatpush.msra.mxu0 %v3969
    %v3971 = vand.u32 %v207, 4294901760
    %v3972 = vsub.f32 %v207, %v3971
    %3973 = vmatpush.msra.mxu0 %v3972
    %v3974 = vand.u32 %v206, 4294901760
    %v3975 = vsub.f32 %v206, %v3974
    %3976 = vmatpush.msra.mxu0 %v3975
    %v3977 = vand.u32 %v355, 4294901760
    %v3978 = vsub.f32 %v355, %v3977
    %3979 = vmatmul.f32.gmra.mxu0 %v3978
    %v3980 = vpop.f32.mrf.mxu0
    %v3981 = vadd.f32 %v3927, %v3980
    %3982 = vdwg.mxu0
    %v3983 = vand.u32 %v221, 4294901760
    %3984 = vmatpush.msra.mxu0 %v3983
    %v3985 = vand.u32 %v220, 4294901760
    %3986 = vmatpush.msra.mxu0 %v3985
    %v3987 = vand.u32 %v219, 4294901760
    %3988 = vmatpush.msra.mxu0 %v3987
    %v3989 = vand.u32 %v218, 4294901760
    %3990 = vmatpush.msra.mxu0 %v3989
    %v3991 = vand.u32 %v217, 4294901760
    %3992 = vmatpush.msra.mxu0 %v3991
    %v3993 = vand.u32 %v216, 4294901760
    %3994 = vmatpush.msra.mxu0 %v3993
    %v3995 = vand.u32 %v215, 4294901760
    %3996 = vmatpush.msra.mxu0 %v3995
    %v3997 = vand.u32 %v214, 4294901760
    %3998 = vmatpush.msra.mxu0 %v3997
    %v3999 = vand.u32 %v213, 4294901760
    %4000 = vmatpush.msra.mxu0 %v3999
    %v4001 = vand.u32 %v212, 4294901760
    %4002 = vmatpush.msra.mxu0 %v4001
    %v4003 = vand.u32 %v211, 4294901760
    %4004 = vmatpush.msra.mxu0 %v4003
    %v4005 = vand.u32 %v210, 4294901760
    %4006 = vmatpush.msra.mxu0 %v4005
    %v4007 = vand.u32 %v209, 4294901760
    %4008 = vmatpush.msra.mxu0 %v4007
    %v4009 = vand.u32 %v208, 4294901760
    %4010 = vmatpush.msra.mxu0 %v4009
    %v4011 = vand.u32 %v207, 4294901760
    %4012 = vmatpush.msra.mxu0 %v4011
    %v4013 = vand.u32 %v206, 4294901760
    %4014 = vmatpush.msra.mxu0 %v4013
    %v4015 = vand.u32 %v355, 4294901760
    %v4016 = vsub.f32 %v355, %v4015
    %v4017 = vand.u32 %v4016, 4294901760
    %4018 = vmatmul.f32.gmra.mxu0 %v4017
    %v4019 = vpop.f32.mrf.mxu0
    %v4020 = vadd.f32 %v3981, %v4019
    %4021 = vdwg.mxu0
    %v4022 = vand.u32 %v221, 4294901760
    %v4023 = vsub.f32 %v221, %v4022
    %v4024 = vand.u32 %v4023, 4294901760
    %4025 = vmatpush.msra.mxu0 %v4024
    %v4026 = vand.u32 %v220, 4294901760
    %v4027 = vsub.f32 %v220, %v4026
    %v4028 = vand.u32 %v4027, 4294901760
    %4029 = vmatpush.msra.mxu0 %v4028
    %v4030 = vand.u32 %v219, 4294901760
    %v4031 = vsub.f32 %v219, %v4030
    %v4032 = vand.u32 %v4031, 4294901760
    %4033 = vmatpush.msra.mxu0 %v4032
    %v4034 = vand.u32 %v218, 4294901760
    %v4035 = vsub.f32 %v218, %v4034
    %v4036 = vand.u32 %v4035, 4294901760
    %4037 = vmatpush.msra.mxu0 %v4036
    %v4038 = vand.u32 %v217, 4294901760
    %v4039 = vsub.f32 %v217, %v4038
    %v4040 = vand.u32 %v4039, 4294901760
    %4041 = vmatpush.msra.mxu0 %v4040
    %v4042 = vand.u32 %v216, 4294901760
    %v4043 = vsub.f32 %v216, %v4042
    %v4044 = vand.u32 %v4043, 4294901760
    %4045 = vmatpush.msra.mxu0 %v4044
    %v4046 = vand.u32 %v215, 4294901760
    %v4047 = vsub.f32 %v215, %v4046
    %v4048 = vand.u32 %v4047, 4294901760
    %4049 = vmatpush.msra.mxu0 %v4048
    %v4050 = vand.u32 %v214, 4294901760
    %v4051 = vsub.f32 %v214, %v4050
    %v4052 = vand.u32 %v4051, 4294901760
    %4053 = vmatpush.msra.mxu0 %v4052
    %v4054 = vand.u32 %v213, 4294901760
    %v4055 = vsub.f32 %v213, %v4054
    %v4056 = vand.u32 %v4055, 4294901760
    %4057 = vmatpush.msra.mxu0 %v4056
    %v4058 = vand.u32 %v212, 4294901760
    %v4059 = vsub.f32 %v212, %v4058
    %v4060 = vand.u32 %v4059, 4294901760
    %4061 = vmatpush.msra.mxu0 %v4060
    %v4062 = vand.u32 %v211, 4294901760
    %v4063 = vsub.f32 %v211, %v4062
    %v4064 = vand.u32 %v4063, 4294901760
    %4065 = vmatpush.msra.mxu0 %v4064
    %v4066 = vand.u32 %v210, 4294901760
    %v4067 = vsub.f32 %v210, %v4066
    %v4068 = vand.u32 %v4067, 4294901760
    %4069 = vmatpush.msra.mxu0 %v4068
    %v4070 = vand.u32 %v209, 4294901760
    %v4071 = vsub.f32 %v209, %v4070
    %v4072 = vand.u32 %v4071, 4294901760
    %4073 = vmatpush.msra.mxu0 %v4072
    %v4074 = vand.u32 %v208, 4294901760
    %v4075 = vsub.f32 %v208, %v4074
    %v4076 = vand.u32 %v4075, 4294901760
    %4077 = vmatpush.msra.mxu0 %v4076
    %v4078 = vand.u32 %v207, 4294901760
    %v4079 = vsub.f32 %v207, %v4078
    %v4080 = vand.u32 %v4079, 4294901760
    %4081 = vmatpush.msra.mxu0 %v4080
    %v4082 = vand.u32 %v206, 4294901760
    %v4083 = vsub.f32 %v206, %v4082
    %v4084 = vand.u32 %v4083, 4294901760
    %4085 = vmatpush.msra.mxu0 %v4084
    %v4086 = vand.u32 %v355, 4294901760
    %4087 = vmatmul.f32.gmra.mxu0 %v4086
    %v4088 = vpop.f32.mrf.mxu0
    %v4089 = vadd.f32 %v4020, %v4088
    %4090 = vdwg.mxu0
    %v4091 = vand.u32 %v221, 4294901760
    %4092 = vmatpush.msra.mxu0 %v4091
    %v4093 = vand.u32 %v220, 4294901760
    %4094 = vmatpush.msra.mxu0 %v4093
    %v4095 = vand.u32 %v219, 4294901760
    %4096 = vmatpush.msra.mxu0 %v4095
    %v4097 = vand.u32 %v218, 4294901760
    %4098 = vmatpush.msra.mxu0 %v4097
    %v4099 = vand.u32 %v217, 4294901760
    %4100 = vmatpush.msra.mxu0 %v4099
    %v4101 = vand.u32 %v216, 4294901760
    %4102 = vmatpush.msra.mxu0 %v4101
    %v4103 = vand.u32 %v215, 4294901760
    %4104 = vmatpush.msra.mxu0 %v4103
    %v4105 = vand.u32 %v214, 4294901760
    %4106 = vmatpush.msra.mxu0 %v4105
    %v4107 = vand.u32 %v213, 4294901760
    %4108 = vmatpush.msra.mxu0 %v4107
    %v4109 = vand.u32 %v212, 4294901760
    %4110 = vmatpush.msra.mxu0 %v4109
    %v4111 = vand.u32 %v211, 4294901760
    %4112 = vmatpush.msra.mxu0 %v4111
    %v4113 = vand.u32 %v210, 4294901760
    %4114 = vmatpush.msra.mxu0 %v4113
    %v4115 = vand.u32 %v209, 4294901760
    %4116 = vmatpush.msra.mxu0 %v4115
    %v4117 = vand.u32 %v208, 4294901760
    %4118 = vmatpush.msra.mxu0 %v4117
    %v4119 = vand.u32 %v207, 4294901760
    %4120 = vmatpush.msra.mxu0 %v4119
    %v4121 = vand.u32 %v206, 4294901760
    %4122 = vmatpush.msra.mxu0 %v4121
    %v4123 = vand.u32 %v355, 4294901760
    %4124 = vmatmul.f32.gmra.mxu0 %v4123
    %v4125 = vpop.f32.mrf.mxu0
    %v4126 = vadd.f32 %v4089, %v4125
    %4127 = vdwg.mxu0
    %v4128 = vand.u32 %v237, 4294901760
    %4129 = vmatpush.msra.mxu0 %v4128
    %v4130 = vand.u32 %v236, 4294901760
    %4131 = vmatpush.msra.mxu0 %v4130
    %v4132 = vand.u32 %v235, 4294901760
    %4133 = vmatpush.msra.mxu0 %v4132
    %v4134 = vand.u32 %v234, 4294901760
    %4135 = vmatpush.msra.mxu0 %v4134
    %v4136 = vand.u32 %v233, 4294901760
    %4137 = vmatpush.msra.mxu0 %v4136
    %v4138 = vand.u32 %v232, 4294901760
    %4139 = vmatpush.msra.mxu0 %v4138
    %v4140 = vand.u32 %v231, 4294901760
    %4141 = vmatpush.msra.mxu0 %v4140
    %v4142 = vand.u32 %v230, 4294901760
    %4143 = vmatpush.msra.mxu0 %v4142
    %v4144 = vand.u32 %v229, 4294901760
    %4145 = vmatpush.msra.mxu0 %v4144
    %v4146 = vand.u32 %v228, 4294901760
    %4147 = vmatpush.msra.mxu0 %v4146
    %v4148 = vand.u32 %v227, 4294901760
    %4149 = vmatpush.msra.mxu0 %v4148
    %v4150 = vand.u32 %v226, 4294901760
    %4151 = vmatpush.msra.mxu0 %v4150
    %v4152 = vand.u32 %v225, 4294901760
    %4153 = vmatpush.msra.mxu0 %v4152
    %v4154 = vand.u32 %v224, 4294901760
    %4155 = vmatpush.msra.mxu0 %v4154
    %v4156 = vand.u32 %v223, 4294901760
    %4157 = vmatpush.msra.mxu0 %v4156
    %v4158 = vand.u32 %v222, 4294901760
    %4159 = vmatpush.msra.mxu0 %v4158
    %v4160 = vand.u32 %v356, 4294901760
    %v4161 = vsub.f32 %v356, %v4160
    %v4162 = vand.u32 %v4161, 4294901760
    %v4163 = vsub.f32 %v4161, %v4162
    %v4164 = vand.u32 %v4163, 4294901760
    %4165 = vmatmul.f32.gmra.mxu0 %v4164
    %v4166 = vpop.f32.mrf.mxu0
    %v4167 = vadd.f32 %v4126, %v4166
    %4168 = vdwg.mxu0
    %v4169 = vand.u32 %v237, 4294901760
    %v4170 = vsub.f32 %v237, %v4169
    %v4171 = vand.u32 %v4170, 4294901760
    %v4172 = vsub.f32 %v4170, %v4171
    %v4173 = vand.u32 %v4172, 4294901760
    %4174 = vmatpush.msra.mxu0 %v4173
    %v4175 = vand.u32 %v236, 4294901760
    %v4176 = vsub.f32 %v236, %v4175
    %v4177 = vand.u32 %v4176, 4294901760
    %v4178 = vsub.f32 %v4176, %v4177
    %v4179 = vand.u32 %v4178, 4294901760
    %4180 = vmatpush.msra.mxu0 %v4179
    %v4181 = vand.u32 %v235, 4294901760
    %v4182 = vsub.f32 %v235, %v4181
    %v4183 = vand.u32 %v4182, 4294901760
    %v4184 = vsub.f32 %v4182, %v4183
    %v4185 = vand.u32 %v4184, 4294901760
    %4186 = vmatpush.msra.mxu0 %v4185
    %v4187 = vand.u32 %v234, 4294901760
    %v4188 = vsub.f32 %v234, %v4187
    %v4189 = vand.u32 %v4188, 4294901760
    %v4190 = vsub.f32 %v4188, %v4189
    %v4191 = vand.u32 %v4190, 4294901760
    %4192 = vmatpush.msra.mxu0 %v4191
    %v4193 = vand.u32 %v233, 4294901760
    %v4194 = vsub.f32 %v233, %v4193
    %v4195 = vand.u32 %v4194, 4294901760
    %v4196 = vsub.f32 %v4194, %v4195
    %v4197 = vand.u32 %v4196, 4294901760
    %4198 = vmatpush.msra.mxu0 %v4197
    %v4199 = vand.u32 %v232, 4294901760
    %v4200 = vsub.f32 %v232, %v4199
    %v4201 = vand.u32 %v4200, 4294901760
    %v4202 = vsub.f32 %v4200, %v4201
    %v4203 = vand.u32 %v4202, 4294901760
    %4204 = vmatpush.msra.mxu0 %v4203
    %v4205 = vand.u32 %v231, 4294901760
    %v4206 = vsub.f32 %v231, %v4205
    %v4207 = vand.u32 %v4206, 4294901760
    %v4208 = vsub.f32 %v4206, %v4207
    %v4209 = vand.u32 %v4208, 4294901760
    %4210 = vmatpush.msra.mxu0 %v4209
    %v4211 = vand.u32 %v230, 4294901760
    %v4212 = vsub.f32 %v230, %v4211
    %v4213 = vand.u32 %v4212, 4294901760
    %v4214 = vsub.f32 %v4212, %v4213
    %v4215 = vand.u32 %v4214, 4294901760
    %4216 = vmatpush.msra.mxu0 %v4215
    %v4217 = vand.u32 %v229, 4294901760
    %v4218 = vsub.f32 %v229, %v4217
    %v4219 = vand.u32 %v4218, 4294901760
    %v4220 = vsub.f32 %v4218, %v4219
    %v4221 = vand.u32 %v4220, 4294901760
    %4222 = vmatpush.msra.mxu0 %v4221
    %v4223 = vand.u32 %v228, 4294901760
    %v4224 = vsub.f32 %v228, %v4223
    %v4225 = vand.u32 %v4224, 4294901760
    %v4226 = vsub.f32 %v4224, %v4225
    %v4227 = vand.u32 %v4226, 4294901760
    %4228 = vmatpush.msra.mxu0 %v4227
    %v4229 = vand.u32 %v227, 4294901760
    %v4230 = vsub.f32 %v227, %v4229
    %v4231 = vand.u32 %v4230, 4294901760
    %v4232 = vsub.f32 %v4230, %v4231
    %v4233 = vand.u32 %v4232, 4294901760
    %4234 = vmatpush.msra.mxu0 %v4233
    %v4235 = vand.u32 %v226, 4294901760
    %v4236 = vsub.f32 %v226, %v4235
    %v4237 = vand.u32 %v4236, 4294901760
    %v4238 = vsub.f32 %v4236, %v4237
    %v4239 = vand.u32 %v4238, 4294901760
    %4240 = vmatpush.msra.mxu0 %v4239
    %v4241 = vand.u32 %v225, 4294901760
    %v4242 = vsub.f32 %v225, %v4241
    %v4243 = vand.u32 %v4242, 4294901760
    %v4244 = vsub.f32 %v4242, %v4243
    %v4245 = vand.u32 %v4244, 4294901760
    %4246 = vmatpush.msra.mxu0 %v4245
    %v4247 = vand.u32 %v224, 4294901760
    %v4248 = vsub.f32 %v224, %v4247
    %v4249 = vand.u32 %v4248, 4294901760
    %v4250 = vsub.f32 %v4248, %v4249
    %v4251 = vand.u32 %v4250, 4294901760
    %4252 = vmatpush.msra.mxu0 %v4251
    %v4253 = vand.u32 %v223, 4294901760
    %v4254 = vsub.f32 %v223, %v4253
    %v4255 = vand.u32 %v4254, 4294901760
    %v4256 = vsub.f32 %v4254, %v4255
    %v4257 = vand.u32 %v4256, 4294901760
    %4258 = vmatpush.msra.mxu0 %v4257
    %v4259 = vand.u32 %v222, 4294901760
    %v4260 = vsub.f32 %v222, %v4259
    %v4261 = vand.u32 %v4260, 4294901760
    %v4262 = vsub.f32 %v4260, %v4261
    %v4263 = vand.u32 %v4262, 4294901760
    %4264 = vmatpush.msra.mxu0 %v4263
    %v4265 = vand.u32 %v356, 4294901760
    %4266 = vmatmul.f32.gmra.mxu0 %v4265
    %v4267 = vpop.f32.mrf.mxu0
    %v4268 = vadd.f32 %v4167, %v4267
    %4269 = vdwg.mxu0
    %v4270 = vand.u32 %v237, 4294901760
    %v4271 = vsub.f32 %v237, %v4270
    %4272 = vmatpush.msra.mxu0 %v4271
    %v4273 = vand.u32 %v236, 4294901760
    %v4274 = vsub.f32 %v236, %v4273
    %4275 = vmatpush.msra.mxu0 %v4274
    %v4276 = vand.u32 %v235, 4294901760
    %v4277 = vsub.f32 %v235, %v4276
    %4278 = vmatpush.msra.mxu0 %v4277
    %v4279 = vand.u32 %v234, 4294901760
    %v4280 = vsub.f32 %v234, %v4279
    %4281 = vmatpush.msra.mxu0 %v4280
    %v4282 = vand.u32 %v233, 4294901760
    %v4283 = vsub.f32 %v233, %v4282
    %4284 = vmatpush.msra.mxu0 %v4283
    %v4285 = vand.u32 %v232, 4294901760
    %v4286 = vsub.f32 %v232, %v4285
    %4287 = vmatpush.msra.mxu0 %v4286
    %v4288 = vand.u32 %v231, 4294901760
    %v4289 = vsub.f32 %v231, %v4288
    %4290 = vmatpush.msra.mxu0 %v4289
    %v4291 = vand.u32 %v230, 4294901760
    %v4292 = vsub.f32 %v230, %v4291
    %4293 = vmatpush.msra.mxu0 %v4292
    %v4294 = vand.u32 %v229, 4294901760
    %v4295 = vsub.f32 %v229, %v4294
    %4296 = vmatpush.msra.mxu0 %v4295
    %v4297 = vand.u32 %v228, 4294901760
    %v4298 = vsub.f32 %v228, %v4297
    %4299 = vmatpush.msra.mxu0 %v4298
    %v4300 = vand.u32 %v227, 4294901760
    %v4301 = vsub.f32 %v227, %v4300
    %4302 = vmatpush.msra.mxu0 %v4301
    %v4303 = vand.u32 %v226, 4294901760
    %v4304 = vsub.f32 %v226, %v4303
    %4305 = vmatpush.msra.mxu0 %v4304
    %v4306 = vand.u32 %v225, 4294901760
    %v4307 = vsub.f32 %v225, %v4306
    %4308 = vmatpush.msra.mxu0 %v4307
    %v4309 = vand.u32 %v224, 4294901760
    %v4310 = vsub.f32 %v224, %v4309
    %4311 = vmatpush.msra.mxu0 %v4310
    %v4312 = vand.u32 %v223, 4294901760
    %v4313 = vsub.f32 %v223, %v4312
    %4314 = vmatpush.msra.mxu0 %v4313
    %v4315 = vand.u32 %v222, 4294901760
    %v4316 = vsub.f32 %v222, %v4315
    %4317 = vmatpush.msra.mxu0 %v4316
    %v4318 = vand.u32 %v356, 4294901760
    %v4319 = vsub.f32 %v356, %v4318
    %4320 = vmatmul.f32.gmra.mxu0 %v4319
    %v4321 = vpop.f32.mrf.mxu0
    %v4322 = vadd.f32 %v4268, %v4321
    %4323 = vdwg.mxu0
    %v4324 = vand.u32 %v237, 4294901760
    %4325 = vmatpush.msra.mxu0 %v4324
    %v4326 = vand.u32 %v236, 4294901760
    %4327 = vmatpush.msra.mxu0 %v4326
    %v4328 = vand.u32 %v235, 4294901760
    %4329 = vmatpush.msra.mxu0 %v4328
    %v4330 = vand.u32 %v234, 4294901760
    %4331 = vmatpush.msra.mxu0 %v4330
    %v4332 = vand.u32 %v233, 4294901760
    %4333 = vmatpush.msra.mxu0 %v4332
    %v4334 = vand.u32 %v232, 4294901760
    %4335 = vmatpush.msra.mxu0 %v4334
    %v4336 = vand.u32 %v231, 4294901760
    %4337 = vmatpush.msra.mxu0 %v4336
    %v4338 = vand.u32 %v230, 4294901760
    %4339 = vmatpush.msra.mxu0 %v4338
    %v4340 = vand.u32 %v229, 4294901760
    %4341 = vmatpush.msra.mxu0 %v4340
    %v4342 = vand.u32 %v228, 4294901760
    %4343 = vmatpush.msra.mxu0 %v4342
    %v4344 = vand.u32 %v227, 4294901760
    %4345 = vmatpush.msra.mxu0 %v4344
    %v4346 = vand.u32 %v226, 4294901760
    %4347 = vmatpush.msra.mxu0 %v4346
    %v4348 = vand.u32 %v225, 4294901760
    %4349 = vmatpush.msra.mxu0 %v4348
    %v4350 = vand.u32 %v224, 4294901760
    %4351 = vmatpush.msra.mxu0 %v4350
    %v4352 = vand.u32 %v223, 4294901760
    %4353 = vmatpush.msra.mxu0 %v4352
    %v4354 = vand.u32 %v222, 4294901760
    %4355 = vmatpush.msra.mxu0 %v4354
    %v4356 = vand.u32 %v356, 4294901760
    %v4357 = vsub.f32 %v356, %v4356
    %v4358 = vand.u32 %v4357, 4294901760
    %4359 = vmatmul.f32.gmra.mxu0 %v4358
    %v4360 = vpop.f32.mrf.mxu0
    %v4361 = vadd.f32 %v4322, %v4360
    %4362 = vdwg.mxu0
    %v4363 = vand.u32 %v237, 4294901760
    %v4364 = vsub.f32 %v237, %v4363
    %v4365 = vand.u32 %v4364, 4294901760
    %4366 = vmatpush.msra.mxu0 %v4365
    %v4367 = vand.u32 %v236, 4294901760
    %v4368 = vsub.f32 %v236, %v4367
    %v4369 = vand.u32 %v4368, 4294901760
    %4370 = vmatpush.msra.mxu0 %v4369
    %v4371 = vand.u32 %v235, 4294901760
    %v4372 = vsub.f32 %v235, %v4371
    %v4373 = vand.u32 %v4372, 4294901760
    %4374 = vmatpush.msra.mxu0 %v4373
    %v4375 = vand.u32 %v234, 4294901760
    %v4376 = vsub.f32 %v234, %v4375
    %v4377 = vand.u32 %v4376, 4294901760
    %4378 = vmatpush.msra.mxu0 %v4377
    %v4379 = vand.u32 %v233, 4294901760
    %v4380 = vsub.f32 %v233, %v4379
    %v4381 = vand.u32 %v4380, 4294901760
    %4382 = vmatpush.msra.mxu0 %v4381
    %v4383 = vand.u32 %v232, 4294901760
    %v4384 = vsub.f32 %v232, %v4383
    %v4385 = vand.u32 %v4384, 4294901760
    %4386 = vmatpush.msra.mxu0 %v4385
    %v4387 = vand.u32 %v231, 4294901760
    %v4388 = vsub.f32 %v231, %v4387
    %v4389 = vand.u32 %v4388, 4294901760
    %4390 = vmatpush.msra.mxu0 %v4389
    %v4391 = vand.u32 %v230, 4294901760
    %v4392 = vsub.f32 %v230, %v4391
    %v4393 = vand.u32 %v4392, 4294901760
    %4394 = vmatpush.msra.mxu0 %v4393
    %v4395 = vand.u32 %v229, 4294901760
    %v4396 = vsub.f32 %v229, %v4395
    %v4397 = vand.u32 %v4396, 4294901760
    %4398 = vmatpush.msra.mxu0 %v4397
    %v4399 = vand.u32 %v228, 4294901760
    %v4400 = vsub.f32 %v228, %v4399
    %v4401 = vand.u32 %v4400, 4294901760
    %4402 = vmatpush.msra.mxu0 %v4401
    %v4403 = vand.u32 %v227, 4294901760
    %v4404 = vsub.f32 %v227, %v4403
    %v4405 = vand.u32 %v4404, 4294901760
    %4406 = vmatpush.msra.mxu0 %v4405
    %v4407 = vand.u32 %v226, 4294901760
    %v4408 = vsub.f32 %v226, %v4407
    %v4409 = vand.u32 %v4408, 4294901760
    %4410 = vmatpush.msra.mxu0 %v4409
    %v4411 = vand.u32 %v225, 4294901760
    %v4412 = vsub.f32 %v225, %v4411
    %v4413 = vand.u32 %v4412, 4294901760
    %4414 = vmatpush.msra.mxu0 %v4413
    %v4415 = vand.u32 %v224, 4294901760
    %v4416 = vsub.f32 %v224, %v4415
    %v4417 = vand.u32 %v4416, 4294901760
    %4418 = vmatpush.msra.mxu0 %v4417
    %v4419 = vand.u32 %v223, 4294901760
    %v4420 = vsub.f32 %v223, %v4419
    %v4421 = vand.u32 %v4420, 4294901760
    %4422 = vmatpush.msra.mxu0 %v4421
    %v4423 = vand.u32 %v222, 4294901760
    %v4424 = vsub.f32 %v222, %v4423
    %v4425 = vand.u32 %v4424, 4294901760
    %4426 = vmatpush.msra.mxu0 %v4425
    %v4427 = vand.u32 %v356, 4294901760
    %4428 = vmatmul.f32.gmra.mxu0 %v4427
    %v4429 = vpop.f32.mrf.mxu0
    %v4430 = vadd.f32 %v4361, %v4429
    %4431 = vdwg.mxu0
    %v4432 = vand.u32 %v237, 4294901760
    %4433 = vmatpush.msra.mxu0 %v4432
    %v4434 = vand.u32 %v236, 4294901760
    %4435 = vmatpush.msra.mxu0 %v4434
    %v4436 = vand.u32 %v235, 4294901760
    %4437 = vmatpush.msra.mxu0 %v4436
    %v4438 = vand.u32 %v234, 4294901760
    %4439 = vmatpush.msra.mxu0 %v4438
    %v4440 = vand.u32 %v233, 4294901760
    %4441 = vmatpush.msra.mxu0 %v4440
    %v4442 = vand.u32 %v232, 4294901760
    %4443 = vmatpush.msra.mxu0 %v4442
    %v4444 = vand.u32 %v231, 4294901760
    %4445 = vmatpush.msra.mxu0 %v4444
    %v4446 = vand.u32 %v230, 4294901760
    %4447 = vmatpush.msra.mxu0 %v4446
    %v4448 = vand.u32 %v229, 4294901760
    %4449 = vmatpush.msra.mxu0 %v4448
    %v4450 = vand.u32 %v228, 4294901760
    %4451 = vmatpush.msra.mxu0 %v4450
    %v4452 = vand.u32 %v227, 4294901760
    %4453 = vmatpush.msra.mxu0 %v4452
    %v4454 = vand.u32 %v226, 4294901760
    %4455 = vmatpush.msra.mxu0 %v4454
    %v4456 = vand.u32 %v225, 4294901760
    %4457 = vmatpush.msra.mxu0 %v4456
    %v4458 = vand.u32 %v224, 4294901760
    %4459 = vmatpush.msra.mxu0 %v4458
    %v4460 = vand.u32 %v223, 4294901760
    %4461 = vmatpush.msra.mxu0 %v4460
    %v4462 = vand.u32 %v222, 4294901760
    %4463 = vmatpush.msra.mxu0 %v4462
    %v4464 = vand.u32 %v356, 4294901760
    %4465 = vmatmul.f32.gmra.mxu0 %v4464
    %v4466 = vpop.f32.mrf.mxu0
    %v4467 = vadd.f32 %v4430, %v4466
    %4468 = vdwg.mxu0
    %v4469 = vand.u32 %v253, 4294901760
    %4470 = vmatpush.msra.mxu0 %v4469
    %v4471 = vand.u32 %v252, 4294901760
    %4472 = vmatpush.msra.mxu0 %v4471
    %v4473 = vand.u32 %v251, 4294901760
    %4474 = vmatpush.msra.mxu0 %v4473
    %v4475 = vand.u32 %v250, 4294901760
    %4476 = vmatpush.msra.mxu0 %v4475
    %v4477 = vand.u32 %v249, 4294901760
    %4478 = vmatpush.msra.mxu0 %v4477
    %v4479 = vand.u32 %v248, 4294901760
    %4480 = vmatpush.msra.mxu0 %v4479
    %v4481 = vand.u32 %v247, 4294901760
    %4482 = vmatpush.msra.mxu0 %v4481
    %v4483 = vand.u32 %v246, 4294901760
    %4484 = vmatpush.msra.mxu0 %v4483
    %v4485 = vand.u32 %v245, 4294901760
    %4486 = vmatpush.msra.mxu0 %v4485
    %v4487 = vand.u32 %v244, 4294901760
    %4488 = vmatpush.msra.mxu0 %v4487
    %v4489 = vand.u32 %v243, 4294901760
    %4490 = vmatpush.msra.mxu0 %v4489
    %v4491 = vand.u32 %v242, 4294901760
    %4492 = vmatpush.msra.mxu0 %v4491
    %v4493 = vand.u32 %v241, 4294901760
    %4494 = vmatpush.msra.mxu0 %v4493
    %v4495 = vand.u32 %v240, 4294901760
    %4496 = vmatpush.msra.mxu0 %v4495
    %v4497 = vand.u32 %v239, 4294901760
    %4498 = vmatpush.msra.mxu0 %v4497
    %v4499 = vand.u32 %v238, 4294901760
    %4500 = vmatpush.msra.mxu0 %v4499
    %v4501 = vand.u32 %v357, 4294901760
    %v4502 = vsub.f32 %v357, %v4501
    %v4503 = vand.u32 %v4502, 4294901760
    %v4504 = vsub.f32 %v4502, %v4503
    %v4505 = vand.u32 %v4504, 4294901760
    %4506 = vmatmul.f32.gmra.mxu0 %v4505
    %v4507 = vpop.f32.mrf.mxu0
    %v4508 = vadd.f32 %v4467, %v4507
    %4509 = vdwg.mxu0
    %v4510 = vand.u32 %v253, 4294901760
    %v4511 = vsub.f32 %v253, %v4510
    %v4512 = vand.u32 %v4511, 4294901760
    %v4513 = vsub.f32 %v4511, %v4512
    %v4514 = vand.u32 %v4513, 4294901760
    %4515 = vmatpush.msra.mxu0 %v4514
    %v4516 = vand.u32 %v252, 4294901760
    %v4517 = vsub.f32 %v252, %v4516
    %v4518 = vand.u32 %v4517, 4294901760
    %v4519 = vsub.f32 %v4517, %v4518
    %v4520 = vand.u32 %v4519, 4294901760
    %4521 = vmatpush.msra.mxu0 %v4520
    %v4522 = vand.u32 %v251, 4294901760
    %v4523 = vsub.f32 %v251, %v4522
    %v4524 = vand.u32 %v4523, 4294901760
    %v4525 = vsub.f32 %v4523, %v4524
    %v4526 = vand.u32 %v4525, 4294901760
    %4527 = vmatpush.msra.mxu0 %v4526
    %v4528 = vand.u32 %v250, 4294901760
    %v4529 = vsub.f32 %v250, %v4528
    %v4530 = vand.u32 %v4529, 4294901760
    %v4531 = vsub.f32 %v4529, %v4530
    %v4532 = vand.u32 %v4531, 4294901760
    %4533 = vmatpush.msra.mxu0 %v4532
    %v4534 = vand.u32 %v249, 4294901760
    %v4535 = vsub.f32 %v249, %v4534
    %v4536 = vand.u32 %v4535, 4294901760
    %v4537 = vsub.f32 %v4535, %v4536
    %v4538 = vand.u32 %v4537, 4294901760
    %4539 = vmatpush.msra.mxu0 %v4538
    %v4540 = vand.u32 %v248, 4294901760
    %v4541 = vsub.f32 %v248, %v4540
    %v4542 = vand.u32 %v4541, 4294901760
    %v4543 = vsub.f32 %v4541, %v4542
    %v4544 = vand.u32 %v4543, 4294901760
    %4545 = vmatpush.msra.mxu0 %v4544
    %v4546 = vand.u32 %v247, 4294901760
    %v4547 = vsub.f32 %v247, %v4546
    %v4548 = vand.u32 %v4547, 4294901760
    %v4549 = vsub.f32 %v4547, %v4548
    %v4550 = vand.u32 %v4549, 4294901760
    %4551 = vmatpush.msra.mxu0 %v4550
    %v4552 = vand.u32 %v246, 4294901760
    %v4553 = vsub.f32 %v246, %v4552
    %v4554 = vand.u32 %v4553, 4294901760
    %v4555 = vsub.f32 %v4553, %v4554
    %v4556 = vand.u32 %v4555, 4294901760
    %4557 = vmatpush.msra.mxu0 %v4556
    %v4558 = vand.u32 %v245, 4294901760
    %v4559 = vsub.f32 %v245, %v4558
    %v4560 = vand.u32 %v4559, 4294901760
    %v4561 = vsub.f32 %v4559, %v4560
    %v4562 = vand.u32 %v4561, 4294901760
    %4563 = vmatpush.msra.mxu0 %v4562
    %v4564 = vand.u32 %v244, 4294901760
    %v4565 = vsub.f32 %v244, %v4564
    %v4566 = vand.u32 %v4565, 4294901760
    %v4567 = vsub.f32 %v4565, %v4566
    %v4568 = vand.u32 %v4567, 4294901760
    %4569 = vmatpush.msra.mxu0 %v4568
    %v4570 = vand.u32 %v243, 4294901760
    %v4571 = vsub.f32 %v243, %v4570
    %v4572 = vand.u32 %v4571, 4294901760
    %v4573 = vsub.f32 %v4571, %v4572
    %v4574 = vand.u32 %v4573, 4294901760
    %4575 = vmatpush.msra.mxu0 %v4574
    %v4576 = vand.u32 %v242, 4294901760
    %v4577 = vsub.f32 %v242, %v4576
    %v4578 = vand.u32 %v4577, 4294901760
    %v4579 = vsub.f32 %v4577, %v4578
    %v4580 = vand.u32 %v4579, 4294901760
    %4581 = vmatpush.msra.mxu0 %v4580
    %v4582 = vand.u32 %v241, 4294901760
    %v4583 = vsub.f32 %v241, %v4582
    %v4584 = vand.u32 %v4583, 4294901760
    %v4585 = vsub.f32 %v4583, %v4584
    %v4586 = vand.u32 %v4585, 4294901760
    %4587 = vmatpush.msra.mxu0 %v4586
    %v4588 = vand.u32 %v240, 4294901760
    %v4589 = vsub.f32 %v240, %v4588
    %v4590 = vand.u32 %v4589, 4294901760
    %v4591 = vsub.f32 %v4589, %v4590
    %v4592 = vand.u32 %v4591, 4294901760
    %4593 = vmatpush.msra.mxu0 %v4592
    %v4594 = vand.u32 %v239, 4294901760
    %v4595 = vsub.f32 %v239, %v4594
    %v4596 = vand.u32 %v4595, 4294901760
    %v4597 = vsub.f32 %v4595, %v4596
    %v4598 = vand.u32 %v4597, 4294901760
    %4599 = vmatpush.msra.mxu0 %v4598
    %v4600 = vand.u32 %v238, 4294901760
    %v4601 = vsub.f32 %v238, %v4600
    %v4602 = vand.u32 %v4601, 4294901760
    %v4603 = vsub.f32 %v4601, %v4602
    %v4604 = vand.u32 %v4603, 4294901760
    %4605 = vmatpush.msra.mxu0 %v4604
    %v4606 = vand.u32 %v357, 4294901760
    %4607 = vmatmul.f32.gmra.mxu0 %v4606
    %v4608 = vpop.f32.mrf.mxu0
    %v4609 = vadd.f32 %v4508, %v4608
    %4610 = vdwg.mxu0
    %v4611 = vand.u32 %v253, 4294901760
    %v4612 = vsub.f32 %v253, %v4611
    %4613 = vmatpush.msra.mxu0 %v4612
    %v4614 = vand.u32 %v252, 4294901760
    %v4615 = vsub.f32 %v252, %v4614
    %4616 = vmatpush.msra.mxu0 %v4615
    %v4617 = vand.u32 %v251, 4294901760
    %v4618 = vsub.f32 %v251, %v4617
    %4619 = vmatpush.msra.mxu0 %v4618
    %v4620 = vand.u32 %v250, 4294901760
    %v4621 = vsub.f32 %v250, %v4620
    %4622 = vmatpush.msra.mxu0 %v4621
    %v4623 = vand.u32 %v249, 4294901760
    %v4624 = vsub.f32 %v249, %v4623
    %4625 = vmatpush.msra.mxu0 %v4624
    %v4626 = vand.u32 %v248, 4294901760
    %v4627 = vsub.f32 %v248, %v4626
    %4628 = vmatpush.msra.mxu0 %v4627
    %v4629 = vand.u32 %v247, 4294901760
    %v4630 = vsub.f32 %v247, %v4629
    %4631 = vmatpush.msra.mxu0 %v4630
    %v4632 = vand.u32 %v246, 4294901760
    %v4633 = vsub.f32 %v246, %v4632
    %4634 = vmatpush.msra.mxu0 %v4633
    %v4635 = vand.u32 %v245, 4294901760
    %v4636 = vsub.f32 %v245, %v4635
    %4637 = vmatpush.msra.mxu0 %v4636
    %v4638 = vand.u32 %v244, 4294901760
    %v4639 = vsub.f32 %v244, %v4638
    %4640 = vmatpush.msra.mxu0 %v4639
    %v4641 = vand.u32 %v243, 4294901760
    %v4642 = vsub.f32 %v243, %v4641
    %4643 = vmatpush.msra.mxu0 %v4642
    %v4644 = vand.u32 %v242, 4294901760
    %v4645 = vsub.f32 %v242, %v4644
    %4646 = vmatpush.msra.mxu0 %v4645
    %v4647 = vand.u32 %v241, 4294901760
    %v4648 = vsub.f32 %v241, %v4647
    %4649 = vmatpush.msra.mxu0 %v4648
    %v4650 = vand.u32 %v240, 4294901760
    %v4651 = vsub.f32 %v240, %v4650
    %4652 = vmatpush.msra.mxu0 %v4651
    %v4653 = vand.u32 %v239, 4294901760
    %v4654 = vsub.f32 %v239, %v4653
    %4655 = vmatpush.msra.mxu0 %v4654
    %v4656 = vand.u32 %v238, 4294901760
    %v4657 = vsub.f32 %v238, %v4656
    %4658 = vmatpush.msra.mxu0 %v4657
    %v4659 = vand.u32 %v357, 4294901760
    %v4660 = vsub.f32 %v357, %v4659
    %4661 = vmatmul.f32.gmra.mxu0 %v4660
    %v4662 = vpop.f32.mrf.mxu0
    %v4663 = vadd.f32 %v4609, %v4662
    %4664 = vdwg.mxu0
    %v4665 = vand.u32 %v253, 4294901760
    %4666 = vmatpush.msra.mxu0 %v4665
    %v4667 = vand.u32 %v252, 4294901760
    %4668 = vmatpush.msra.mxu0 %v4667
    %v4669 = vand.u32 %v251, 4294901760
    %4670 = vmatpush.msra.mxu0 %v4669
    %v4671 = vand.u32 %v250, 4294901760
    %4672 = vmatpush.msra.mxu0 %v4671
    %v4673 = vand.u32 %v249, 4294901760
    %4674 = vmatpush.msra.mxu0 %v4673
    %v4675 = vand.u32 %v248, 4294901760
    %4676 = vmatpush.msra.mxu0 %v4675
    %v4677 = vand.u32 %v247, 4294901760
    %4678 = vmatpush.msra.mxu0 %v4677
    %v4679 = vand.u32 %v246, 4294901760
    %4680 = vmatpush.msra.mxu0 %v4679
    %v4681 = vand.u32 %v245, 4294901760
    %4682 = vmatpush.msra.mxu0 %v4681
    %v4683 = vand.u32 %v244, 4294901760
    %4684 = vmatpush.msra.mxu0 %v4683
    %v4685 = vand.u32 %v243, 4294901760
    %4686 = vmatpush.msra.mxu0 %v4685
    %v4687 = vand.u32 %v242, 4294901760
    %4688 = vmatpush.msra.mxu0 %v4687
    %v4689 = vand.u32 %v241, 4294901760
    %4690 = vmatpush.msra.mxu0 %v4689
    %v4691 = vand.u32 %v240, 4294901760
    %4692 = vmatpush.msra.mxu0 %v4691
    %v4693 = vand.u32 %v239, 4294901760
    %4694 = vmatpush.msra.mxu0 %v4693
    %v4695 = vand.u32 %v238, 4294901760
    %4696 = vmatpush.msra.mxu0 %v4695
    %v4697 = vand.u32 %v357, 4294901760
    %v4698 = vsub.f32 %v357, %v4697
    %v4699 = vand.u32 %v4698, 4294901760
    %4700 = vmatmul.f32.gmra.mxu0 %v4699
    %v4701 = vpop.f32.mrf.mxu0
    %v4702 = vadd.f32 %v4663, %v4701
    %4703 = vdwg.mxu0
    %v4704 = vand.u32 %v253, 4294901760
    %v4705 = vsub.f32 %v253, %v4704
    %v4706 = vand.u32 %v4705, 4294901760
    %4707 = vmatpush.msra.mxu0 %v4706
    %v4708 = vand.u32 %v252, 4294901760
    %v4709 = vsub.f32 %v252, %v4708
    %v4710 = vand.u32 %v4709, 4294901760
    %4711 = vmatpush.msra.mxu0 %v4710
    %v4712 = vand.u32 %v251, 4294901760
    %v4713 = vsub.f32 %v251, %v4712
    %v4714 = vand.u32 %v4713, 4294901760
    %4715 = vmatpush.msra.mxu0 %v4714
    %v4716 = vand.u32 %v250, 4294901760
    %v4717 = vsub.f32 %v250, %v4716
    %v4718 = vand.u32 %v4717, 4294901760
    %4719 = vmatpush.msra.mxu0 %v4718
    %v4720 = vand.u32 %v249, 4294901760
    %v4721 = vsub.f32 %v249, %v4720
    %v4722 = vand.u32 %v4721, 4294901760
    %4723 = vmatpush.msra.mxu0 %v4722
    %v4724 = vand.u32 %v248, 4294901760
    %v4725 = vsub.f32 %v248, %v4724
    %v4726 = vand.u32 %v4725, 4294901760
    %4727 = vmatpush.msra.mxu0 %v4726
    %v4728 = vand.u32 %v247, 4294901760
    %v4729 = vsub.f32 %v247, %v4728
    %v4730 = vand.u32 %v4729, 4294901760
    %4731 = vmatpush.msra.mxu0 %v4730
    %v4732 = vand.u32 %v246, 4294901760
    %v4733 = vsub.f32 %v246, %v4732
    %v4734 = vand.u32 %v4733, 4294901760
    %4735 = vmatpush.msra.mxu0 %v4734
    %v4736 = vand.u32 %v245, 4294901760
    %v4737 = vsub.f32 %v245, %v4736
    %v4738 = vand.u32 %v4737, 4294901760
    %4739 = vmatpush.msra.mxu0 %v4738
    %v4740 = vand.u32 %v244, 4294901760
    %v4741 = vsub.f32 %v244, %v4740
    %v4742 = vand.u32 %v4741, 4294901760
    %4743 = vmatpush.msra.mxu0 %v4742
    %v4744 = vand.u32 %v243, 4294901760
    %v4745 = vsub.f32 %v243, %v4744
    %v4746 = vand.u32 %v4745, 4294901760
    %4747 = vmatpush.msra.mxu0 %v4746
    %v4748 = vand.u32 %v242, 4294901760
    %v4749 = vsub.f32 %v242, %v4748
    %v4750 = vand.u32 %v4749, 4294901760
    %4751 = vmatpush.msra.mxu0 %v4750
    %v4752 = vand.u32 %v241, 4294901760
    %v4753 = vsub.f32 %v241, %v4752
    %v4754 = vand.u32 %v4753, 4294901760
    %4755 = vmatpush.msra.mxu0 %v4754
    %v4756 = vand.u32 %v240, 4294901760
    %v4757 = vsub.f32 %v240, %v4756
    %v4758 = vand.u32 %v4757, 4294901760
    %4759 = vmatpush.msra.mxu0 %v4758
    %v4760 = vand.u32 %v239, 4294901760
    %v4761 = vsub.f32 %v239, %v4760
    %v4762 = vand.u32 %v4761, 4294901760
    %4763 = vmatpush.msra.mxu0 %v4762
    %v4764 = vand.u32 %v238, 4294901760
    %v4765 = vsub.f32 %v238, %v4764
    %v4766 = vand.u32 %v4765, 4294901760
    %4767 = vmatpush.msra.mxu0 %v4766
    %v4768 = vand.u32 %v357, 4294901760
    %4769 = vmatmul.f32.gmra.mxu0 %v4768
    %v4770 = vpop.f32.mrf.mxu0
    %v4771 = vadd.f32 %v4702, %v4770
    %4772 = vdwg.mxu0
    %v4773 = vand.u32 %v253, 4294901760
    %4774 = vmatpush.msra.mxu0 %v4773
    %v4775 = vand.u32 %v252, 4294901760
    %4776 = vmatpush.msra.mxu0 %v4775
    %v4777 = vand.u32 %v251, 4294901760
    %4778 = vmatpush.msra.mxu0 %v4777
    %v4779 = vand.u32 %v250, 4294901760
    %4780 = vmatpush.msra.mxu0 %v4779
    %v4781 = vand.u32 %v249, 4294901760
    %4782 = vmatpush.msra.mxu0 %v4781
    %v4783 = vand.u32 %v248, 4294901760
    %4784 = vmatpush.msra.mxu0 %v4783
    %v4785 = vand.u32 %v247, 4294901760
    %4786 = vmatpush.msra.mxu0 %v4785
    %v4787 = vand.u32 %v246, 4294901760
    %4788 = vmatpush.msra.mxu0 %v4787
    %v4789 = vand.u32 %v245, 4294901760
    %4790 = vmatpush.msra.mxu0 %v4789
    %v4791 = vand.u32 %v244, 4294901760
    %4792 = vmatpush.msra.mxu0 %v4791
    %v4793 = vand.u32 %v243, 4294901760
    %4794 = vmatpush.msra.mxu0 %v4793
    %v4795 = vand.u32 %v242, 4294901760
    %4796 = vmatpush.msra.mxu0 %v4795
    %v4797 = vand.u32 %v241, 4294901760
    %4798 = vmatpush.msra.mxu0 %v4797
    %v4799 = vand.u32 %v240, 4294901760
    %4800 = vmatpush.msra.mxu0 %v4799
    %v4801 = vand.u32 %v239, 4294901760
    %4802 = vmatpush.msra.mxu0 %v4801
    %v4803 = vand.u32 %v238, 4294901760
    %4804 = vmatpush.msra.mxu0 %v4803
    %v4805 = vand.u32 %v357, 4294901760
    %4806 = vmatmul.f32.gmra.mxu0 %v4805
    %v4807 = vpop.f32.mrf.mxu0
    %v4808 = vadd.f32 %v4771, %v4807
    %4809 = vdwg.mxu0
    %v4810 = vand.u32 %v269, 4294901760
    %4811 = vmatpush.msra.mxu0 %v4810
    %v4812 = vand.u32 %v268, 4294901760
    %4813 = vmatpush.msra.mxu0 %v4812
    %v4814 = vand.u32 %v267, 4294901760
    %4815 = vmatpush.msra.mxu0 %v4814
    %v4816 = vand.u32 %v266, 4294901760
    %4817 = vmatpush.msra.mxu0 %v4816
    %v4818 = vand.u32 %v265, 4294901760
    %4819 = vmatpush.msra.mxu0 %v4818
    %v4820 = vand.u32 %v264, 4294901760
    %4821 = vmatpush.msra.mxu0 %v4820
    %v4822 = vand.u32 %v263, 4294901760
    %4823 = vmatpush.msra.mxu0 %v4822
    %v4824 = vand.u32 %v262, 4294901760
    %4825 = vmatpush.msra.mxu0 %v4824
    %v4826 = vand.u32 %v261, 4294901760
    %4827 = vmatpush.msra.mxu0 %v4826
    %v4828 = vand.u32 %v260, 4294901760
    %4829 = vmatpush.msra.mxu0 %v4828
    %v4830 = vand.u32 %v259, 4294901760
    %4831 = vmatpush.msra.mxu0 %v4830
    %v4832 = vand.u32 %v258, 4294901760
    %4833 = vmatpush.msra.mxu0 %v4832
    %v4834 = vand.u32 %v257, 4294901760
    %4835 = vmatpush.msra.mxu0 %v4834
    %v4836 = vand.u32 %v256, 4294901760
    %4837 = vmatpush.msra.mxu0 %v4836
    %v4838 = vand.u32 %v255, 4294901760
    %4839 = vmatpush.msra.mxu0 %v4838
    %v4840 = vand.u32 %v254, 4294901760
    %4841 = vmatpush.msra.mxu0 %v4840
    %v4842 = vand.u32 %v358, 4294901760
    %v4843 = vsub.f32 %v358, %v4842
    %v4844 = vand.u32 %v4843, 4294901760
    %v4845 = vsub.f32 %v4843, %v4844
    %v4846 = vand.u32 %v4845, 4294901760
    %4847 = vmatmul.f32.gmra.mxu0 %v4846
    %v4848 = vpop.f32.mrf.mxu0
    %v4849 = vadd.f32 %v4808, %v4848
    %4850 = vdwg.mxu0
    %v4851 = vand.u32 %v269, 4294901760
    %v4852 = vsub.f32 %v269, %v4851
    %v4853 = vand.u32 %v4852, 4294901760
    %v4854 = vsub.f32 %v4852, %v4853
    %v4855 = vand.u32 %v4854, 4294901760
    %4856 = vmatpush.msra.mxu0 %v4855
    %v4857 = vand.u32 %v268, 4294901760
    %v4858 = vsub.f32 %v268, %v4857
    %v4859 = vand.u32 %v4858, 4294901760
    %v4860 = vsub.f32 %v4858, %v4859
    %v4861 = vand.u32 %v4860, 4294901760
    %4862 = vmatpush.msra.mxu0 %v4861
    %v4863 = vand.u32 %v267, 4294901760
    %v4864 = vsub.f32 %v267, %v4863
    %v4865 = vand.u32 %v4864, 4294901760
    %v4866 = vsub.f32 %v4864, %v4865
    %v4867 = vand.u32 %v4866, 4294901760
    %4868 = vmatpush.msra.mxu0 %v4867
    %v4869 = vand.u32 %v266, 4294901760
    %v4870 = vsub.f32 %v266, %v4869
    %v4871 = vand.u32 %v4870, 4294901760
    %v4872 = vsub.f32 %v4870, %v4871
    %v4873 = vand.u32 %v4872, 4294901760
    %4874 = vmatpush.msra.mxu0 %v4873
    %v4875 = vand.u32 %v265, 4294901760
    %v4876 = vsub.f32 %v265, %v4875
    %v4877 = vand.u32 %v4876, 4294901760
    %v4878 = vsub.f32 %v4876, %v4877
    %v4879 = vand.u32 %v4878, 4294901760
    %4880 = vmatpush.msra.mxu0 %v4879
    %v4881 = vand.u32 %v264, 4294901760
    %v4882 = vsub.f32 %v264, %v4881
    %v4883 = vand.u32 %v4882, 4294901760
    %v4884 = vsub.f32 %v4882, %v4883
    %v4885 = vand.u32 %v4884, 4294901760
    %4886 = vmatpush.msra.mxu0 %v4885
    %v4887 = vand.u32 %v263, 4294901760
    %v4888 = vsub.f32 %v263, %v4887
    %v4889 = vand.u32 %v4888, 4294901760
    %v4890 = vsub.f32 %v4888, %v4889
    %v4891 = vand.u32 %v4890, 4294901760
    %4892 = vmatpush.msra.mxu0 %v4891
    %v4893 = vand.u32 %v262, 4294901760
    %v4894 = vsub.f32 %v262, %v4893
    %v4895 = vand.u32 %v4894, 4294901760
    %v4896 = vsub.f32 %v4894, %v4895
    %v4897 = vand.u32 %v4896, 4294901760
    %4898 = vmatpush.msra.mxu0 %v4897
    %v4899 = vand.u32 %v261, 4294901760
    %v4900 = vsub.f32 %v261, %v4899
    %v4901 = vand.u32 %v4900, 4294901760
    %v4902 = vsub.f32 %v4900, %v4901
    %v4903 = vand.u32 %v4902, 4294901760
    %4904 = vmatpush.msra.mxu0 %v4903
    %v4905 = vand.u32 %v260, 4294901760
    %v4906 = vsub.f32 %v260, %v4905
    %v4907 = vand.u32 %v4906, 4294901760
    %v4908 = vsub.f32 %v4906, %v4907
    %v4909 = vand.u32 %v4908, 4294901760
    %4910 = vmatpush.msra.mxu0 %v4909
    %v4911 = vand.u32 %v259, 4294901760
    %v4912 = vsub.f32 %v259, %v4911
    %v4913 = vand.u32 %v4912, 4294901760
    %v4914 = vsub.f32 %v4912, %v4913
    %v4915 = vand.u32 %v4914, 4294901760
    %4916 = vmatpush.msra.mxu0 %v4915
    %v4917 = vand.u32 %v258, 4294901760
    %v4918 = vsub.f32 %v258, %v4917
    %v4919 = vand.u32 %v4918, 4294901760
    %v4920 = vsub.f32 %v4918, %v4919
    %v4921 = vand.u32 %v4920, 4294901760
    %4922 = vmatpush.msra.mxu0 %v4921
    %v4923 = vand.u32 %v257, 4294901760
    %v4924 = vsub.f32 %v257, %v4923
    %v4925 = vand.u32 %v4924, 4294901760
    %v4926 = vsub.f32 %v4924, %v4925
    %v4927 = vand.u32 %v4926, 4294901760
    %4928 = vmatpush.msra.mxu0 %v4927
    %v4929 = vand.u32 %v256, 4294901760
    %v4930 = vsub.f32 %v256, %v4929
    %v4931 = vand.u32 %v4930, 4294901760
    %v4932 = vsub.f32 %v4930, %v4931
    %v4933 = vand.u32 %v4932, 4294901760
    %4934 = vmatpush.msra.mxu0 %v4933
    %v4935 = vand.u32 %v255, 4294901760
    %v4936 = vsub.f32 %v255, %v4935
    %v4937 = vand.u32 %v4936, 4294901760
    %v4938 = vsub.f32 %v4936, %v4937
    %v4939 = vand.u32 %v4938, 4294901760
    %4940 = vmatpush.msra.mxu0 %v4939
    %v4941 = vand.u32 %v254, 4294901760
    %v4942 = vsub.f32 %v254, %v4941
    %v4943 = vand.u32 %v4942, 4294901760
    %v4944 = vsub.f32 %v4942, %v4943
    %v4945 = vand.u32 %v4944, 4294901760
    %4946 = vmatpush.msra.mxu0 %v4945
    %v4947 = vand.u32 %v358, 4294901760
    %4948 = vmatmul.f32.gmra.mxu0 %v4947
    %v4949 = vpop.f32.mrf.mxu0
    %v4950 = vadd.f32 %v4849, %v4949
    %4951 = vdwg.mxu0
    %v4952 = vand.u32 %v269, 4294901760
    %v4953 = vsub.f32 %v269, %v4952
    %4954 = vmatpush.msra.mxu0 %v4953
    %v4955 = vand.u32 %v268, 4294901760
    %v4956 = vsub.f32 %v268, %v4955
    %4957 = vmatpush.msra.mxu0 %v4956
    %v4958 = vand.u32 %v267, 4294901760
    %v4959 = vsub.f32 %v267, %v4958
    %4960 = vmatpush.msra.mxu0 %v4959
    %v4961 = vand.u32 %v266, 4294901760
    %v4962 = vsub.f32 %v266, %v4961
    %4963 = vmatpush.msra.mxu0 %v4962
    %v4964 = vand.u32 %v265, 4294901760
    %v4965 = vsub.f32 %v265, %v4964
    %4966 = vmatpush.msra.mxu0 %v4965
    %v4967 = vand.u32 %v264, 4294901760
    %v4968 = vsub.f32 %v264, %v4967
    %4969 = vmatpush.msra.mxu0 %v4968
    %v4970 = vand.u32 %v263, 4294901760
    %v4971 = vsub.f32 %v263, %v4970
    %4972 = vmatpush.msra.mxu0 %v4971
    %v4973 = vand.u32 %v262, 4294901760
    %v4974 = vsub.f32 %v262, %v4973
    %4975 = vmatpush.msra.mxu0 %v4974
    %v4976 = vand.u32 %v261, 4294901760
    %v4977 = vsub.f32 %v261, %v4976
    %4978 = vmatpush.msra.mxu0 %v4977
    %v4979 = vand.u32 %v260, 4294901760
    %v4980 = vsub.f32 %v260, %v4979
    %4981 = vmatpush.msra.mxu0 %v4980
    %v4982 = vand.u32 %v259, 4294901760
    %v4983 = vsub.f32 %v259, %v4982
    %4984 = vmatpush.msra.mxu0 %v4983
    %v4985 = vand.u32 %v258, 4294901760
    %v4986 = vsub.f32 %v258, %v4985
    %4987 = vmatpush.msra.mxu0 %v4986
    %v4988 = vand.u32 %v257, 4294901760
    %v4989 = vsub.f32 %v257, %v4988
    %4990 = vmatpush.msra.mxu0 %v4989
    %v4991 = vand.u32 %v256, 4294901760
    %v4992 = vsub.f32 %v256, %v4991
    %4993 = vmatpush.msra.mxu0 %v4992
    %v4994 = vand.u32 %v255, 4294901760
    %v4995 = vsub.f32 %v255, %v4994
    %4996 = vmatpush.msra.mxu0 %v4995
    %v4997 = vand.u32 %v254, 4294901760
    %v4998 = vsub.f32 %v254, %v4997
    %4999 = vmatpush.msra.mxu0 %v4998
    %v5000 = vand.u32 %v358, 4294901760
    %v5001 = vsub.f32 %v358, %v5000
    %5002 = vmatmul.f32.gmra.mxu0 %v5001
    %v5003 = vpop.f32.mrf.mxu0
    %v5004 = vadd.f32 %v4950, %v5003
    %5005 = vdwg.mxu0
    %v5006 = vand.u32 %v269, 4294901760
    %5007 = vmatpush.msra.mxu0 %v5006
    %v5008 = vand.u32 %v268, 4294901760
    %5009 = vmatpush.msra.mxu0 %v5008
    %v5010 = vand.u32 %v267, 4294901760
    %5011 = vmatpush.msra.mxu0 %v5010
    %v5012 = vand.u32 %v266, 4294901760
    %5013 = vmatpush.msra.mxu0 %v5012
    %v5014 = vand.u32 %v265, 4294901760
    %5015 = vmatpush.msra.mxu0 %v5014
    %v5016 = vand.u32 %v264, 4294901760
    %5017 = vmatpush.msra.mxu0 %v5016
    %v5018 = vand.u32 %v263, 4294901760
    %5019 = vmatpush.msra.mxu0 %v5018
    %v5020 = vand.u32 %v262, 4294901760
    %5021 = vmatpush.msra.mxu0 %v5020
    %v5022 = vand.u32 %v261, 4294901760
    %5023 = vmatpush.msra.mxu0 %v5022
    %v5024 = vand.u32 %v260, 4294901760
    %5025 = vmatpush.msra.mxu0 %v5024
    %v5026 = vand.u32 %v259, 4294901760
    %5027 = vmatpush.msra.mxu0 %v5026
    %v5028 = vand.u32 %v258, 4294901760
    %5029 = vmatpush.msra.mxu0 %v5028
    %v5030 = vand.u32 %v257, 4294901760
    %5031 = vmatpush.msra.mxu0 %v5030
    %v5032 = vand.u32 %v256, 4294901760
    %5033 = vmatpush.msra.mxu0 %v5032
    %v5034 = vand.u32 %v255, 4294901760
    %5035 = vmatpush.msra.mxu0 %v5034
    %v5036 = vand.u32 %v254, 4294901760
    %5037 = vmatpush.msra.mxu0 %v5036
    %v5038 = vand.u32 %v358, 4294901760
    %v5039 = vsub.f32 %v358, %v5038
    %v5040 = vand.u32 %v5039, 4294901760
    %5041 = vmatmul.f32.gmra.mxu0 %v5040
    %v5042 = vpop.f32.mrf.mxu0
    %v5043 = vadd.f32 %v5004, %v5042
    %5044 = vdwg.mxu0
    %v5045 = vand.u32 %v269, 4294901760
    %v5046 = vsub.f32 %v269, %v5045
    %v5047 = vand.u32 %v5046, 4294901760
    %5048 = vmatpush.msra.mxu0 %v5047
    %v5049 = vand.u32 %v268, 4294901760
    %v5050 = vsub.f32 %v268, %v5049
    %v5051 = vand.u32 %v5050, 4294901760
    %5052 = vmatpush.msra.mxu0 %v5051
    %v5053 = vand.u32 %v267, 4294901760
    %v5054 = vsub.f32 %v267, %v5053
    %v5055 = vand.u32 %v5054, 4294901760
    %5056 = vmatpush.msra.mxu0 %v5055
    %v5057 = vand.u32 %v266, 4294901760
    %v5058 = vsub.f32 %v266, %v5057
    %v5059 = vand.u32 %v5058, 4294901760
    %5060 = vmatpush.msra.mxu0 %v5059
    %v5061 = vand.u32 %v265, 4294901760
    %v5062 = vsub.f32 %v265, %v5061
    %v5063 = vand.u32 %v5062, 4294901760
    %5064 = vmatpush.msra.mxu0 %v5063
    %v5065 = vand.u32 %v264, 4294901760
    %v5066 = vsub.f32 %v264, %v5065
    %v5067 = vand.u32 %v5066, 4294901760
    %5068 = vmatpush.msra.mxu0 %v5067
    %v5069 = vand.u32 %v263, 4294901760
    %v5070 = vsub.f32 %v263, %v5069
    %v5071 = vand.u32 %v5070, 4294901760
    %5072 = vmatpush.msra.mxu0 %v5071
    %v5073 = vand.u32 %v262, 4294901760
    %v5074 = vsub.f32 %v262, %v5073
    %v5075 = vand.u32 %v5074, 4294901760
    %5076 = vmatpush.msra.mxu0 %v5075
    %v5077 = vand.u32 %v261, 4294901760
    %v5078 = vsub.f32 %v261, %v5077
    %v5079 = vand.u32 %v5078, 4294901760
    %5080 = vmatpush.msra.mxu0 %v5079
    %v5081 = vand.u32 %v260, 4294901760
    %v5082 = vsub.f32 %v260, %v5081
    %v5083 = vand.u32 %v5082, 4294901760
    %5084 = vmatpush.msra.mxu0 %v5083
    %v5085 = vand.u32 %v259, 4294901760
    %v5086 = vsub.f32 %v259, %v5085
    %v5087 = vand.u32 %v5086, 4294901760
    %5088 = vmatpush.msra.mxu0 %v5087
    %v5089 = vand.u32 %v258, 4294901760
    %v5090 = vsub.f32 %v258, %v5089
    %v5091 = vand.u32 %v5090, 4294901760
    %5092 = vmatpush.msra.mxu0 %v5091
    %v5093 = vand.u32 %v257, 4294901760
    %v5094 = vsub.f32 %v257, %v5093
    %v5095 = vand.u32 %v5094, 4294901760
    %5096 = vmatpush.msra.mxu0 %v5095
    %v5097 = vand.u32 %v256, 4294901760
    %v5098 = vsub.f32 %v256, %v5097
    %v5099 = vand.u32 %v5098, 4294901760
    %5100 = vmatpush.msra.mxu0 %v5099
    %v5101 = vand.u32 %v255, 4294901760
    %v5102 = vsub.f32 %v255, %v5101
    %v5103 = vand.u32 %v5102, 4294901760
    %5104 = vmatpush.msra.mxu0 %v5103
    %v5105 = vand.u32 %v254, 4294901760
    %v5106 = vsub.f32 %v254, %v5105
    %v5107 = vand.u32 %v5106, 4294901760
    %5108 = vmatpush.msra.mxu0 %v5107
    %v5109 = vand.u32 %v358, 4294901760
    %5110 = vmatmul.f32.gmra.mxu0 %v5109
    %v5111 = vpop.f32.mrf.mxu0
    %v5112 = vadd.f32 %v5043, %v5111
    %5113 = vdwg.mxu0
    %v5114 = vand.u32 %v269, 4294901760
    %5115 = vmatpush.msra.mxu0 %v5114
    %v5116 = vand.u32 %v268, 4294901760
    %5117 = vmatpush.msra.mxu0 %v5116
    %v5118 = vand.u32 %v267, 4294901760
    %5119 = vmatpush.msra.mxu0 %v5118
    %v5120 = vand.u32 %v266, 4294901760
    %5121 = vmatpush.msra.mxu0 %v5120
    %v5122 = vand.u32 %v265, 4294901760
    %5123 = vmatpush.msra.mxu0 %v5122
    %v5124 = vand.u32 %v264, 4294901760
    %5125 = vmatpush.msra.mxu0 %v5124
    %v5126 = vand.u32 %v263, 4294901760
    %5127 = vmatpush.msra.mxu0 %v5126
    %v5128 = vand.u32 %v262, 4294901760
    %5129 = vmatpush.msra.mxu0 %v5128
    %v5130 = vand.u32 %v261, 4294901760
    %5131 = vmatpush.msra.mxu0 %v5130
    %v5132 = vand.u32 %v260, 4294901760
    %5133 = vmatpush.msra.mxu0 %v5132
    %v5134 = vand.u32 %v259, 4294901760
    %5135 = vmatpush.msra.mxu0 %v5134
    %v5136 = vand.u32 %v258, 4294901760
    %5137 = vmatpush.msra.mxu0 %v5136
    %v5138 = vand.u32 %v257, 4294901760
    %5139 = vmatpush.msra.mxu0 %v5138
    %v5140 = vand.u32 %v256, 4294901760
    %5141 = vmatpush.msra.mxu0 %v5140
    %v5142 = vand.u32 %v255, 4294901760
    %5143 = vmatpush.msra.mxu0 %v5142
    %v5144 = vand.u32 %v254, 4294901760
    %5145 = vmatpush.msra.mxu0 %v5144
    %v5146 = vand.u32 %v358, 4294901760
    %5147 = vmatmul.f32.gmra.mxu0 %v5146
    %v5148 = vpop.f32.mrf.mxu0
    %v5149 = vadd.f32 %v5112, %v5148
    %5150 = vdwg.mxu0
    %v5151 = vand.u32 %v285, 4294901760
    %5152 = vmatpush.msra.mxu0 %v5151
    %v5153 = vand.u32 %v284, 4294901760
    %5154 = vmatpush.msra.mxu0 %v5153
    %v5155 = vand.u32 %v283, 4294901760
    %5156 = vmatpush.msra.mxu0 %v5155
    %v5157 = vand.u32 %v282, 4294901760
    %5158 = vmatpush.msra.mxu0 %v5157
    %v5159 = vand.u32 %v281, 4294901760
    %5160 = vmatpush.msra.mxu0 %v5159
    %v5161 = vand.u32 %v280, 4294901760
    %5162 = vmatpush.msra.mxu0 %v5161
    %v5163 = vand.u32 %v279, 4294901760
    %5164 = vmatpush.msra.mxu0 %v5163
    %v5165 = vand.u32 %v278, 4294901760
    %5166 = vmatpush.msra.mxu0 %v5165
    %v5167 = vand.u32 %v277, 4294901760
    %5168 = vmatpush.msra.mxu0 %v5167
    %v5169 = vand.u32 %v276, 4294901760
    %5170 = vmatpush.msra.mxu0 %v5169
    %v5171 = vand.u32 %v275, 4294901760
    %5172 = vmatpush.msra.mxu0 %v5171
    %v5173 = vand.u32 %v274, 4294901760
    %5174 = vmatpush.msra.mxu0 %v5173
    %v5175 = vand.u32 %v273, 4294901760
    %5176 = vmatpush.msra.mxu0 %v5175
    %v5177 = vand.u32 %v272, 4294901760
    %5178 = vmatpush.msra.mxu0 %v5177
    %v5179 = vand.u32 %v271, 4294901760
    %5180 = vmatpush.msra.mxu0 %v5179
    %v5181 = vand.u32 %v270, 4294901760
    %5182 = vmatpush.msra.mxu0 %v5181
    %v5183 = vand.u32 %v359, 4294901760
    %v5184 = vsub.f32 %v359, %v5183
    %v5185 = vand.u32 %v5184, 4294901760
    %v5186 = vsub.f32 %v5184, %v5185
    %v5187 = vand.u32 %v5186, 4294901760
    %5188 = vmatmul.f32.gmra.mxu0 %v5187
    %v5189 = vpop.f32.mrf.mxu0
    %v5190 = vadd.f32 %v5149, %v5189
    %5191 = vdwg.mxu0
    %v5192 = vand.u32 %v285, 4294901760
    %v5193 = vsub.f32 %v285, %v5192
    %v5194 = vand.u32 %v5193, 4294901760
    %v5195 = vsub.f32 %v5193, %v5194
    %v5196 = vand.u32 %v5195, 4294901760
    %5197 = vmatpush.msra.mxu0 %v5196
    %v5198 = vand.u32 %v284, 4294901760
    %v5199 = vsub.f32 %v284, %v5198
    %v5200 = vand.u32 %v5199, 4294901760
    %v5201 = vsub.f32 %v5199, %v5200
    %v5202 = vand.u32 %v5201, 4294901760
    %5203 = vmatpush.msra.mxu0 %v5202
    %v5204 = vand.u32 %v283, 4294901760
    %v5205 = vsub.f32 %v283, %v5204
    %v5206 = vand.u32 %v5205, 4294901760
    %v5207 = vsub.f32 %v5205, %v5206
    %v5208 = vand.u32 %v5207, 4294901760
    %5209 = vmatpush.msra.mxu0 %v5208
    %v5210 = vand.u32 %v282, 4294901760
    %v5211 = vsub.f32 %v282, %v5210
    %v5212 = vand.u32 %v5211, 4294901760
    %v5213 = vsub.f32 %v5211, %v5212
    %v5214 = vand.u32 %v5213, 4294901760
    %5215 = vmatpush.msra.mxu0 %v5214
    %v5216 = vand.u32 %v281, 4294901760
    %v5217 = vsub.f32 %v281, %v5216
    %v5218 = vand.u32 %v5217, 4294901760
    %v5219 = vsub.f32 %v5217, %v5218
    %v5220 = vand.u32 %v5219, 4294901760
    %5221 = vmatpush.msra.mxu0 %v5220
    %v5222 = vand.u32 %v280, 4294901760
    %v5223 = vsub.f32 %v280, %v5222
    %v5224 = vand.u32 %v5223, 4294901760
    %v5225 = vsub.f32 %v5223, %v5224
    %v5226 = vand.u32 %v5225, 4294901760
    %5227 = vmatpush.msra.mxu0 %v5226
    %v5228 = vand.u32 %v279, 4294901760
    %v5229 = vsub.f32 %v279, %v5228
    %v5230 = vand.u32 %v5229, 4294901760
    %v5231 = vsub.f32 %v5229, %v5230
    %v5232 = vand.u32 %v5231, 4294901760
    %5233 = vmatpush.msra.mxu0 %v5232
    %v5234 = vand.u32 %v278, 4294901760
    %v5235 = vsub.f32 %v278, %v5234
    %v5236 = vand.u32 %v5235, 4294901760
    %v5237 = vsub.f32 %v5235, %v5236
    %v5238 = vand.u32 %v5237, 4294901760
    %5239 = vmatpush.msra.mxu0 %v5238
    %v5240 = vand.u32 %v277, 4294901760
    %v5241 = vsub.f32 %v277, %v5240
    %v5242 = vand.u32 %v5241, 4294901760
    %v5243 = vsub.f32 %v5241, %v5242
    %v5244 = vand.u32 %v5243, 4294901760
    %5245 = vmatpush.msra.mxu0 %v5244
    %v5246 = vand.u32 %v276, 4294901760
    %v5247 = vsub.f32 %v276, %v5246
    %v5248 = vand.u32 %v5247, 4294901760
    %v5249 = vsub.f32 %v5247, %v5248
    %v5250 = vand.u32 %v5249, 4294901760
    %5251 = vmatpush.msra.mxu0 %v5250
    %v5252 = vand.u32 %v275, 4294901760
    %v5253 = vsub.f32 %v275, %v5252
    %v5254 = vand.u32 %v5253, 4294901760
    %v5255 = vsub.f32 %v5253, %v5254
    %v5256 = vand.u32 %v5255, 4294901760
    %5257 = vmatpush.msra.mxu0 %v5256
    %v5258 = vand.u32 %v274, 4294901760
    %v5259 = vsub.f32 %v274, %v5258
    %v5260 = vand.u32 %v5259, 4294901760
    %v5261 = vsub.f32 %v5259, %v5260
    %v5262 = vand.u32 %v5261, 4294901760
    %5263 = vmatpush.msra.mxu0 %v5262
    %v5264 = vand.u32 %v273, 4294901760
    %v5265 = vsub.f32 %v273, %v5264
    %v5266 = vand.u32 %v5265, 4294901760
    %v5267 = vsub.f32 %v5265, %v5266
    %v5268 = vand.u32 %v5267, 4294901760
    %5269 = vmatpush.msra.mxu0 %v5268
    %v5270 = vand.u32 %v272, 4294901760
    %v5271 = vsub.f32 %v272, %v5270
    %v5272 = vand.u32 %v5271, 4294901760
    %v5273 = vsub.f32 %v5271, %v5272
    %v5274 = vand.u32 %v5273, 4294901760
    %5275 = vmatpush.msra.mxu0 %v5274
    %v5276 = vand.u32 %v271, 4294901760
    %v5277 = vsub.f32 %v271, %v5276
    %v5278 = vand.u32 %v5277, 4294901760
    %v5279 = vsub.f32 %v5277, %v5278
    %v5280 = vand.u32 %v5279, 4294901760
    %5281 = vmatpush.msra.mxu0 %v5280
    %v5282 = vand.u32 %v270, 4294901760
    %v5283 = vsub.f32 %v270, %v5282
    %v5284 = vand.u32 %v5283, 4294901760
    %v5285 = vsub.f32 %v5283, %v5284
    %v5286 = vand.u32 %v5285, 4294901760
    %5287 = vmatpush.msra.mxu0 %v5286
    %v5288 = vand.u32 %v359, 4294901760
    %5289 = vmatmul.f32.gmra.mxu0 %v5288
    %v5290 = vpop.f32.mrf.mxu0
    %v5291 = vadd.f32 %v5190, %v5290
    %5292 = vdwg.mxu0
    %v5293 = vand.u32 %v285, 4294901760
    %v5294 = vsub.f32 %v285, %v5293
    %5295 = vmatpush.msra.mxu0 %v5294
    %v5296 = vand.u32 %v284, 4294901760
    %v5297 = vsub.f32 %v284, %v5296
    %5298 = vmatpush.msra.mxu0 %v5297
    %v5299 = vand.u32 %v283, 4294901760
    %v5300 = vsub.f32 %v283, %v5299
    %5301 = vmatpush.msra.mxu0 %v5300
    %v5302 = vand.u32 %v282, 4294901760
    %v5303 = vsub.f32 %v282, %v5302
    %5304 = vmatpush.msra.mxu0 %v5303
    %v5305 = vand.u32 %v281, 4294901760
    %v5306 = vsub.f32 %v281, %v5305
    %5307 = vmatpush.msra.mxu0 %v5306
    %v5308 = vand.u32 %v280, 4294901760
    %v5309 = vsub.f32 %v280, %v5308
    %5310 = vmatpush.msra.mxu0 %v5309
    %v5311 = vand.u32 %v279, 4294901760
    %v5312 = vsub.f32 %v279, %v5311
    %5313 = vmatpush.msra.mxu0 %v5312
    %v5314 = vand.u32 %v278, 4294901760
    %v5315 = vsub.f32 %v278, %v5314
    %5316 = vmatpush.msra.mxu0 %v5315
    %v5317 = vand.u32 %v277, 4294901760
    %v5318 = vsub.f32 %v277, %v5317
    %5319 = vmatpush.msra.mxu0 %v5318
    %v5320 = vand.u32 %v276, 4294901760
    %v5321 = vsub.f32 %v276, %v5320
    %5322 = vmatpush.msra.mxu0 %v5321
    %v5323 = vand.u32 %v275, 4294901760
    %v5324 = vsub.f32 %v275, %v5323
    %5325 = vmatpush.msra.mxu0 %v5324
    %v5326 = vand.u32 %v274, 4294901760
    %v5327 = vsub.f32 %v274, %v5326
    %5328 = vmatpush.msra.mxu0 %v5327
    %v5329 = vand.u32 %v273, 4294901760
    %v5330 = vsub.f32 %v273, %v5329
    %5331 = vmatpush.msra.mxu0 %v5330
    %v5332 = vand.u32 %v272, 4294901760
    %v5333 = vsub.f32 %v272, %v5332
    %5334 = vmatpush.msra.mxu0 %v5333
    %v5335 = vand.u32 %v271, 4294901760
    %v5336 = vsub.f32 %v271, %v5335
    %5337 = vmatpush.msra.mxu0 %v5336
    %v5338 = vand.u32 %v270, 4294901760
    %v5339 = vsub.f32 %v270, %v5338
    %5340 = vmatpush.msra.mxu0 %v5339
    %v5341 = vand.u32 %v359, 4294901760
    %v5342 = vsub.f32 %v359, %v5341
    %5343 = vmatmul.f32.gmra.mxu0 %v5342
    %v5344 = vpop.f32.mrf.mxu0
    %v5345 = vadd.f32 %v5291, %v5344
    %5346 = vdwg.mxu0
    %v5347 = vand.u32 %v285, 4294901760
    %5348 = vmatpush.msra.mxu0 %v5347
    %v5349 = vand.u32 %v284, 4294901760
    %5350 = vmatpush.msra.mxu0 %v5349
    %v5351 = vand.u32 %v283, 4294901760
    %5352 = vmatpush.msra.mxu0 %v5351
    %v5353 = vand.u32 %v282, 4294901760
    %5354 = vmatpush.msra.mxu0 %v5353
    %v5355 = vand.u32 %v281, 4294901760
    %5356 = vmatpush.msra.mxu0 %v5355
    %v5357 = vand.u32 %v280, 4294901760
    %5358 = vmatpush.msra.mxu0 %v5357
    %v5359 = vand.u32 %v279, 4294901760
    %5360 = vmatpush.msra.mxu0 %v5359
    %v5361 = vand.u32 %v278, 4294901760
    %5362 = vmatpush.msra.mxu0 %v5361
    %v5363 = vand.u32 %v277, 4294901760
    %5364 = vmatpush.msra.mxu0 %v5363
    %v5365 = vand.u32 %v276, 4294901760
    %5366 = vmatpush.msra.mxu0 %v5365
    %v5367 = vand.u32 %v275, 4294901760
    %5368 = vmatpush.msra.mxu0 %v5367
    %v5369 = vand.u32 %v274, 4294901760
    %5370 = vmatpush.msra.mxu0 %v5369
    %v5371 = vand.u32 %v273, 4294901760
    %5372 = vmatpush.msra.mxu0 %v5371
    %v5373 = vand.u32 %v272, 4294901760
    %5374 = vmatpush.msra.mxu0 %v5373
    %v5375 = vand.u32 %v271, 4294901760
    %5376 = vmatpush.msra.mxu0 %v5375
    %v5377 = vand.u32 %v270, 4294901760
    %5378 = vmatpush.msra.mxu0 %v5377
    %v5379 = vand.u32 %v359, 4294901760
    %v5380 = vsub.f32 %v359, %v5379
    %v5381 = vand.u32 %v5380, 4294901760
    %5382 = vmatmul.f32.gmra.mxu0 %v5381
    %v5383 = vpop.f32.mrf.mxu0
    %v5384 = vadd.f32 %v5345, %v5383
    %5385 = vdwg.mxu0
    %v5386 = vand.u32 %v285, 4294901760
    %v5387 = vsub.f32 %v285, %v5386
    %v5388 = vand.u32 %v5387, 4294901760
    %5389 = vmatpush.msra.mxu0 %v5388
    %v5390 = vand.u32 %v284, 4294901760
    %v5391 = vsub.f32 %v284, %v5390
    %v5392 = vand.u32 %v5391, 4294901760
    %5393 = vmatpush.msra.mxu0 %v5392
    %v5394 = vand.u32 %v283, 4294901760
    %v5395 = vsub.f32 %v283, %v5394
    %v5396 = vand.u32 %v5395, 4294901760
    %5397 = vmatpush.msra.mxu0 %v5396
    %v5398 = vand.u32 %v282, 4294901760
    %v5399 = vsub.f32 %v282, %v5398
    %v5400 = vand.u32 %v5399, 4294901760
    %5401 = vmatpush.msra.mxu0 %v5400
    %v5402 = vand.u32 %v281, 4294901760
    %v5403 = vsub.f32 %v281, %v5402
    %v5404 = vand.u32 %v5403, 4294901760
    %5405 = vmatpush.msra.mxu0 %v5404
    %v5406 = vand.u32 %v280, 4294901760
    %v5407 = vsub.f32 %v280, %v5406
    %v5408 = vand.u32 %v5407, 4294901760
    %5409 = vmatpush.msra.mxu0 %v5408
    %v5410 = vand.u32 %v279, 4294901760
    %v5411 = vsub.f32 %v279, %v5410
    %v5412 = vand.u32 %v5411, 4294901760
    %5413 = vmatpush.msra.mxu0 %v5412
    %v5414 = vand.u32 %v278, 4294901760
    %v5415 = vsub.f32 %v278, %v5414
    %v5416 = vand.u32 %v5415, 4294901760
    %5417 = vmatpush.msra.mxu0 %v5416
    %v5418 = vand.u32 %v277, 4294901760
    %v5419 = vsub.f32 %v277, %v5418
    %v5420 = vand.u32 %v5419, 4294901760
    %5421 = vmatpush.msra.mxu0 %v5420
    %v5422 = vand.u32 %v276, 4294901760
    %v5423 = vsub.f32 %v276, %v5422
    %v5424 = vand.u32 %v5423, 4294901760
    %5425 = vmatpush.msra.mxu0 %v5424
    %v5426 = vand.u32 %v275, 4294901760
    %v5427 = vsub.f32 %v275, %v5426
    %v5428 = vand.u32 %v5427, 4294901760
    %5429 = vmatpush.msra.mxu0 %v5428
    %v5430 = vand.u32 %v274, 4294901760
    %v5431 = vsub.f32 %v274, %v5430
    %v5432 = vand.u32 %v5431, 4294901760
    %5433 = vmatpush.msra.mxu0 %v5432
    %v5434 = vand.u32 %v273, 4294901760
    %v5435 = vsub.f32 %v273, %v5434
    %v5436 = vand.u32 %v5435, 4294901760
    %5437 = vmatpush.msra.mxu0 %v5436
    %v5438 = vand.u32 %v272, 4294901760
    %v5439 = vsub.f32 %v272, %v5438
    %v5440 = vand.u32 %v5439, 4294901760
    %5441 = vmatpush.msra.mxu0 %v5440
    %v5442 = vand.u32 %v271, 4294901760
    %v5443 = vsub.f32 %v271, %v5442
    %v5444 = vand.u32 %v5443, 4294901760
    %5445 = vmatpush.msra.mxu0 %v5444
    %v5446 = vand.u32 %v270, 4294901760
    %v5447 = vsub.f32 %v270, %v5446
    %v5448 = vand.u32 %v5447, 4294901760
    %5449 = vmatpush.msra.mxu0 %v5448
    %v5450 = vand.u32 %v359, 4294901760
    %5451 = vmatmul.f32.gmra.mxu0 %v5450
    %v5452 = vpop.f32.mrf.mxu0
    %v5453 = vadd.f32 %v5384, %v5452
    %5454 = vdwg.mxu0
    %v5455 = vand.u32 %v285, 4294901760
    %5456 = vmatpush.msra.mxu0 %v5455
    %v5457 = vand.u32 %v284, 4294901760
    %5458 = vmatpush.msra.mxu0 %v5457
    %v5459 = vand.u32 %v283, 4294901760
    %5460 = vmatpush.msra.mxu0 %v5459
    %v5461 = vand.u32 %v282, 4294901760
    %5462 = vmatpush.msra.mxu0 %v5461
    %v5463 = vand.u32 %v281, 4294901760
    %5464 = vmatpush.msra.mxu0 %v5463
    %v5465 = vand.u32 %v280, 4294901760
    %5466 = vmatpush.msra.mxu0 %v5465
    %v5467 = vand.u32 %v279, 4294901760
    %5468 = vmatpush.msra.mxu0 %v5467
    %v5469 = vand.u32 %v278, 4294901760
    %5470 = vmatpush.msra.mxu0 %v5469
    %v5471 = vand.u32 %v277, 4294901760
    %5472 = vmatpush.msra.mxu0 %v5471
    %v5473 = vand.u32 %v276, 4294901760
    %5474 = vmatpush.msra.mxu0 %v5473
    %v5475 = vand.u32 %v275, 4294901760
    %5476 = vmatpush.msra.mxu0 %v5475
    %v5477 = vand.u32 %v274, 4294901760
    %5478 = vmatpush.msra.mxu0 %v5477
    %v5479 = vand.u32 %v273, 4294901760
    %5480 = vmatpush.msra.mxu0 %v5479
    %v5481 = vand.u32 %v272, 4294901760
    %5482 = vmatpush.msra.mxu0 %v5481
    %v5483 = vand.u32 %v271, 4294901760
    %5484 = vmatpush.msra.mxu0 %v5483
    %v5485 = vand.u32 %v270, 4294901760
    %5486 = vmatpush.msra.mxu0 %v5485
    %v5487 = vand.u32 %v359, 4294901760
    %5488 = vmatmul.f32.gmra.mxu0 %v5487
    %v5489 = vpop.f32.mrf.mxu0
    %v5490 = vadd.f32 %v5453, %v5489
    %5491 = vdwg.mxu0
    %v5492 = vand.u32 %v301, 4294901760
    %5493 = vmatpush.msra.mxu0 %v5492
    %v5494 = vand.u32 %v300, 4294901760
    %5495 = vmatpush.msra.mxu0 %v5494
    %v5496 = vand.u32 %v299, 4294901760
    %5497 = vmatpush.msra.mxu0 %v5496
    %v5498 = vand.u32 %v298, 4294901760
    %5499 = vmatpush.msra.mxu0 %v5498
    %v5500 = vand.u32 %v297, 4294901760
    %5501 = vmatpush.msra.mxu0 %v5500
    %v5502 = vand.u32 %v296, 4294901760
    %5503 = vmatpush.msra.mxu0 %v5502
    %v5504 = vand.u32 %v295, 4294901760
    %5505 = vmatpush.msra.mxu0 %v5504
    %v5506 = vand.u32 %v294, 4294901760
    %5507 = vmatpush.msra.mxu0 %v5506
    %v5508 = vand.u32 %v293, 4294901760
    %5509 = vmatpush.msra.mxu0 %v5508
    %v5510 = vand.u32 %v292, 4294901760
    %5511 = vmatpush.msra.mxu0 %v5510
    %v5512 = vand.u32 %v291, 4294901760
    %5513 = vmatpush.msra.mxu0 %v5512
    %v5514 = vand.u32 %v290, 4294901760
    %5515 = vmatpush.msra.mxu0 %v5514
    %v5516 = vand.u32 %v289, 4294901760
    %5517 = vmatpush.msra.mxu0 %v5516
    %v5518 = vand.u32 %v288, 4294901760
    %5519 = vmatpush.msra.mxu0 %v5518
    %v5520 = vand.u32 %v287, 4294901760
    %5521 = vmatpush.msra.mxu0 %v5520
    %v5522 = vand.u32 %v286, 4294901760
    %5523 = vmatpush.msra.mxu0 %v5522
    %v5524 = vand.u32 %v360, 4294901760
    %v5525 = vsub.f32 %v360, %v5524
    %v5526 = vand.u32 %v5525, 4294901760
    %v5527 = vsub.f32 %v5525, %v5526
    %v5528 = vand.u32 %v5527, 4294901760
    %5529 = vmatmul.f32.gmra.mxu0 %v5528
    %v5530 = vpop.f32.mrf.mxu0
    %v5531 = vadd.f32 %v5490, %v5530
    %5532 = vdwg.mxu0
    %v5533 = vand.u32 %v301, 4294901760
    %v5534 = vsub.f32 %v301, %v5533
    %v5535 = vand.u32 %v5534, 4294901760
    %v5536 = vsub.f32 %v5534, %v5535
    %v5537 = vand.u32 %v5536, 4294901760
    %5538 = vmatpush.msra.mxu0 %v5537
    %v5539 = vand.u32 %v300, 4294901760
    %v5540 = vsub.f32 %v300, %v5539
    %v5541 = vand.u32 %v5540, 4294901760
    %v5542 = vsub.f32 %v5540, %v5541
    %v5543 = vand.u32 %v5542, 4294901760
    %5544 = vmatpush.msra.mxu0 %v5543
    %v5545 = vand.u32 %v299, 4294901760
    %v5546 = vsub.f32 %v299, %v5545
    %v5547 = vand.u32 %v5546, 4294901760
    %v5548 = vsub.f32 %v5546, %v5547
    %v5549 = vand.u32 %v5548, 4294901760
    %5550 = vmatpush.msra.mxu0 %v5549
    %v5551 = vand.u32 %v298, 4294901760
    %v5552 = vsub.f32 %v298, %v5551
    %v5553 = vand.u32 %v5552, 4294901760
    %v5554 = vsub.f32 %v5552, %v5553
    %v5555 = vand.u32 %v5554, 4294901760
    %5556 = vmatpush.msra.mxu0 %v5555
    %v5557 = vand.u32 %v297, 4294901760
    %v5558 = vsub.f32 %v297, %v5557
    %v5559 = vand.u32 %v5558, 4294901760
    %v5560 = vsub.f32 %v5558, %v5559
    %v5561 = vand.u32 %v5560, 4294901760
    %5562 = vmatpush.msra.mxu0 %v5561
    %v5563 = vand.u32 %v296, 4294901760
    %v5564 = vsub.f32 %v296, %v5563
    %v5565 = vand.u32 %v5564, 4294901760
    %v5566 = vsub.f32 %v5564, %v5565
    %v5567 = vand.u32 %v5566, 4294901760
    %5568 = vmatpush.msra.mxu0 %v5567
    %v5569 = vand.u32 %v295, 4294901760
    %v5570 = vsub.f32 %v295, %v5569
    %v5571 = vand.u32 %v5570, 4294901760
    %v5572 = vsub.f32 %v5570, %v5571
    %v5573 = vand.u32 %v5572, 4294901760
    %5574 = vmatpush.msra.mxu0 %v5573
    %v5575 = vand.u32 %v294, 4294901760
    %v5576 = vsub.f32 %v294, %v5575
    %v5577 = vand.u32 %v5576, 4294901760
    %v5578 = vsub.f32 %v5576, %v5577
    %v5579 = vand.u32 %v5578, 4294901760
    %5580 = vmatpush.msra.mxu0 %v5579
    %v5581 = vand.u32 %v293, 4294901760
    %v5582 = vsub.f32 %v293, %v5581
    %v5583 = vand.u32 %v5582, 4294901760
    %v5584 = vsub.f32 %v5582, %v5583
    %v5585 = vand.u32 %v5584, 4294901760
    %5586 = vmatpush.msra.mxu0 %v5585
    %v5587 = vand.u32 %v292, 4294901760
    %v5588 = vsub.f32 %v292, %v5587
    %v5589 = vand.u32 %v5588, 4294901760
    %v5590 = vsub.f32 %v5588, %v5589
    %v5591 = vand.u32 %v5590, 4294901760
    %5592 = vmatpush.msra.mxu0 %v5591
    %v5593 = vand.u32 %v291, 4294901760
    %v5594 = vsub.f32 %v291, %v5593
    %v5595 = vand.u32 %v5594, 4294901760
    %v5596 = vsub.f32 %v5594, %v5595
    %v5597 = vand.u32 %v5596, 4294901760
    %5598 = vmatpush.msra.mxu0 %v5597
    %v5599 = vand.u32 %v290, 4294901760
    %v5600 = vsub.f32 %v290, %v5599
    %v5601 = vand.u32 %v5600, 4294901760
    %v5602 = vsub.f32 %v5600, %v5601
    %v5603 = vand.u32 %v5602, 4294901760
    %5604 = vmatpush.msra.mxu0 %v5603
    %v5605 = vand.u32 %v289, 4294901760
    %v5606 = vsub.f32 %v289, %v5605
    %v5607 = vand.u32 %v5606, 4294901760
    %v5608 = vsub.f32 %v5606, %v5607
    %v5609 = vand.u32 %v5608, 4294901760
    %5610 = vmatpush.msra.mxu0 %v5609
    %v5611 = vand.u32 %v288, 4294901760
    %v5612 = vsub.f32 %v288, %v5611
    %v5613 = vand.u32 %v5612, 4294901760
    %v5614 = vsub.f32 %v5612, %v5613
    %v5615 = vand.u32 %v5614, 4294901760
    %5616 = vmatpush.msra.mxu0 %v5615
    %v5617 = vand.u32 %v287, 4294901760
    %v5618 = vsub.f32 %v287, %v5617
    %v5619 = vand.u32 %v5618, 4294901760
    %v5620 = vsub.f32 %v5618, %v5619
    %v5621 = vand.u32 %v5620, 4294901760
    %5622 = vmatpush.msra.mxu0 %v5621
    %v5623 = vand.u32 %v286, 4294901760
    %v5624 = vsub.f32 %v286, %v5623
    %v5625 = vand.u32 %v5624, 4294901760
    %v5626 = vsub.f32 %v5624, %v5625
    %v5627 = vand.u32 %v5626, 4294901760
    %5628 = vmatpush.msra.mxu0 %v5627
    %v5629 = vand.u32 %v360, 4294901760
    %5630 = vmatmul.f32.gmra.mxu0 %v5629
    %v5631 = vpop.f32.mrf.mxu0
    %v5632 = vadd.f32 %v5531, %v5631
    %5633 = vdwg.mxu0
    %v5634 = vand.u32 %v301, 4294901760
    %v5635 = vsub.f32 %v301, %v5634
    %5636 = vmatpush.msra.mxu0 %v5635
    %v5637 = vand.u32 %v300, 4294901760
    %v5638 = vsub.f32 %v300, %v5637
    %5639 = vmatpush.msra.mxu0 %v5638
    %v5640 = vand.u32 %v299, 4294901760
    %v5641 = vsub.f32 %v299, %v5640
    %5642 = vmatpush.msra.mxu0 %v5641
    %v5643 = vand.u32 %v298, 4294901760
    %v5644 = vsub.f32 %v298, %v5643
    %5645 = vmatpush.msra.mxu0 %v5644
    %v5646 = vand.u32 %v297, 4294901760
    %v5647 = vsub.f32 %v297, %v5646
    %5648 = vmatpush.msra.mxu0 %v5647
    %v5649 = vand.u32 %v296, 4294901760
    %v5650 = vsub.f32 %v296, %v5649
    %5651 = vmatpush.msra.mxu0 %v5650
    %v5652 = vand.u32 %v295, 4294901760
    %v5653 = vsub.f32 %v295, %v5652
    %5654 = vmatpush.msra.mxu0 %v5653
    %v5655 = vand.u32 %v294, 4294901760
    %v5656 = vsub.f32 %v294, %v5655
    %5657 = vmatpush.msra.mxu0 %v5656
    %v5658 = vand.u32 %v293, 4294901760
    %v5659 = vsub.f32 %v293, %v5658
    %5660 = vmatpush.msra.mxu0 %v5659
    %v5661 = vand.u32 %v292, 4294901760
    %v5662 = vsub.f32 %v292, %v5661
    %5663 = vmatpush.msra.mxu0 %v5662
    %v5664 = vand.u32 %v291, 4294901760
    %v5665 = vsub.f32 %v291, %v5664
    %5666 = vmatpush.msra.mxu0 %v5665
    %v5667 = vand.u32 %v290, 4294901760
    %v5668 = vsub.f32 %v290, %v5667
    %5669 = vmatpush.msra.mxu0 %v5668
    %v5670 = vand.u32 %v289, 4294901760
    %v5671 = vsub.f32 %v289, %v5670
    %5672 = vmatpush.msra.mxu0 %v5671
    %v5673 = vand.u32 %v288, 4294901760
    %v5674 = vsub.f32 %v288, %v5673
    %5675 = vmatpush.msra.mxu0 %v5674
    %v5676 = vand.u32 %v287, 4294901760
    %v5677 = vsub.f32 %v287, %v5676
    %5678 = vmatpush.msra.mxu0 %v5677
    %v5679 = vand.u32 %v286, 4294901760
    %v5680 = vsub.f32 %v286, %v5679
    %5681 = vmatpush.msra.mxu0 %v5680
    %v5682 = vand.u32 %v360, 4294901760
    %v5683 = vsub.f32 %v360, %v5682
    %5684 = vmatmul.f32.gmra.mxu0 %v5683
    %v5685 = vpop.f32.mrf.mxu0
    %v5686 = vadd.f32 %v5632, %v5685
    %5687 = vdwg.mxu0
    %v5688 = vand.u32 %v301, 4294901760
    %5689 = vmatpush.msra.mxu0 %v5688
    %v5690 = vand.u32 %v300, 4294901760
    %5691 = vmatpush.msra.mxu0 %v5690
    %v5692 = vand.u32 %v299, 4294901760
    %5693 = vmatpush.msra.mxu0 %v5692
    %v5694 = vand.u32 %v298, 4294901760
    %5695 = vmatpush.msra.mxu0 %v5694
    %v5696 = vand.u32 %v297, 4294901760
    %5697 = vmatpush.msra.mxu0 %v5696
    %v5698 = vand.u32 %v296, 4294901760
    %5699 = vmatpush.msra.mxu0 %v5698
    %v5700 = vand.u32 %v295, 4294901760
    %5701 = vmatpush.msra.mxu0 %v5700
    %v5702 = vand.u32 %v294, 4294901760
    %5703 = vmatpush.msra.mxu0 %v5702
    %v5704 = vand.u32 %v293, 4294901760
    %5705 = vmatpush.msra.mxu0 %v5704
    %v5706 = vand.u32 %v292, 4294901760
    %5707 = vmatpush.msra.mxu0 %v5706
    %v5708 = vand.u32 %v291, 4294901760
    %5709 = vmatpush.msra.mxu0 %v5708
    %v5710 = vand.u32 %v290, 4294901760
    %5711 = vmatpush.msra.mxu0 %v5710
    %v5712 = vand.u32 %v289, 4294901760
    %5713 = vmatpush.msra.mxu0 %v5712
    %v5714 = vand.u32 %v288, 4294901760
    %5715 = vmatpush.msra.mxu0 %v5714
    %v5716 = vand.u32 %v287, 4294901760
    %5717 = vmatpush.msra.mxu0 %v5716
    %v5718 = vand.u32 %v286, 4294901760
    %5719 = vmatpush.msra.mxu0 %v5718
    %v5720 = vand.u32 %v360, 4294901760
    %v5721 = vsub.f32 %v360, %v5720
    %v5722 = vand.u32 %v5721, 4294901760
    %5723 = vmatmul.f32.gmra.mxu0 %v5722
    %v5724 = vpop.f32.mrf.mxu0
    %v5725 = vadd.f32 %v5686, %v5724
    %5726 = vdwg.mxu0
    %v5727 = vand.u32 %v301, 4294901760
    %v5728 = vsub.f32 %v301, %v5727
    %v5729 = vand.u32 %v5728, 4294901760
    %5730 = vmatpush.msra.mxu0 %v5729
    %v5731 = vand.u32 %v300, 4294901760
    %v5732 = vsub.f32 %v300, %v5731
    %v5733 = vand.u32 %v5732, 4294901760
    %5734 = vmatpush.msra.mxu0 %v5733
    %v5735 = vand.u32 %v299, 4294901760
    %v5736 = vsub.f32 %v299, %v5735
    %v5737 = vand.u32 %v5736, 4294901760
    %5738 = vmatpush.msra.mxu0 %v5737
    %v5739 = vand.u32 %v298, 4294901760
    %v5740 = vsub.f32 %v298, %v5739
    %v5741 = vand.u32 %v5740, 4294901760
    %5742 = vmatpush.msra.mxu0 %v5741
    %v5743 = vand.u32 %v297, 4294901760
    %v5744 = vsub.f32 %v297, %v5743
    %v5745 = vand.u32 %v5744, 4294901760
    %5746 = vmatpush.msra.mxu0 %v5745
    %v5747 = vand.u32 %v296, 4294901760
    %v5748 = vsub.f32 %v296, %v5747
    %v5749 = vand.u32 %v5748, 4294901760
    %5750 = vmatpush.msra.mxu0 %v5749
    %v5751 = vand.u32 %v295, 4294901760
    %v5752 = vsub.f32 %v295, %v5751
    %v5753 = vand.u32 %v5752, 4294901760
    %5754 = vmatpush.msra.mxu0 %v5753
    %v5755 = vand.u32 %v294, 4294901760
    %v5756 = vsub.f32 %v294, %v5755
    %v5757 = vand.u32 %v5756, 4294901760
    %5758 = vmatpush.msra.mxu0 %v5757
    %v5759 = vand.u32 %v293, 4294901760
    %v5760 = vsub.f32 %v293, %v5759
    %v5761 = vand.u32 %v5760, 4294901760
    %5762 = vmatpush.msra.mxu0 %v5761
    %v5763 = vand.u32 %v292, 4294901760
    %v5764 = vsub.f32 %v292, %v5763
    %v5765 = vand.u32 %v5764, 4294901760
    %5766 = vmatpush.msra.mxu0 %v5765
    %v5767 = vand.u32 %v291, 4294901760
    %v5768 = vsub.f32 %v291, %v5767
    %v5769 = vand.u32 %v5768, 4294901760
    %5770 = vmatpush.msra.mxu0 %v5769
    %v5771 = vand.u32 %v290, 4294901760
    %v5772 = vsub.f32 %v290, %v5771
    %v5773 = vand.u32 %v5772, 4294901760
    %5774 = vmatpush.msra.mxu0 %v5773
    %v5775 = vand.u32 %v289, 4294901760
    %v5776 = vsub.f32 %v289, %v5775
    %v5777 = vand.u32 %v5776, 4294901760
    %5778 = vmatpush.msra.mxu0 %v5777
    %v5779 = vand.u32 %v288, 4294901760
    %v5780 = vsub.f32 %v288, %v5779
    %v5781 = vand.u32 %v5780, 4294901760
    %5782 = vmatpush.msra.mxu0 %v5781
    %v5783 = vand.u32 %v287, 4294901760
    %v5784 = vsub.f32 %v287, %v5783
    %v5785 = vand.u32 %v5784, 4294901760
    %5786 = vmatpush.msra.mxu0 %v5785
    %v5787 = vand.u32 %v286, 4294901760
    %v5788 = vsub.f32 %v286, %v5787
    %v5789 = vand.u32 %v5788, 4294901760
    %5790 = vmatpush.msra.mxu0 %v5789
    %v5791 = vand.u32 %v360, 4294901760
    %5792 = vmatmul.f32.gmra.mxu0 %v5791
    %v5793 = vpop.f32.mrf.mxu0
    %v5794 = vadd.f32 %v5725, %v5793
    %5795 = vdwg.mxu0
    %v5796 = vand.u32 %v301, 4294901760
    %5797 = vmatpush.msra.mxu0 %v5796
    %v5798 = vand.u32 %v300, 4294901760
    %5799 = vmatpush.msra.mxu0 %v5798
    %v5800 = vand.u32 %v299, 4294901760
    %5801 = vmatpush.msra.mxu0 %v5800
    %v5802 = vand.u32 %v298, 4294901760
    %5803 = vmatpush.msra.mxu0 %v5802
    %v5804 = vand.u32 %v297, 4294901760
    %5805 = vmatpush.msra.mxu0 %v5804
    %v5806 = vand.u32 %v296, 4294901760
    %5807 = vmatpush.msra.mxu0 %v5806
    %v5808 = vand.u32 %v295, 4294901760
    %5809 = vmatpush.msra.mxu0 %v5808
    %v5810 = vand.u32 %v294, 4294901760
    %5811 = vmatpush.msra.mxu0 %v5810
    %v5812 = vand.u32 %v293, 4294901760
    %5813 = vmatpush.msra.mxu0 %v5812
    %v5814 = vand.u32 %v292, 4294901760
    %5815 = vmatpush.msra.mxu0 %v5814
    %v5816 = vand.u32 %v291, 4294901760
    %5817 = vmatpush.msra.mxu0 %v5816
    %v5818 = vand.u32 %v290, 4294901760
    %5819 = vmatpush.msra.mxu0 %v5818
    %v5820 = vand.u32 %v289, 4294901760
    %5821 = vmatpush.msra.mxu0 %v5820
    %v5822 = vand.u32 %v288, 4294901760
    %5823 = vmatpush.msra.mxu0 %v5822
    %v5824 = vand.u32 %v287, 4294901760
    %5825 = vmatpush.msra.mxu0 %v5824
    %v5826 = vand.u32 %v286, 4294901760
    %5827 = vmatpush.msra.mxu0 %v5826
    %v5828 = vand.u32 %v360, 4294901760
    %5829 = vmatmul.f32.gmra.mxu0 %v5828
    %v5830 = vpop.f32.mrf.mxu0
    %v5831 = vadd.f32 %v5794, %v5830
    %5832 = vdwg.mxu0
    %5833 = vst [vmem:[#allocation4] sm:$0xff] %v5831
    // Predicated region
    $region18: #{fc_layer_forward.1} parent=1 // pred_check
      _
    $region19: #{fc_layer_forward.1} parent=1 // pred_check_branch
      %5835 = sbr.rel (0) target = $region21
    $region20: #{fc_layer_forward.1} parent=1 // pred_region
      // Predicated region
      $region22: #{fc_layer_forward.1} parent=20 // pred_check
        _
      $region23: #{fc_layer_forward.1} parent=20 // pred_check_branch
        %5837 = sbr.rel (0) target = $region25
      $region24: #{fc_layer_forward.1} parent=20 // pred_region
        // Predicated region
        $region26: #{fc_layer_forward.1} parent=24 // pred_check
          _
        $region27: #{fc_layer_forward.1} parent=24 // pred_check_branch
          %5839 = sbr.rel target = $region29
        $region28: #{fc_layer_forward.1} parent=24 // pred_region
          // Predicated region
          $region41: #{fc_layer_forward.1} parent=28 // pred_check
            _
          $region42: #{fc_layer_forward.1} parent=28 // pred_check_branch
            %5855 = sbr.rel (0) target = $region44
          $region43: #{fc_layer_forward.1} parent=28 // pred_region
            %s5857 = ssub.s32 16, 1
            loop: start=0, step=1, limit=1
            $region45: #{fc_layer_forward.1} parent=43 // loop_pre_header
              _
            $region46: #{fc_layer_forward.1} parent=43 // loop_header
              %s5859 = sphi 0, %s5863
              %p5860 = scmp.ge.s32.totalorder %s5859, 1
              %s5864 = sphi [#allocation4], [#allocation4]
              %s5865 = sphi %s3, %s3
            $region47: #{fc_layer_forward.1} parent=43 // loop_header_branch
              %5862 = sbr.rel (%p5860) target = $region51
            $region48: #{fc_layer_forward.1} parent=43 // loop_body
              %v5866 = vld [vmem:[%s5864] sm:%s5857]
              %5867 = vst [vmem:[%s5865] sm:%s5857] %v5866
            $region49: #{fc_layer_forward.1} parent=43 // loop_footer
              %s5863 = sadd.s32 1, %s5859
            $region50: #{fc_layer_forward.1} parent=43 // loop_footer_branch
              %5858 = sbr.rel target = $region46
            $region51: #{fc_layer_forward.1} parent=43 // loop_exit
              _
          $region44: #{fc_layer_forward.1} parent=28 // pred_fallthru
            _
        $region29: #{fc_layer_forward.1} parent=24 // pred_fallthru
          _
        // Predicated region
        $region30: #{fc_layer_forward.1} parent=24 // pred_check
          _
        $region31: #{fc_layer_forward.1} parent=24 // pred_check_branch
          %5841 = sbr.rel (0) target = $region33
        $region32: #{fc_layer_forward.1} parent=24 // pred_region
          %s5843 = ssub.s32 16, 1
          loop: start=0, step=1, limit=1
          $region34: #{fc_layer_forward.1} parent=32 // loop_pre_header
            _
          $region35: #{fc_layer_forward.1} parent=32 // loop_header
            %s5845 = sphi 0, %s5849
            %p5846 = scmp.ge.s32.totalorder %s5845, 1
            %s5850 = sphi [#allocation4], [#allocation4]
            %s5851 = sphi %s3, %s3
          $region36: #{fc_layer_forward.1} parent=32 // loop_header_branch
            %5848 = sbr.rel (%p5846) target = $region40
          $region37: #{fc_layer_forward.1} parent=32 // loop_body
            %v5852 = vld [vmem:[%s5850] sm:%s5843]
            %5853 = vst [vmem:[%s5851] sm:%s5843] %v5852
          $region38: #{fc_layer_forward.1} parent=32 // loop_footer
            %s5849 = sadd.s32 1, %s5845
          $region39: #{fc_layer_forward.1} parent=32 // loop_footer_branch
            %5844 = sbr.rel target = $region35
          $region40: #{fc_layer_forward.1} parent=32 // loop_exit
            _
        $region33: #{fc_layer_forward.1} parent=24 // pred_fallthru
          _
      $region25: #{fc_layer_forward.1} parent=20 // pred_fallthru
        _
      %5868 = vnop
    $region21: #{fc_layer_forward.1} parent=1 // pred_fallthru
      _
    // Predicated region
    $region52: #{fc_layer_forward.1} parent=1 // pred_check
      _
    $region53: #{fc_layer_forward.1} parent=1 // pred_check_branch
      %5870 = sbr.rel (0) target = $region55
    $region54: #{fc_layer_forward.1} parent=1 // pred_region
      _
    $region55: #{fc_layer_forward.1} parent=1 // pred_fallthru
      _
    %5871 = vsyncpa [#allocation3], 1

</llo_original>
